<compile_context>
chip_gen: v7x
topology: tpu7x:2x2x1
jax: 0.10.0
libtpu: 0.0.40
codegen_flags: <defaults>
</compile_context>

<pallas_src>
import jax
import jax.numpy as jnp
from jax.experimental import pallas as pl
from jax.experimental.pallas import tpu as pltpu

# ----------------------------- small synthetic BERT config -----------------------------
VOCAB = 120
TYPE_VOCAB = 2
MAX_POS = 16
HIDDEN = 32
NUM_HEADS = 4
HEAD_DIM = HIDDEN // NUM_HEADS
INTERMEDIATE = 64
NUM_LAYERS = 2
NUM_LABELS = 3
LN_EPS = 1e-12
BATCH = 2
SEQ = 8
LANE = 128

# ---- bf16 weight blob layout (rows x 128 lanes), offsets aligned to 16-row tiles ----
OFF_WORD = 0                                   # (128, 32)   vocab padded 120 -> 128
OFF_POS = 128                                  # (16, 32)
OFF_TYPE = OFF_POS + MAX_POS                   # (2, 32)     rows 144..145
OFF_L0 = 160                                   # per-layer stack starts here
LAYER_ROWS = 3 * HIDDEN + INTERMEDIATE         # wqkv(32) + wo(32) + w1(32) + w2(64) = 160
OFF_POOL = OFF_L0 + NUM_LAYERS * LAYER_ROWS    # 480: (32, 32)
OFF_CLS = OFF_POOL + HIDDEN                    # 512: (32, 128) classifier, cols 0..2 real
W_ROWS = OFF_CLS + HIDDEN                      # 544 rows total (bf16, multiple of 16)

# ---- f32 bias / LayerNorm blob layout (rows x 128 lanes) ----
V_EMB_G = 0
V_EMB_B = 1
V_L0 = 2
V_LAYER_ROWS = 8                               # bqkv, bo, ln1g, ln1b, b1, b2, ln2g, ln2b
V_POOL_B = V_L0 + NUM_LAYERS * V_LAYER_ROWS    # 18
V_CLS_B = V_POOL_B + 1                         # 19 (padded lanes hold -3e4)
V_ROWS = 24                                    # pad to multiple of 8

# ---- data blob layout: (B, SEQ, 128) f32 ----
#   lane 0 of row s : input_ids[b, s]
#   lane 1 of row s : token_type_ids[b, s]
#   lane 4 of row 0 : labels[b]
#   lanes 8..8+S of row 0 : attention_mask[b, :]
D_ID_LANE = 0
D_TT_LANE = 1
D_LBL_LANE = 4
D_MASK_LANE = 8


# ----------------------------- in-kernel helpers (f32 elementwise) -----------------------------
def _layernorm(x, g, b):
    mu = jnp.mean(x, axis=-1, keepdims=True)
    var = jnp.mean((x - mu) ** 2, axis=-1, keepdims=True)
    return (x - mu) * jax.lax.rsqrt(var + LN_EPS) * g + b


def _gelu(x):
    # TODO(synk): HF BERT uses exact erf-GELU; tanh approximation used here for safe TPU lowering.
    c = 0.7978845608028654  # sqrt(2/pi)
    return 0.5 * x * (1.0 + jnp.tanh(c * (x + 0.044715 * x * x * x)))


# ----------------------------- fused per-sequence Pallas kernel -----------------------------
def mbert_fused_kernel(data_ref, wblob_ref, vblob_ref, out_ref):
    S, H, NH, DH, I = SEQ, HIDDEN, NUM_HEADS, HEAD_DIM, INTERMEDIATE
    f32, bf16 = jnp.float32, jnp.bfloat16

    # ---- unpack per-sequence inputs from the single data block (8, 128) ----
    ids_i = data_ref[:, D_ID_LANE:D_ID_LANE + 1].astype(jnp.int32)        # (S, 1)
    tt_f = data_ref[:, D_TT_LANE:D_TT_LANE + 1]                           # (S, 1)
    amask = data_ref[0:1, D_MASK_LANE:D_MASK_LANE + S]                    # (1, S)
    label_i = data_ref[0:1, D_LBL_LANE:D_LBL_LANE + 1].astype(jnp.int32)  # (1, 1)

    # ---- embeddings: lane-dense (128-wide) one-hot matmul + direct row reads ----
    word_oh = (jax.lax.broadcasted_iota(jnp.int32, (S, LANE), 1) == ids_i).astype(bf16)
    word = jnp.dot(word_oh, wblob_ref[OFF_WORD:OFF_WORD + LANE, 0:H],
                   preferred_element_type=f32)                            # (S, H) f32
    pos = wblob_ref[OFF_POS:OFF_POS + S, 0:H].astype(f32)                 # (S, H)
    te = wblob_ref[OFF_TYPE:OFF_TYPE + 2, 0:H].astype(f32)                # (2, H)
    tok = te[0:1, :] + tt_f * (te[1:2, :] - te[0:1, :])                   # (S, H)

    x = _layernorm(word + pos + tok,
                   vblob_ref[V_EMB_G:V_EMB_G + 1, 0:H],
                   vblob_ref[V_EMB_B:V_EMB_B + 1, 0:H])                   # (S, H) f32

    add_mask = ((1.0 - amask) * jnp.float32(-1e9)).reshape(1, 1, S)       # (1, 1, S)
    scale = jnp.float32(1.0 / (DH ** 0.5))

    # ---- statically unrolled encoder layers (weights carved from packed blobs) ----
    for l in range(NUM_LAYERS):
        wb = OFF_L0 + l * LAYER_ROWS
        vb = V_L0 + l * V_LAYER_ROWS
        wqkv = wblob_ref[wb:wb + H, 0:3 * H]                              # (H, 3H) bf16
        wo = wblob_ref[wb + H:wb + 2 * H, 0:H]                            # (H, H)
        w1 = wblob_ref[wb + 2 * H:wb + 3 * H, 0:I]                        # (H, I)
        w2 = wblob_ref[wb + 3 * H:wb + 3 * H + I, 0:H]                    # (I, H)
        bqkv = vblob_ref[vb + 0:vb + 1, 0:3 * H]
        bo = vblob_ref[vb + 1:vb + 2, 0:H]
        ln1g = vblob_ref[vb + 2:vb + 3, 0:H]
        ln1b = vblob_ref[vb + 3:vb + 4, 0:H]
        b1 = vblob_ref[vb + 4:vb + 5, 0:I]
        b2 = vblob_ref[vb + 5:vb + 6, 0:H]
        ln2g = vblob_ref[vb + 6:vb + 7, 0:H]
        ln2b = vblob_ref[vb + 7:vb + 8, 0:H]

        qkv = jnp.dot(x.astype(bf16), wqkv, preferred_element_type=f32) + bqkv   # (S, 3H)
        qh = jnp.transpose(qkv[:, 0:H].reshape(S, NH, DH), (1, 0, 2))            # (NH, S, DH)
        kh = jnp.transpose(qkv[:, H:2 * H].reshape(S, NH, DH), (1, 0, 2))
        vh = jnp.transpose(qkv[:, 2 * H:3 * H].reshape(S, NH, DH), (1, 0, 2))

        scores = jnp.einsum('hqd,hkd->hqk', qh.astype(bf16), kh.astype(bf16),
                            preferred_element_type=f32) * scale + add_mask       # (NH, S, S)
        m = jnp.max(scores, axis=-1, keepdims=True)
        p = jnp.exp(scores - m)
        p = p * pl.reciprocal(jnp.sum(p, axis=-1, keepdims=True), approx=True)
        ctx = jnp.einsum('hqk,hkd->hqd', p.astype(bf16), vh.astype(bf16),
                         preferred_element_type=f32)                             # (NH, S, DH)
        ctx2d = jnp.transpose(ctx, (1, 0, 2)).reshape(S, H)                      # (S, H)

        attn = jnp.dot(ctx2d.astype(bf16), wo, preferred_element_type=f32) + bo
        h1 = _layernorm(attn + x, ln1g, ln1b)

        inter = _gelu(jnp.dot(h1.astype(bf16), w1, preferred_element_type=f32) + b1)
        ff = jnp.dot(inter.astype(bf16), w2, preferred_element_type=f32) + b2
        x = _layernorm(ff + h1, ln2g, ln2b)

    # ---- pooler (tanh) + classifier + per-sample cross-entropy ----
    cls_tok = x[0:1, :]                                                    # (1, H)
    pooled = jnp.tanh(
        jnp.dot(cls_tok.astype(bf16), wblob_ref[OFF_POOL:OFF_POOL + H, 0:H],
                preferred_element_type=f32) + vblob_ref[V_POOL_B:V_POOL_B + 1, 0:H])
    # lane-dense logits: cols 0..2 real, padded cols carry -3e4 bias (never win max/lse)
    logits = jnp.dot(pooled.astype(bf16), wblob_ref[OFF_CLS:OFF_CLS + H, :],
                     preferred_element_type=f32) + vblob_ref[V_CLS_B:V_CLS_B + 1, :]

    one_hot = (jax.lax.broadcasted_iota(jnp.int32, (1, LANE), 1) == label_i).astype(f32)
    mx = jnp.max(logits, axis=-1, keepdims=True)
    lse = jnp.log(jnp.sum(jnp.exp(logits - mx), axis=-1, keepdims=True)) + mx
    nll = -jnp.sum(one_hot * (logits - lse), axis=-1, keepdims=True)       # (1, 1)

    out_ref[...] = jnp.zeros((S, LANE), f32)
    out_ref[0:1, :] = logits                                               # row 0: padded logits
    out_ref[1:2, :] = jnp.broadcast_to(nll, (1, LANE))                     # row 1: per-sample NLL


# ----------------------------- parameter init + packing into 2 blobs -----------------------------
def init_params(key):
    def normal(k, shape, scale=0.02):
        return scale * jax.random.normal(k, shape, dtype=jnp.float32)

    (k_word, k_pos, k_type, k_pool, k_cls,
     k_qkv, k_wo, k_w1, k_w2) = jax.random.split(key, 9)
    L, H, I = NUM_LAYERS, HIDDEN, INTERMEDIATE

    word_emb = normal(k_word, (VOCAB, H))
    pos_emb = normal(k_pos, (MAX_POS, H))
    type_emb = normal(k_type, (TYPE_VOCAB, H))
    wqkv = normal(k_qkv, (L, H, 3 * H))          # Wq|Wk|Wv fused
    wo = normal(k_wo, (L, H, H))
    w1 = normal(k_w1, (L, H, I))
    w2 = normal(k_w2, (L, I, H))
    pool_w = normal(k_pool, (H, H))
    cls_w = normal(k_cls, (H, NUM_LABELS))
    # all biases zero, LayerNorm gamma=1 / beta=0 (HF-style init)

    def put(blob, row, mat):
        r, c = mat.shape
        return blob.at[row:row + r, 0:c].set(mat)

    # -- bf16 matmul-weight blob --
    wblob = jnp.zeros((W_ROWS, LANE), jnp.float32)
    wblob = put(wblob, OFF_WORD, word_emb)           # rows 120..127 stay zero (vocab pad)
    wblob = put(wblob, OFF_POS, pos_emb)
    wblob = put(wblob, OFF_TYPE, type_emb)
    for l in range(L):
        base = OFF_L0 + l * LAYER_ROWS
        wblob = put(wblob, base, wqkv[l])
        wblob = put(wblob, base + H, wo[l])
        wblob = put(wblob, base + 2 * H, w1[l])
        wblob = put(wblob, base + 3 * H, w2[l])
    wblob = put(wblob, OFF_POOL, pool_w)
    wblob = put(wblob, OFF_CLS, cls_w)               # padded label cols stay zero

    # -- f32 bias / LayerNorm blob --
    vblob = jnp.zeros((V_ROWS, LANE), jnp.float32)
    vblob = put(vblob, V_EMB_G, jnp.ones((1, H), jnp.float32))
    for l in range(L):
        vb = V_L0 + l * V_LAYER_ROWS
        vblob = put(vblob, vb + 2, jnp.ones((1, H), jnp.float32))   # ln1 gamma
        vblob = put(vblob, vb + 6, jnp.ones((1, H), jnp.float32))   # ln2 gamma
    # classifier bias row: padded lanes get a large negative so padded logits never matter
    vblob = vblob.at[V_CLS_B, :].set(jnp.full((LANE,), -30000.0, jnp.float32))
    vblob = vblob.at[V_CLS_B, 0:NUM_LABELS].set(jnp.zeros((NUM_LABELS,), jnp.float32))

    return {'wblob': wblob.astype(jnp.bfloat16), 'vblob': vblob}


# ----------------------------- forward wrapper (single pallas_call, grid over batch) -----------------------------
def mbert_base_forward(params, input_ids, attention_mask, token_type_ids, labels):
    B, S = input_ids.shape

    # pack all per-batch inputs into one lane-dense f32 blob
    data = jnp.zeros((B, S, LANE), jnp.float32)
    data = data.at[:, :, D_ID_LANE].set(input_ids.astype(jnp.float32))
    data = data.at[:, :, D_TT_LANE].set(token_type_ids.astype(jnp.float32))
    data = data.at[:, 0, D_MASK_LANE:D_MASK_LANE + S].set(attention_mask.astype(jnp.float32))
    data = data.at[:, 0, D_LBL_LANE].set(labels.astype(jnp.float32))

    out = pl.pallas_call(
        mbert_fused_kernel,
        grid=(B,),
        in_specs=[
            pl.BlockSpec((None, S, LANE), lambda b: (b, 0, 0)),     # per-sequence data
            pl.BlockSpec((W_ROWS, LANE), lambda b: (0, 0)),         # bf16 weight blob (DMA'd once)
            pl.BlockSpec((V_ROWS, LANE), lambda b: (0, 0)),         # f32 bias/LN blob (DMA'd once)
        ],
        out_specs=pl.BlockSpec((None, S, LANE), lambda b: (b, 0, 0)),
        out_shape=jax.ShapeDtypeStruct((B, S, LANE), jnp.float32),
        compiler_params=pltpu.CompilerParams(dimension_semantics=("parallel",)),
    )(data, params['wblob'], params['vblob'])

    logits = out[:, 0, :NUM_LABELS]          # (B, NUM_LABELS)
    loss = jnp.mean(out[:, 1, 0])            # CrossEntropyLoss mean over batch
    # matches reference: return (loss, logits); dropout in __init__ is unused in forward
    return loss, logits


if __name__ == "__main__":
    key = jax.random.PRNGKey(0)
    pkey, ikey, mkey, lkey = jax.random.split(key, 4)

    params = init_params(pkey)

    input_ids = jax.random.randint(ikey, (BATCH, SEQ), 0, VOCAB, dtype=jnp.int32)
    attention_mask = jnp.ones((BATCH, SEQ), dtype=jnp.int32)
    token_type_ids = jnp.zeros((BATCH, SEQ), dtype=jnp.int32)
    labels = jax.random.randint(lkey, (BATCH,), 0, NUM_LABELS, dtype=jnp.int32)

    loss, logits = jax.jit(mbert_base_forward)(
        params, input_ids, attention_mask, token_type_ids, labels)
    jax.block_until_ready((loss, logits))

    assert logits.shape == (BATCH, NUM_LABELS)
    assert loss.shape == ()
    assert bool(jnp.isfinite(loss))
    print("KERNEL_OK")
</pallas_src>

<mosaic_0001>
module attributes {stable_mosaic.version = 11 : i64} {
  func.func @mbert_fused_kernel(%arg0: i32, %arg1: memref<1x8x128xf32, #tpu.memory_space<vmem>>, %arg2: memref<544x128xbf16, #tpu.memory_space<vmem>>, %arg3: memref<24x128xf32, #tpu.memory_space<vmem>>, %arg4: memref<1x8x128xf32, #tpu.memory_space<vmem>>) attributes {dimension_semantics = [#tpu.dimension_semantics<parallel>], iteration_bounds = array<i64: 2>, scalar_prefetch = 0 : i64, scratch_operands = 0 : i64, tpu.core_type = #tpu.core_type<tc>, window_params = [{transform_indices = @transform_0, window_bounds = array<i64: 1, 8, 128>}, {pipeline_mode = #tpu.pipeline_mode<synchronous>, transform_indices = @transform_1, window_bounds = array<i64: 544, 128>}, {pipeline_mode = #tpu.pipeline_mode<synchronous>, transform_indices = @transform_2, window_bounds = array<i64: 24, 128>}, {transform_indices = @transform_3, window_bounds = array<i64: 1, 8, 128>}]} {
    %c0 = arith.constant 0 : index
    %c0_0 = arith.constant 0 : index
    %c0_1 = arith.constant 0 : index
    %0 = vector.load %arg1[%c0, %c0_0, %c0_1] : memref<1x8x128xf32, #tpu.memory_space<vmem>>, vector<1x8x1xf32>
    %1 = vector.shape_cast %0 : vector<1x8x1xf32> to vector<8x1xf32>
    %2 = arith.fptosi %1 : vector<8x1xf32> to vector<8x1xi32>
    %c0_2 = arith.constant 0 : index
    %c0_3 = arith.constant 0 : index
    %c1 = arith.constant 1 : index
    %3 = vector.load %arg1[%c0_2, %c0_3, %c1] : memref<1x8x128xf32, #tpu.memory_space<vmem>>, vector<1x8x1xf32>
    %4 = vector.shape_cast %3 : vector<1x8x1xf32> to vector<8x1xf32>
    %c0_4 = arith.constant 0 : index
    %c0_5 = arith.constant 0 : index
    %c8 = arith.constant 8 : index
    %5 = vector.load %arg1[%c0_4, %c0_5, %c8] : memref<1x8x128xf32, #tpu.memory_space<vmem>>, vector<1x1x8xf32>
    %6 = vector.shape_cast %5 : vector<1x1x8xf32> to vector<1x8xf32>
    %c0_6 = arith.constant 0 : index
    %c0_7 = arith.constant 0 : index
    %c4 = arith.constant 4 : index
    %7 = vector.load %arg1[%c0_6, %c0_7, %c4] : memref<1x8x128xf32, #tpu.memory_space<vmem>>, vector<1x1x1xf32>
    %8 = vector.shape_cast %7 : vector<1x1x1xf32> to vector<1x1xf32>
    %9 = arith.fptosi %8 : vector<1x1xf32> to vector<1x1xi32>
    %10 = tpu.iota {dimensions = array<i32: 1>} : vector<8x128xi32>
    %11 = vector.broadcast %2 : vector<8x1xi32> to vector<8x128xi32>
    %12 = arith.cmpi eq, %10, %11 : vector<8x128xi32>
    %13 = arith.extui %12 : vector<8x128xi1> to vector<8x128xi32>
    %14 = arith.sitofp %13 : vector<8x128xi32> to vector<8x128xf32>
    %15 = arith.truncf %14 : vector<8x128xf32> to vector<8x128xbf16>
    %c0_8 = arith.constant 0 : index
    %c0_9 = arith.constant 0 : index
    %16 = vector.load %arg2[%c0_8, %c0_9] : memref<544x128xbf16, #tpu.memory_space<vmem>>, vector<128x32xbf16>
    %cst = arith.constant dense<0.000000e+00> : vector<8x32xf32>
    %17 = tpu.matmul %15, %16, %cst {dimension_numbers = #tpu.dot_dimension_numbers<[1], [0], [0], [1], [0, 0, 1, 1], [], []>} : vector<8x128xbf16>, vector<128x32xbf16>, vector<8x32xf32> -> vector<8x32xf32>
    %c128 = arith.constant 128 : index
    %c0_10 = arith.constant 0 : index
    %18 = vector.load %arg2[%c128, %c0_10] : memref<544x128xbf16, #tpu.memory_space<vmem>>, vector<8x32xbf16>
    %19 = arith.extf %18 : vector<8x32xbf16> to vector<8x32xf32>
    %c144 = arith.constant 144 : index
    %c0_11 = arith.constant 0 : index
    %20 = vector.load %arg2[%c144, %c0_11] : memref<544x128xbf16, #tpu.memory_space<vmem>>, vector<2x32xbf16>
    %21 = arith.extf %20 : vector<2x32xbf16> to vector<2x32xf32>
    %22 = vector.extract_strided_slice %21 {offsets = [0, 0], sizes = [1, 32], strides = [1, 1]} : vector<2x32xf32> to vector<1x32xf32>
    %23 = vector.extract_strided_slice %21 {offsets = [1, 0], sizes = [1, 32], strides = [1, 1]} : vector<2x32xf32> to vector<1x32xf32>
    %24 = vector.extract_strided_slice %21 {offsets = [0, 0], sizes = [1, 32], strides = [1, 1]} : vector<2x32xf32> to vector<1x32xf32>
    %25 = arith.subf %23, %24 : vector<1x32xf32>
    %26 = vector.broadcast %4 : vector<8x1xf32> to vector<8x32xf32>
    %27 = vector.broadcast %25 : vector<1x32xf32> to vector<8x32xf32>
    %28 = arith.mulf %26, %27 : vector<8x32xf32>
    %29 = vector.broadcast %22 : vector<1x32xf32> to vector<8x32xf32>
    %30 = arith.addf %29, %28 : vector<8x32xf32>
    %31 = arith.addf %17, %19 : vector<8x32xf32>
    %32 = arith.addf %31, %30 : vector<8x32xf32>
    %c0_12 = arith.constant 0 : index
    %c0_13 = arith.constant 0 : index
    %33 = vector.load %arg3[%c0_12, %c0_13] : memref<24x128xf32, #tpu.memory_space<vmem>>, vector<1x32xf32>
    %c1_14 = arith.constant 1 : index
    %c0_15 = arith.constant 0 : index
    %34 = vector.load %arg3[%c1_14, %c0_15] : memref<24x128xf32, #tpu.memory_space<vmem>>, vector<1x32xf32>
    %cst_16 = arith.constant dense<0.000000e+00> : vector<8xf32>
    %35 = vector.multi_reduction <add>, %32, %cst_16 [1] : vector<8x32xf32> to vector<8xf32>
    %36 = vector.shape_cast %35 : vector<8xf32> to vector<8x1xf32>
    %cst_17 = arith.constant 3.200000e+01 : f32
    %37 = vector.broadcast %cst_17 : f32 to vector<8x1xf32>
    %38 = arith.divf %36, %37 : vector<8x1xf32>
    %39 = vector.broadcast %38 : vector<8x1xf32> to vector<8x32xf32>
    %40 = arith.subf %32, %39 : vector<8x32xf32>
    %41 = arith.mulf %40, %40 : vector<8x32xf32>
    %cst_18 = arith.constant dense<0.000000e+00> : vector<8xf32>
    %42 = vector.multi_reduction <add>, %41, %cst_18 [1] : vector<8x32xf32> to vector<8xf32>
    %43 = vector.shape_cast %42 : vector<8xf32> to vector<8x1xf32>
    %cst_19 = arith.constant 3.200000e+01 : f32
    %44 = vector.broadcast %cst_19 : f32 to vector<8x1xf32>
    %45 = arith.divf %43, %44 : vector<8x1xf32>
    %46 = vector.broadcast %38 : vector<8x1xf32> to vector<8x32xf32>
    %47 = arith.subf %32, %46 : vector<8x32xf32>
    %cst_20 = arith.constant 9.99999996E-13 : f32
    %48 = vector.broadcast %cst_20 : f32 to vector<8x1xf32>
    %49 = arith.addf %45, %48 : vector<8x1xf32>
    %50 = math.rsqrt %49 : vector<8x1xf32>
    %51 = vector.broadcast %50 : vector<8x1xf32> to vector<8x32xf32>
    %52 = arith.mulf %47, %51 : vector<8x32xf32>
    %53 = vector.broadcast %33 : vector<1x32xf32> to vector<8x32xf32>
    %54 = arith.mulf %52, %53 : vector<8x32xf32>
    %55 = vector.broadcast %34 : vector<1x32xf32> to vector<8x32xf32>
    %56 = arith.addf %54, %55 : vector<8x32xf32>
    %cst_21 = arith.constant 1.000000e+00 : f32
    %57 = vector.broadcast %cst_21 : f32 to vector<1x8xf32>
    %58 = arith.subf %57, %6 : vector<1x8xf32>
    %cst_22 = arith.constant -1.000000e+09 : f32
    %59 = vector.broadcast %cst_22 : f32 to vector<1x8xf32>
    %60 = arith.mulf %58, %59 : vector<1x8xf32>
    %61 = vector.shape_cast %60 : vector<1x8xf32> to vector<1x1x8xf32>
    %c160 = arith.constant 160 : index
    %c0_23 = arith.constant 0 : index
    %62 = vector.load %arg2[%c160, %c0_23] : memref<544x128xbf16, #tpu.memory_space<vmem>>, vector<32x96xbf16>
    %c192 = arith.constant 192 : index
    %c0_24 = arith.constant 0 : index
    %63 = vector.load %arg2[%c192, %c0_24] : memref<544x128xbf16, #tpu.memory_space<vmem>>, vector<32x32xbf16>
    %c224 = arith.constant 224 : index
    %c0_25 = arith.constant 0 : index
    %64 = vector.load %arg2[%c224, %c0_25] : memref<544x128xbf16, #tpu.memory_space<vmem>>, vector<32x64xbf16>
    %c256 = arith.constant 256 : index
    %c0_26 = arith.constant 0 : index
    %65 = vector.load %arg2[%c256, %c0_26] : memref<544x128xbf16, #tpu.memory_space<vmem>>, vector<64x32xbf16>
    %c2 = arith.constant 2 : index
    %c0_27 = arith.constant 0 : index
    %66 = vector.load %arg3[%c2, %c0_27] : memref<24x128xf32, #tpu.memory_space<vmem>>, vector<1x96xf32>
    %c3 = arith.constant 3 : index
    %c0_28 = arith.constant 0 : index
    %67 = vector.load %arg3[%c3, %c0_28] : memref<24x128xf32, #tpu.memory_space<vmem>>, vector<1x32xf32>
    %c4_29 = arith.constant 4 : index
    %c0_30 = arith.constant 0 : index
    %68 = vector.load %arg3[%c4_29, %c0_30] : memref<24x128xf32, #tpu.memory_space<vmem>>, vector<1x32xf32>
    %c5 = arith.constant 5 : index
    %c0_31 = arith.constant 0 : index
    %69 = vector.load %arg3[%c5, %c0_31] : memref<24x128xf32, #tpu.memory_space<vmem>>, vector<1x32xf32>
    %c6 = arith.constant 6 : index
    %c0_32 = arith.constant 0 : index
    %70 = vector.load %arg3[%c6, %c0_32] : memref<24x128xf32, #tpu.memory_space<vmem>>, vector<1x64xf32>
    %c7 = arith.constant 7 : index
    %c0_33 = arith.constant 0 : index
    %71 = vector.load %arg3[%c7, %c0_33] : memref<24x128xf32, #tpu.memory_space<vmem>>, vector<1x32xf32>
    %c8_34 = arith.constant 8 : index
    %c0_35 = arith.constant 0 : index
    %72 = vector.load %arg3[%c8_34, %c0_35] : memref<24x128xf32, #tpu.memory_space<vmem>>, vector<1x32xf32>
    %c9 = arith.constant 9 : index
    %c0_36 = arith.constant 0 : index
    %73 = vector.load %arg3[%c9, %c0_36] : memref<24x128xf32, #tpu.memory_space<vmem>>, vector<1x32xf32>
    %74 = arith.truncf %56 : vector<8x32xf32> to vector<8x32xbf16>
    %cst_37 = arith.constant dense<0.000000e+00> : vector<8x96xf32>
    %75 = tpu.matmul %74, %62, %cst_37 {dimension_numbers = #tpu.dot_dimension_numbers<[1], [0], [0], [1], [0, 0, 1, 1], [], []>} : vector<8x32xbf16>, vector<32x96xbf16>, vector<8x96xf32> -> vector<8x96xf32>
    %76 = vector.broadcast %66 : vector<1x96xf32> to vector<8x96xf32>
    %77 = arith.addf %75, %76 : vector<8x96xf32>
    %78 = vector.extract_strided_slice %77 {offsets = [0, 0], sizes = [8, 32], strides = [1, 1]} : vector<8x96xf32> to vector<8x32xf32>
    %79 = vector.shape_cast %78 : vector<8x32xf32> to vector<8x4x8xf32>
    %80 = tpu.transpose %79, [1, 0, 2] : vector<8x4x8xf32> -> vector<4x8x8xf32>
    %81 = vector.extract_strided_slice %77 {offsets = [0, 32], sizes = [8, 32], strides = [1, 1]} : vector<8x96xf32> to vector<8x32xf32>
    %82 = vector.shape_cast %81 : vector<8x32xf32> to vector<8x4x8xf32>
    %83 = tpu.transpose %82, [1, 0, 2] : vector<8x4x8xf32> -> vector<4x8x8xf32>
    %84 = vector.extract_strided_slice %77 {offsets = [0, 64], sizes = [8, 32], strides = [1, 1]} : vector<8x96xf32> to vector<8x32xf32>
    %85 = vector.shape_cast %84 : vector<8x32xf32> to vector<8x4x8xf32>
    %86 = tpu.transpose %85, [1, 0, 2] : vector<8x4x8xf32> -> vector<4x8x8xf32>
    %87 = arith.truncf %80 : vector<4x8x8xf32> to vector<4x8x8xbf16>
    %88 = arith.truncf %83 : vector<4x8x8xf32> to vector<4x8x8xbf16>
    "tpu.trace_start"() <{level = 10 : i32, message = "hqd,hkd->hqk"}> : () -> ()
    %cst_38 = arith.constant dense<0.000000e+00> : vector<4x8x8xf32>
    %89 = tpu.matmul %87, %88, %cst_38 {dimension_numbers = #tpu.dot_dimension_numbers<[2], [2], [1], [1], [0, 0, 0, 1, 1, 1], [0], [0]>} : vector<4x8x8xbf16>, vector<4x8x8xbf16>, vector<4x8x8xf32> -> vector<4x8x8xf32>
    "tpu.trace_stop"() : () -> ()
    %cst_39 = arith.constant 0.353553385 : f32
    %90 = vector.broadcast %cst_39 : f32 to vector<4x8x8xf32>
    %91 = arith.mulf %89, %90 : vector<4x8x8xf32>
    %92 = vector.broadcast %61 : vector<1x1x8xf32> to vector<4x8x8xf32>
    %93 = arith.addf %91, %92 : vector<4x8x8xf32>
    %cst_40 = arith.constant dense<0xFF800000> : vector<4x8xf32>
    %94 = vector.multi_reduction <maximumf>, %93, %cst_40 [2] : vector<4x8x8xf32> to vector<4x8xf32>
    %95 = vector.shape_cast %94 : vector<4x8xf32> to vector<4x8x1xf32>
    %96 = vector.broadcast %95 : vector<4x8x1xf32> to vector<4x8x8xf32>
    %97 = arith.subf %93, %96 : vector<4x8x8xf32>
    %98 = math.exp %97 : vector<4x8x8xf32>
    %cst_41 = arith.constant dense<0.000000e+00> : vector<4x8xf32>
    %99 = vector.multi_reduction <add>, %98, %cst_41 [2] : vector<4x8x8xf32> to vector<4x8xf32>
    %100 = vector.shape_cast %99 : vector<4x8xf32> to vector<4x8x1xf32>
    %101 = tpu.reciprocal %100 {approx = true} : vector<4x8x1xf32> -> vector<4x8x1xf32>
    %102 = vector.broadcast %101 : vector<4x8x1xf32> to vector<4x8x8xf32>
    %103 = arith.mulf %98, %102 : vector<4x8x8xf32>
    %104 = arith.truncf %103 : vector<4x8x8xf32> to vector<4x8x8xbf16>
    %105 = arith.truncf %86 : vector<4x8x8xf32> to vector<4x8x8xbf16>
    "tpu.trace_start"() <{level = 10 : i32, message = "hqk,hkd->hqd"}> : () -> ()
    %cst_42 = arith.constant dense<0.000000e+00> : vector<4x8x8xf32>
    %106 = tpu.matmul %104, %105, %cst_42 {dimension_numbers = #tpu.dot_dimension_numbers<[2], [1], [1], [2], [0, 0, 0, 1, 1, 2], [0], [0]>} : vector<4x8x8xbf16>, vector<4x8x8xbf16>, vector<4x8x8xf32> -> vector<4x8x8xf32>
    "tpu.trace_stop"() : () -> ()
    %107 = tpu.transpose %106, [1, 0, 2] : vector<4x8x8xf32> -> vector<8x4x8xf32>
    %108 = vector.shape_cast %107 : vector<8x4x8xf32> to vector<8x32xf32>
    %109 = arith.truncf %108 : vector<8x32xf32> to vector<8x32xbf16>
    %cst_43 = arith.constant dense<0.000000e+00> : vector<8x32xf32>
    %110 = tpu.matmul %109, %63, %cst_43 {dimension_numbers = #tpu.dot_dimension_numbers<[1], [0], [0], [1], [0, 0, 1, 1], [], []>} : vector<8x32xbf16>, vector<32x32xbf16>, vector<8x32xf32> -> vector<8x32xf32>
    %111 = vector.broadcast %67 : vector<1x32xf32> to vector<8x32xf32>
    %112 = arith.addf %110, %111 : vector<8x32xf32>
    %113 = arith.addf %112, %56 : vector<8x32xf32>
    %cst_44 = arith.constant dense<0.000000e+00> : vector<8xf32>
    %114 = vector.multi_reduction <add>, %113, %cst_44 [1] : vector<8x32xf32> to vector<8xf32>
    %115 = vector.shape_cast %114 : vector<8xf32> to vector<8x1xf32>
    %cst_45 = arith.constant 3.200000e+01 : f32
    %116 = vector.broadcast %cst_45 : f32 to vector<8x1xf32>
    %117 = arith.divf %115, %116 : vector<8x1xf32>
    %118 = vector.broadcast %117 : vector<8x1xf32> to vector<8x32xf32>
    %119 = arith.subf %113, %118 : vector<8x32xf32>
    %120 = arith.mulf %119, %119 : vector<8x32xf32>
    %cst_46 = arith.constant dense<0.000000e+00> : vector<8xf32>
    %121 = vector.multi_reduction <add>, %120, %cst_46 [1] : vector<8x32xf32> to vector<8xf32>
    %122 = vector.shape_cast %121 : vector<8xf32> to vector<8x1xf32>
    %cst_47 = arith.constant 3.200000e+01 : f32
    %123 = vector.broadcast %cst_47 : f32 to vector<8x1xf32>
    %124 = arith.divf %122, %123 : vector<8x1xf32>
    %125 = vector.broadcast %117 : vector<8x1xf32> to vector<8x32xf32>
    %126 = arith.subf %113, %125 : vector<8x32xf32>
    %cst_48 = arith.constant 9.99999996E-13 : f32
    %127 = vector.broadcast %cst_48 : f32 to vector<8x1xf32>
    %128 = arith.addf %124, %127 : vector<8x1xf32>
    %129 = math.rsqrt %128 : vector<8x1xf32>
    %130 = vector.broadcast %129 : vector<8x1xf32> to vector<8x32xf32>
    %131 = arith.mulf %126, %130 : vector<8x32xf32>
    %132 = vector.broadcast %68 : vector<1x32xf32> to vector<8x32xf32>
    %133 = arith.mulf %131, %132 : vector<8x32xf32>
    %134 = vector.broadcast %69 : vector<1x32xf32> to vector<8x32xf32>
    %135 = arith.addf %133, %134 : vector<8x32xf32>
    %136 = arith.truncf %135 : vector<8x32xf32> to vector<8x32xbf16>
    %cst_49 = arith.constant dense<0.000000e+00> : vector<8x64xf32>
    %137 = tpu.matmul %136, %64, %cst_49 {dimension_numbers = #tpu.dot_dimension_numbers<[1], [0], [0], [1], [0, 0, 1, 1], [], []>} : vector<8x32xbf16>, vector<32x64xbf16>, vector<8x64xf32> -> vector<8x64xf32>
    %138 = vector.broadcast %70 : vector<1x64xf32> to vector<8x64xf32>
    %139 = arith.addf %137, %138 : vector<8x64xf32>
    %cst_50 = arith.constant 5.000000e-01 : f32
    %140 = vector.broadcast %cst_50 : f32 to vector<8x64xf32>
    %141 = arith.mulf %140, %139 : vector<8x64xf32>
    %cst_51 = arith.constant 4.471500e-02 : f32
    %142 = vector.broadcast %cst_51 : f32 to vector<8x64xf32>
    %143 = arith.mulf %142, %139 : vector<8x64xf32>
    %144 = arith.mulf %143, %139 : vector<8x64xf32>
    %145 = arith.mulf %144, %139 : vector<8x64xf32>
    %146 = arith.addf %139, %145 : vector<8x64xf32>
    %cst_52 = arith.constant 0.797884583 : f32
    %147 = vector.broadcast %cst_52 : f32 to vector<8x64xf32>
    %148 = arith.mulf %147, %146 : vector<8x64xf32>
    %149 = math.tanh %148 : vector<8x64xf32>
    %cst_53 = arith.constant 1.000000e+00 : f32
    %150 = vector.broadcast %cst_53 : f32 to vector<8x64xf32>
    %151 = arith.addf %150, %149 : vector<8x64xf32>
    %152 = arith.mulf %141, %151 : vector<8x64xf32>
    %153 = arith.truncf %152 : vector<8x64xf32> to vector<8x64xbf16>
    %cst_54 = arith.constant dense<0.000000e+00> : vector<8x32xf32>
    %154 = tpu.matmul %153, %65, %cst_54 {dimension_numbers = #tpu.dot_dimension_numbers<[1], [0], [0], [1], [0, 0, 1, 1], [], []>} : vector<8x64xbf16>, vector<64x32xbf16>, vector<8x32xf32> -> vector<8x32xf32>
    %155 = vector.broadcast %71 : vector<1x32xf32> to vector<8x32xf32>
    %156 = arith.addf %154, %155 : vector<8x32xf32>
    %157 = arith.addf %156, %135 : vector<8x32xf32>
    %cst_55 = arith.constant dense<0.000000e+00> : vector<8xf32>
    %158 = vector.multi_reduction <add>, %157, %cst_55 [1] : vector<8x32xf32> to vector<8xf32>
    %159 = vector.shape_cast %158 : vector<8xf32> to vector<8x1xf32>
    %cst_56 = arith.constant 3.200000e+01 : f32
    %160 = vector.broadcast %cst_56 : f32 to vector<8x1xf32>
    %161 = arith.divf %159, %160 : vector<8x1xf32>
    %162 = vector.broadcast %161 : vector<8x1xf32> to vector<8x32xf32>
    %163 = arith.subf %157, %162 : vector<8x32xf32>
    %164 = arith.mulf %163, %163 : vector<8x32xf32>
    %cst_57 = arith.constant dense<0.000000e+00> : vector<8xf32>
    %165 = vector.multi_reduction <add>, %164, %cst_57 [1] : vector<8x32xf32> to vector<8xf32>
    %166 = vector.shape_cast %165 : vector<8xf32> to vector<8x1xf32>
    %cst_58 = arith.constant 3.200000e+01 : f32
    %167 = vector.broadcast %cst_58 : f32 to vector<8x1xf32>
    %168 = arith.divf %166, %167 : vector<8x1xf32>
    %169 = vector.broadcast %161 : vector<8x1xf32> to vector<8x32xf32>
    %170 = arith.subf %157, %169 : vector<8x32xf32>
    %cst_59 = arith.constant 9.99999996E-13 : f32
    %171 = vector.broadcast %cst_59 : f32 to vector<8x1xf32>
    %172 = arith.addf %168, %171 : vector<8x1xf32>
    %173 = math.rsqrt %172 : vector<8x1xf32>
    %174 = vector.broadcast %173 : vector<8x1xf32> to vector<8x32xf32>
    %175 = arith.mulf %170, %174 : vector<8x32xf32>
    %176 = vector.broadcast %72 : vector<1x32xf32> to vector<8x32xf32>
    %177 = arith.mulf %175, %176 : vector<8x32xf32>
    %178 = vector.broadcast %73 : vector<1x32xf32> to vector<8x32xf32>
    %179 = arith.addf %177, %178 : vector<8x32xf32>
    %c320 = arith.constant 320 : index
    %c0_60 = arith.constant 0 : index
    %180 = vector.load %arg2[%c320, %c0_60] : memref<544x128xbf16, #tpu.memory_space<vmem>>, vector<32x96xbf16>
    %c352 = arith.constant 352 : index
    %c0_61 = arith.constant 0 : index
    %181 = vector.load %arg2[%c352, %c0_61] : memref<544x128xbf16, #tpu.memory_space<vmem>>, vector<32x32xbf16>
    %c384 = arith.constant 384 : index
    %c0_62 = arith.constant 0 : index
    %182 = vector.load %arg2[%c384, %c0_62] : memref<544x128xbf16, #tpu.memory_space<vmem>>, vector<32x64xbf16>
    %c416 = arith.constant 416 : index
    %c0_63 = arith.constant 0 : index
    %183 = vector.load %arg2[%c416, %c0_63] : memref<544x128xbf16, #tpu.memory_space<vmem>>, vector<64x32xbf16>
    %c10 = arith.constant 10 : index
    %c0_64 = arith.constant 0 : index
    %184 = vector.load %arg3[%c10, %c0_64] : memref<24x128xf32, #tpu.memory_space<vmem>>, vector<1x96xf32>
    %c11 = arith.constant 11 : index
    %c0_65 = arith.constant 0 : index
    %185 = vector.load %arg3[%c11, %c0_65] : memref<24x128xf32, #tpu.memory_space<vmem>>, vector<1x32xf32>
    %c12 = arith.constant 12 : index
    %c0_66 = arith.constant 0 : index
    %186 = vector.load %arg3[%c12, %c0_66] : memref<24x128xf32, #tpu.memory_space<vmem>>, vector<1x32xf32>
    %c13 = arith.constant 13 : index
    %c0_67 = arith.constant 0 : index
    %187 = vector.load %arg3[%c13, %c0_67] : memref<24x128xf32, #tpu.memory_space<vmem>>, vector<1x32xf32>
    %c14 = arith.constant 14 : index
    %c0_68 = arith.constant 0 : index
    %188 = vector.load %arg3[%c14, %c0_68] : memref<24x128xf32, #tpu.memory_space<vmem>>, vector<1x64xf32>
    %c15 = arith.constant 15 : index
    %c0_69 = arith.constant 0 : index
    %189 = vector.load %arg3[%c15, %c0_69] : memref<24x128xf32, #tpu.memory_space<vmem>>, vector<1x32xf32>
    %c16 = arith.constant 16 : index
    %c0_70 = arith.constant 0 : index
    %190 = vector.load %arg3[%c16, %c0_70] : memref<24x128xf32, #tpu.memory_space<vmem>>, vector<1x32xf32>
    %c17 = arith.constant 17 : index
    %c0_71 = arith.constant 0 : index
    %191 = vector.load %arg3[%c17, %c0_71] : memref<24x128xf32, #tpu.memory_space<vmem>>, vector<1x32xf32>
    %192 = arith.truncf %179 : vector<8x32xf32> to vector<8x32xbf16>
    %cst_72 = arith.constant dense<0.000000e+00> : vector<8x96xf32>
    %193 = tpu.matmul %192, %180, %cst_72 {dimension_numbers = #tpu.dot_dimension_numbers<[1], [0], [0], [1], [0, 0, 1, 1], [], []>} : vector<8x32xbf16>, vector<32x96xbf16>, vector<8x96xf32> -> vector<8x96xf32>
    %194 = vector.broadcast %184 : vector<1x96xf32> to vector<8x96xf32>
    %195 = arith.addf %193, %194 : vector<8x96xf32>
    %196 = vector.extract_strided_slice %195 {offsets = [0, 0], sizes = [8, 32], strides = [1, 1]} : vector<8x96xf32> to vector<8x32xf32>
    %197 = vector.shape_cast %196 : vector<8x32xf32> to vector<8x4x8xf32>
    %198 = tpu.transpose %197, [1, 0, 2] : vector<8x4x8xf32> -> vector<4x8x8xf32>
    %199 = vector.extract_strided_slice %195 {offsets = [0, 32], sizes = [8, 32], strides = [1, 1]} : vector<8x96xf32> to vector<8x32xf32>
    %200 = vector.shape_cast %199 : vector<8x32xf32> to vector<8x4x8xf32>
    %201 = tpu.transpose %200, [1, 0, 2] : vector<8x4x8xf32> -> vector<4x8x8xf32>
    %202 = vector.extract_strided_slice %195 {offsets = [0, 64], sizes = [8, 32], strides = [1, 1]} : vector<8x96xf32> to vector<8x32xf32>
    %203 = vector.shape_cast %202 : vector<8x32xf32> to vector<8x4x8xf32>
    %204 = tpu.transpose %203, [1, 0, 2] : vector<8x4x8xf32> -> vector<4x8x8xf32>
    %205 = arith.truncf %198 : vector<4x8x8xf32> to vector<4x8x8xbf16>
    %206 = arith.truncf %201 : vector<4x8x8xf32> to vector<4x8x8xbf16>
    "tpu.trace_start"() <{level = 10 : i32, message = "hqd,hkd->hqk"}> : () -> ()
    %cst_73 = arith.constant dense<0.000000e+00> : vector<4x8x8xf32>
    %207 = tpu.matmul %205, %206, %cst_73 {dimension_numbers = #tpu.dot_dimension_numbers<[2], [2], [1], [1], [0, 0, 0, 1, 1, 1], [0], [0]>} : vector<4x8x8xbf16>, vector<4x8x8xbf16>, vector<4x8x8xf32> -> vector<4x8x8xf32>
    "tpu.trace_stop"() : () -> ()
    %cst_74 = arith.constant 0.353553385 : f32
    %208 = vector.broadcast %cst_74 : f32 to vector<4x8x8xf32>
    %209 = arith.mulf %207, %208 : vector<4x8x8xf32>
    %210 = vector.broadcast %61 : vector<1x1x8xf32> to vector<4x8x8xf32>
    %211 = arith.addf %209, %210 : vector<4x8x8xf32>
    %cst_75 = arith.constant dense<0xFF800000> : vector<4x8xf32>
    %212 = vector.multi_reduction <maximumf>, %211, %cst_75 [2] : vector<4x8x8xf32> to vector<4x8xf32>
    %213 = vector.shape_cast %212 : vector<4x8xf32> to vector<4x8x1xf32>
    %214 = vector.broadcast %213 : vector<4x8x1xf32> to vector<4x8x8xf32>
    %215 = arith.subf %211, %214 : vector<4x8x8xf32>
    %216 = math.exp %215 : vector<4x8x8xf32>
    %cst_76 = arith.constant dense<0.000000e+00> : vector<4x8xf32>
    %217 = vector.multi_reduction <add>, %216, %cst_76 [2] : vector<4x8x8xf32> to vector<4x8xf32>
    %218 = vector.shape_cast %217 : vector<4x8xf32> to vector<4x8x1xf32>
    %219 = tpu.reciprocal %218 {approx = true} : vector<4x8x1xf32> -> vector<4x8x1xf32>
    %220 = vector.broadcast %219 : vector<4x8x1xf32> to vector<4x8x8xf32>
    %221 = arith.mulf %216, %220 : vector<4x8x8xf32>
    %222 = arith.truncf %221 : vector<4x8x8xf32> to vector<4x8x8xbf16>
    %223 = arith.truncf %204 : vector<4x8x8xf32> to vector<4x8x8xbf16>
    "tpu.trace_start"() <{level = 10 : i32, message = "hqk,hkd->hqd"}> : () -> ()
    %cst_77 = arith.constant dense<0.000000e+00> : vector<4x8x8xf32>
    %224 = tpu.matmul %222, %223, %cst_77 {dimension_numbers = #tpu.dot_dimension_numbers<[2], [1], [1], [2], [0, 0, 0, 1, 1, 2], [0], [0]>} : vector<4x8x8xbf16>, vector<4x8x8xbf16>, vector<4x8x8xf32> -> vector<4x8x8xf32>
    "tpu.trace_stop"() : () -> ()
    %225 = tpu.transpose %224, [1, 0, 2] : vector<4x8x8xf32> -> vector<8x4x8xf32>
    %226 = vector.shape_cast %225 : vector<8x4x8xf32> to vector<8x32xf32>
    %227 = arith.truncf %226 : vector<8x32xf32> to vector<8x32xbf16>
    %cst_78 = arith.constant dense<0.000000e+00> : vector<8x32xf32>
    %228 = tpu.matmul %227, %181, %cst_78 {dimension_numbers = #tpu.dot_dimension_numbers<[1], [0], [0], [1], [0, 0, 1, 1], [], []>} : vector<8x32xbf16>, vector<32x32xbf16>, vector<8x32xf32> -> vector<8x32xf32>
    %229 = vector.broadcast %185 : vector<1x32xf32> to vector<8x32xf32>
    %230 = arith.addf %228, %229 : vector<8x32xf32>
    %231 = arith.addf %230, %179 : vector<8x32xf32>
    %cst_79 = arith.constant dense<0.000000e+00> : vector<8xf32>
    %232 = vector.multi_reduction <add>, %231, %cst_79 [1] : vector<8x32xf32> to vector<8xf32>
    %233 = vector.shape_cast %232 : vector<8xf32> to vector<8x1xf32>
    %cst_80 = arith.constant 3.200000e+01 : f32
    %234 = vector.broadcast %cst_80 : f32 to vector<8x1xf32>
    %235 = arith.divf %233, %234 : vector<8x1xf32>
    %236 = vector.broadcast %235 : vector<8x1xf32> to vector<8x32xf32>
    %237 = arith.subf %231, %236 : vector<8x32xf32>
    %238 = arith.mulf %237, %237 : vector<8x32xf32>
    %cst_81 = arith.constant dense<0.000000e+00> : vector<8xf32>
    %239 = vector.multi_reduction <add>, %238, %cst_81 [1] : vector<8x32xf32> to vector<8xf32>
    %240 = vector.shape_cast %239 : vector<8xf32> to vector<8x1xf32>
    %cst_82 = arith.constant 3.200000e+01 : f32
    %241 = vector.broadcast %cst_82 : f32 to vector<8x1xf32>
    %242 = arith.divf %240, %241 : vector<8x1xf32>
    %243 = vector.broadcast %235 : vector<8x1xf32> to vector<8x32xf32>
    %244 = arith.subf %231, %243 : vector<8x32xf32>
    %cst_83 = arith.constant 9.99999996E-13 : f32
    %245 = vector.broadcast %cst_83 : f32 to vector<8x1xf32>
    %246 = arith.addf %242, %245 : vector<8x1xf32>
    %247 = math.rsqrt %246 : vector<8x1xf32>
    %248 = vector.broadcast %247 : vector<8x1xf32> to vector<8x32xf32>
    %249 = arith.mulf %244, %248 : vector<8x32xf32>
    %250 = vector.broadcast %186 : vector<1x32xf32> to vector<8x32xf32>
    %251 = arith.mulf %249, %250 : vector<8x32xf32>
    %252 = vector.broadcast %187 : vector<1x32xf32> to vector<8x32xf32>
    %253 = arith.addf %251, %252 : vector<8x32xf32>
    %254 = arith.truncf %253 : vector<8x32xf32> to vector<8x32xbf16>
    %cst_84 = arith.constant dense<0.000000e+00> : vector<8x64xf32>
    %255 = tpu.matmul %254, %182, %cst_84 {dimension_numbers = #tpu.dot_dimension_numbers<[1], [0], [0], [1], [0, 0, 1, 1], [], []>} : vector<8x32xbf16>, vector<32x64xbf16>, vector<8x64xf32> -> vector<8x64xf32>
    %256 = vector.broadcast %188 : vector<1x64xf32> to vector<8x64xf32>
    %257 = arith.addf %255, %256 : vector<8x64xf32>
    %cst_85 = arith.constant 5.000000e-01 : f32
    %258 = vector.broadcast %cst_85 : f32 to vector<8x64xf32>
    %259 = arith.mulf %258, %257 : vector<8x64xf32>
    %cst_86 = arith.constant 4.471500e-02 : f32
    %260 = vector.broadcast %cst_86 : f32 to vector<8x64xf32>
    %261 = arith.mulf %260, %257 : vector<8x64xf32>
    %262 = arith.mulf %261, %257 : vector<8x64xf32>
    %263 = arith.mulf %262, %257 : vector<8x64xf32>
    %264 = arith.addf %257, %263 : vector<8x64xf32>
    %cst_87 = arith.constant 0.797884583 : f32
    %265 = vector.broadcast %cst_87 : f32 to vector<8x64xf32>
    %266 = arith.mulf %265, %264 : vector<8x64xf32>
    %267 = math.tanh %266 : vector<8x64xf32>
    %cst_88 = arith.constant 1.000000e+00 : f32
    %268 = vector.broadcast %cst_88 : f32 to vector<8x64xf32>
    %269 = arith.addf %268, %267 : vector<8x64xf32>
    %270 = arith.mulf %259, %269 : vector<8x64xf32>
    %271 = arith.truncf %270 : vector<8x64xf32> to vector<8x64xbf16>
    %cst_89 = arith.constant dense<0.000000e+00> : vector<8x32xf32>
    %272 = tpu.matmul %271, %183, %cst_89 {dimension_numbers = #tpu.dot_dimension_numbers<[1], [0], [0], [1], [0, 0, 1, 1], [], []>} : vector<8x64xbf16>, vector<64x32xbf16>, vector<8x32xf32> -> vector<8x32xf32>
    %273 = vector.broadcast %189 : vector<1x32xf32> to vector<8x32xf32>
    %274 = arith.addf %272, %273 : vector<8x32xf32>
    %275 = arith.addf %274, %253 : vector<8x32xf32>
    %cst_90 = arith.constant dense<0.000000e+00> : vector<8xf32>
    %276 = vector.multi_reduction <add>, %275, %cst_90 [1] : vector<8x32xf32> to vector<8xf32>
    %277 = vector.shape_cast %276 : vector<8xf32> to vector<8x1xf32>
    %cst_91 = arith.constant 3.200000e+01 : f32
    %278 = vector.broadcast %cst_91 : f32 to vector<8x1xf32>
    %279 = arith.divf %277, %278 : vector<8x1xf32>
    %280 = vector.broadcast %279 : vector<8x1xf32> to vector<8x32xf32>
    %281 = arith.subf %275, %280 : vector<8x32xf32>
    %282 = arith.mulf %281, %281 : vector<8x32xf32>
    %cst_92 = arith.constant dense<0.000000e+00> : vector<8xf32>
    %283 = vector.multi_reduction <add>, %282, %cst_92 [1] : vector<8x32xf32> to vector<8xf32>
    %284 = vector.shape_cast %283 : vector<8xf32> to vector<8x1xf32>
    %cst_93 = arith.constant 3.200000e+01 : f32
    %285 = vector.broadcast %cst_93 : f32 to vector<8x1xf32>
    %286 = arith.divf %284, %285 : vector<8x1xf32>
    %287 = vector.broadcast %279 : vector<8x1xf32> to vector<8x32xf32>
    %288 = arith.subf %275, %287 : vector<8x32xf32>
    %cst_94 = arith.constant 9.99999996E-13 : f32
    %289 = vector.broadcast %cst_94 : f32 to vector<8x1xf32>
    %290 = arith.addf %286, %289 : vector<8x1xf32>
    %291 = math.rsqrt %290 : vector<8x1xf32>
    %292 = vector.broadcast %291 : vector<8x1xf32> to vector<8x32xf32>
    %293 = arith.mulf %288, %292 : vector<8x32xf32>
    %294 = vector.broadcast %190 : vector<1x32xf32> to vector<8x32xf32>
    %295 = arith.mulf %293, %294 : vector<8x32xf32>
    %296 = vector.broadcast %191 : vector<1x32xf32> to vector<8x32xf32>
    %297 = arith.addf %295, %296 : vector<8x32xf32>
    %298 = vector.extract_strided_slice %297 {offsets = [0, 0], sizes = [1, 32], strides = [1, 1]} : vector<8x32xf32> to vector<1x32xf32>
    %299 = arith.truncf %298 : vector<1x32xf32> to vector<1x32xbf16>
    %c480 = arith.constant 480 : index
    %c0_95 = arith.constant 0 : index
    %300 = vector.load %arg2[%c480, %c0_95] : memref<544x128xbf16, #tpu.memory_space<vmem>>, vector<32x32xbf16>
    %cst_96 = arith.constant dense<0.000000e+00> : vector<1x32xf32>
    %301 = tpu.matmul %299, %300, %cst_96 {dimension_numbers = #tpu.dot_dimension_numbers<[1], [0], [0], [1], [0, 0, 1, 1], [], []>} : vector<1x32xbf16>, vector<32x32xbf16>, vector<1x32xf32> -> vector<1x32xf32>
    %c18 = arith.constant 18 : index
    %c0_97 = arith.constant 0 : index
    %302 = vector.load %arg3[%c18, %c0_97] : memref<24x128xf32, #tpu.memory_space<vmem>>, vector<1x32xf32>
    %303 = arith.addf %301, %302 : vector<1x32xf32>
    %304 = math.tanh %303 : vector<1x32xf32>
    %305 = arith.truncf %304 : vector<1x32xf32> to vector<1x32xbf16>
    %c512 = arith.constant 512 : index
    %c0_98 = arith.constant 0 : index
    %306 = vector.load %arg2[%c512, %c0_98] : memref<544x128xbf16, #tpu.memory_space<vmem>>, vector<32x128xbf16>
    %cst_99 = arith.constant dense<0.000000e+00> : vector<1x128xf32>
    %307 = tpu.matmul %305, %306, %cst_99 {dimension_numbers = #tpu.dot_dimension_numbers<[1], [0], [0], [1], [0, 0, 1, 1], [], []>} : vector<1x32xbf16>, vector<32x128xbf16>, vector<1x128xf32> -> vector<1x128xf32>
    %c19 = arith.constant 19 : index
    %c0_100 = arith.constant 0 : index
    %308 = vector.load %arg3[%c19, %c0_100] : memref<24x128xf32, #tpu.memory_space<vmem>>, vector<1x128xf32>
    %309 = arith.addf %307, %308 : vector<1x128xf32>
    %310 = tpu.iota {dimensions = array<i32: 1>} : vector<1x128xi32>
    %311 = vector.broadcast %9 : vector<1x1xi32> to vector<1x128xi32>
    %312 = arith.cmpi eq, %310, %311 : vector<1x128xi32>
    %313 = arith.extui %312 : vector<1x128xi1> to vector<1x128xi32>
    %314 = arith.sitofp %313 : vector<1x128xi32> to vector<1x128xf32>
    %cst_101 = arith.constant dense<0xFF800000> : vector<1xf32>
    %315 = vector.multi_reduction <maximumf>, %309, %cst_101 [1] : vector<1x128xf32> to vector<1xf32>
    %316 = vector.shape_cast %315 : vector<1xf32> to vector<1x1xf32>
    %317 = vector.broadcast %316 : vector<1x1xf32> to vector<1x128xf32>
    %318 = arith.subf %309, %317 : vector<1x128xf32>
    %319 = math.exp %318 : vector<1x128xf32>
    %cst_102 = arith.constant dense<0.000000e+00> : vector<1xf32>
    %320 = vector.multi_reduction <add>, %319, %cst_102 [1] : vector<1x128xf32> to vector<1xf32>
    %321 = vector.shape_cast %320 : vector<1xf32> to vector<1x1xf32>
    %322 = math.log %321 : vector<1x1xf32>
    %323 = arith.addf %322, %316 : vector<1x1xf32>
    %324 = vector.broadcast %323 : vector<1x1xf32> to vector<1x128xf32>
    %325 = arith.subf %309, %324 : vector<1x128xf32>
    %326 = arith.mulf %314, %325 : vector<1x128xf32>
    %cst_103 = arith.constant dense<0.000000e+00> : vector<1xf32>
    %327 = vector.multi_reduction <add>, %326, %cst_103 [1] : vector<1x128xf32> to vector<1xf32>
    %328 = vector.shape_cast %327 : vector<1xf32> to vector<1x1xf32>
    %cst_104 = arith.constant 0.000000e+00 : f32
    %329 = vector.broadcast %cst_104 : f32 to vector<1x1xf32>
    %330 = arith.subf %329, %328 : vector<1x1xf32>
    %cst_105 = arith.constant 0.000000e+00 : f32
    %331 = vector.broadcast %cst_105 : f32 to vector<8x128xf32>
    %c0_106 = arith.constant 0 : index
    %c0_107 = arith.constant 0 : index
    %c0_108 = arith.constant 0 : index
    %332 = vector.load %arg4[%c0_106, %c0_107, %c0_108] : memref<1x8x128xf32, #tpu.memory_space<vmem>>, vector<1x8x128xf32>
    %333 = vector.shape_cast %332 : vector<1x8x128xf32> to vector<8x128xf32>
    %334 = vector.shape_cast %331 : vector<8x128xf32> to vector<1x8x128xf32>
    tpu.vector_store %arg4[%c0_106, %c0_107, %c0_108], %334 {strides = array<i32>} : memref<1x8x128xf32, #tpu.memory_space<vmem>>, vector<1x8x128xf32>,
    %c0_109 = arith.constant 0 : index
    %c0_110 = arith.constant 0 : index
    %c0_111 = arith.constant 0 : index
    %335 = vector.load %arg4[%c0_109, %c0_110, %c0_111] : memref<1x8x128xf32, #tpu.memory_space<vmem>>, vector<1x1x128xf32>
    %336 = vector.shape_cast %335 : vector<1x1x128xf32> to vector<1x128xf32>
    %337 = vector.shape_cast %309 : vector<1x128xf32> to vector<1x1x128xf32>
    tpu.vector_store %arg4[%c0_109, %c0_110, %c0_111], %337 {strides = array<i32>} : memref<1x8x128xf32, #tpu.memory_space<vmem>>, vector<1x1x128xf32>,
    %338 = vector.shape_cast %330 : vector<1x1xf32> to vector<1x1xf32>
    %339 = vector.broadcast %338 : vector<1x1xf32> to vector<1x128xf32>
    %c0_112 = arith.constant 0 : index
    %c1_113 = arith.constant 1 : index
    %c0_114 = arith.constant 0 : index
    %340 = vector.load %arg4[%c0_112, %c1_113, %c0_114] : memref<1x8x128xf32, #tpu.memory_space<vmem>>, vector<1x1x128xf32>
    %341 = vector.shape_cast %340 : vector<1x1x128xf32> to vector<1x128xf32>
    %342 = vector.shape_cast %339 : vector<1x128xf32> to vector<1x1x128xf32>
    tpu.vector_store %arg4[%c0_112, %c1_113, %c0_114], %342 {strides = array<i32>} : memref<1x8x128xf32, #tpu.memory_space<vmem>>, vector<1x1x128xf32>,
    return
  }
  func.func @transform_0(%arg0: i32) -> (i32, i32, i32) {
    %c0_i32 = arith.constant 0 : i32
    %c0_i32_0 = arith.constant 0 : i32
    %c0_i32_1 = arith.constant 0 : i32
    return %arg0, %c0_i32, %c0_i32_0 : i32, i32, i32
  }
  func.func @transform_1(%arg0: i32) -> (i32, i32) {
    %c0_i32 = arith.constant 0 : i32
    %c0_i32_0 = arith.constant 0 : i32
    %c0_i32_1 = arith.constant 0 : i32
    return %c0_i32, %c0_i32_0 : i32, i32
  }
  func.func @transform_2(%arg0: i32) -> (i32, i32) {
    %c0_i32 = arith.constant 0 : i32
    %c0_i32_0 = arith.constant 0 : i32
    %c0_i32_1 = arith.constant 0 : i32
    return %c0_i32, %c0_i32_0 : i32, i32
  }
  func.func @transform_3(%arg0: i32) -> (i32, i32, i32) {
    %c0_i32 = arith.constant 0 : i32
    %c0_i32_0 = arith.constant 0 : i32
    %c0_i32_1 = arith.constant 0 : i32
    return %arg0, %c0_i32, %c0_i32_0 : i32, i32, i32
  }
}

</mosaic_0001>

<llo_original>
// kernel: mbert_base_forward.1
$region0: #{mbert_base_forward.1}
  #allocation0 [shape = 'u32[]', space=smem, size = 0x4, offset = 0x4, fixed_abs, tag = 'smem constant byte address 0x4 - core index']
  #allocation1 [shape = 'u32[144,128]{1,0:T(1,128)}', space=vmem, size = 0x12000, scoped, tag = 'internal scratch']
  %s0 = inlined_call_operand.vmem [shape: f32[2,8,128], index: 0, kind: input, shape index: {}]
  %s1 = inlined_call_operand.hbm [shape: bf16[544,128], index: 1, kind: input, shape index: {}]
  %s2 = inlined_call_operand.vmem [shape: f32[24,128], index: 2, kind: input, shape index: {}]
  %s3 = inlined_call_operand.vmem [shape: f32[2,8,128], index: 3, kind: output, shape index: {}]
  %s4 = sld [smem:[#allocation0]]
  $region49: #{mbert_base_forward.1} parent=0
    _
  %s6 = ssub.s32 1, %s4
  %s7 = scalar_select 0, %s6, %s4
  $region1: #{mbert_base_forward.1} parent=0
    #allocation2 [shape = 'u8[139264]{0}', space=vmem, size = 0x22000, scoped, tag = 'input window, operand 1, single buffered']
    #allocation3 [shape = 's32[2]{0}', space=sflag, size = 0x8, scoped, tag = 'scoped memory for mbert_base_forward.1']
    %8 = vsyncpa [#allocation3], 0
    loop: start=0, step=1, limit=4
    $region2: #{mbert_base_forward.1} parent=1 // loop_pre_header
      _
    $region3: #{mbert_base_forward.1} parent=1 // loop_header
      %s10 = sphi 0, %s14
      %p11 = scmp.ge.s32.totalorder %s10, 4
      %s20 = sphi 0, %s22
      %s23 = sphi 0, %s20
      %s24 = sphi 0, %s23
      %s40 = sphi 0, %s24
      %s44 = sphi 0, %s44
      %s46 = sphi 0, %s44
      %s47 = sphi 0, %s46
      %s61 = sphi 0, %s47
      %s65 = sphi 0, %s65
      %s67 = sphi 0, %s65
      %s68 = sphi 0, %s67
      %s82 = sphi 0, %s68
      %s88 = sphi 0, %s90
      %s91 = sphi 0, %s88
      %s92 = sphi 0, %s91
      %s108 = sphi 0, %s92
    $region4: #{mbert_base_forward.1} parent=1 // loop_header_branch
      %13 = sbr.rel (%p11) target = $region8
    $region5: #{mbert_base_forward.1} parent=1 // loop_body
      %s15 = ssub.s32 %s10, 1
      %s16 = ssub.s32 %s10, 2
      %s17 = sadd.s32 %s10, 1
      %s18 = ssub.s32 %s10, %s17
      %p19 = scmp.eq.s32.totalorder %s18, 0
      %s21 = sadd.s32 %s20, 1
      %s22 = scalar_select %p19, %s20, %s21
      %p25 = pneg %p19
      %p26 = scmp.eq.s32.totalorder %s10, 1
      %p27 = por %p25, %p26
      %p28 = scmp.ne.s32.totalorder %s20, %s23
      %p29 = scmp.eq.s32.totalorder %s10, 0
      %p30 = por %p28, %p29
      %p31 = scmp.ne.s32.totalorder %s20, %s23
      %p32 = scmp.eq.s32.totalorder %s15, 1
      %p33 = por %p31, %p32
      %p34 = scmp.ne.s32.totalorder %s23, %s24
      %p35 = scmp.eq.s32.totalorder %s15, 0
      %p36 = por %p34, %p35
      %p37 = scmp.ne.s32.totalorder %s23, %s24
      %p38 = scmp.eq.s32.totalorder %s16, 1
      %p39 = por %p37, %p38
      %p41 = scmp.ne.s32.totalorder %s24, %s40
      %p42 = scmp.eq.s32.totalorder %s16, 0
      %p43 = por %p41, %p42
      %s45 = sadd.s32 %s44, 1
      %p48 = scmp.eq.s32.totalorder %s10, 1
      %p49 = scmp.ne.s32.totalorder %s44, %s46
      %p50 = scmp.eq.s32.totalorder %s10, 0
      %p51 = por %p49, %p50
      %p52 = scmp.ne.s32.totalorder %s44, %s46
      %p53 = scmp.eq.s32.totalorder %s15, 1
      %p54 = por %p52, %p53
      %p55 = scmp.ne.s32.totalorder %s46, %s47
      %p56 = scmp.eq.s32.totalorder %s15, 0
      %p57 = por %p55, %p56
      %p58 = scmp.ne.s32.totalorder %s46, %s47
      %p59 = scmp.eq.s32.totalorder %s16, 1
      %p60 = por %p58, %p59
      %p62 = scmp.ne.s32.totalorder %s47, %s61
      %p63 = scmp.eq.s32.totalorder %s16, 0
      %p64 = por %p62, %p63
      %s66 = sadd.s32 %s65, 1
      %p69 = scmp.eq.s32.totalorder %s10, 1
      %p70 = scmp.ne.s32.totalorder %s65, %s67
      %p71 = scmp.eq.s32.totalorder %s10, 0
      %p72 = por %p70, %p71
      %p73 = scmp.ne.s32.totalorder %s65, %s67
      %p74 = scmp.eq.s32.totalorder %s15, 1
      %p75 = por %p73, %p74
      %p76 = scmp.ne.s32.totalorder %s67, %s68
      %p77 = scmp.eq.s32.totalorder %s15, 0
      %p78 = por %p76, %p77
      %p79 = scmp.ne.s32.totalorder %s67, %s68
      %p80 = scmp.eq.s32.totalorder %s16, 1
      %p81 = por %p79, %p80
      %p83 = scmp.ne.s32.totalorder %s68, %s82
      %p84 = scmp.eq.s32.totalorder %s16, 0
      %p85 = por %p83, %p84
      %s86 = ssub.s32 %s10, %s17
      %p87 = scmp.eq.s32.totalorder %s86, 0
      %s89 = sadd.s32 %s88, 1
      %s90 = scalar_select %p87, %s88, %s89
      %p93 = pneg %p87
      %p94 = scmp.eq.s32.totalorder %s10, 1
      %p95 = por %p93, %p94
      %p96 = scmp.ne.s32.totalorder %s88, %s91
      %p97 = scmp.eq.s32.totalorder %s10, 0
      %p98 = por %p96, %p97
      %p99 = scmp.ne.s32.totalorder %s88, %s91
      %p100 = scmp.eq.s32.totalorder %s15, 1
      %p101 = por %p99, %p100
      %p102 = scmp.ne.s32.totalorder %s91, %s92
      %p103 = scmp.eq.s32.totalorder %s15, 0
      %p104 = por %p102, %p103
      %p105 = scmp.ne.s32.totalorder %s91, %s92
      %p106 = scmp.eq.s32.totalorder %s16, 1
      %p107 = por %p105, %p106
      %p109 = scmp.ne.s32.totalorder %s92, %s108
      %p110 = scmp.eq.s32.totalorder %s16, 0
      %p111 = por %p109, %p110
      %p112 = scmp.le.s32.totalorder 1, %s10
      %p113 = scmp.lt.s32.totalorder %s10, 3
      %p114 = pnand %p112, %p113
      %p115 = pneg %p114
      // Predicated region
      $region9: #{mbert_base_forward.1} parent=5 // pred_check
        _
      $region10: #{mbert_base_forward.1} parent=5 // pred_check_branch
        %117 = sbr.rel (%p114) target = $region12
      $region11: #{mbert_base_forward.1} parent=5 // pred_region
        %s118 = ssub.s32 %s10, 1
        // Predicated region
        $region13: #{mbert_base_forward.1} parent=11 // pred_check
          %p119 = pneg %p57
        $region14: #{mbert_base_forward.1} parent=11 // pred_check_branch
          %121 = sbr.rel (%p119) target = $region16
        $region15: #{mbert_base_forward.1} parent=11 // pred_region
          %s123 = ssub.s32 4352, 4352
          %124 = vsyncadd [#allocation3], %s123
          %s125 = sshll.u32 [#allocation2], 4
          %s126 = int_to_ptr.vmem [resolvable:$true] %s125
          %131 = dma.hbm_to_vmem [thread:$0]  %s1, 4352, %s126, [#allocation3], 64, 64, 4
        $region16: #{mbert_base_forward.1} parent=11 // pred_fallthru
          _
        // Predicated region
        $region17: #{mbert_base_forward.1} parent=11 // pred_check
          %p132 = pneg %p78
        $region18: #{mbert_base_forward.1} parent=11 // pred_check_branch
          %134 = sbr.rel (%p132) target = $region20
        $region19: #{mbert_base_forward.1} parent=11 // pred_region
          _
        $region20: #{mbert_base_forward.1} parent=11 // pred_fallthru
          _
      $region12: #{mbert_base_forward.1} parent=5 // pred_fallthru
        _
      %p135 = scmp.lt.s32.totalorder %s10, 2
      // Predicated region
      $region21: #{mbert_base_forward.1} parent=5 // pred_check
        %p136 = pneg %p135
      $region22: #{mbert_base_forward.1} parent=5 // pred_check_branch
        %138 = sbr.rel (%p136) target = $region24
      $region23: #{mbert_base_forward.1} parent=5 // pred_region
        // Predicated region
        $region25: #{mbert_base_forward.1} parent=23 // pred_check
          %p139 = pneg %p30
        $region26: #{mbert_base_forward.1} parent=23 // pred_check_branch
          %141 = sbr.rel (%p139) target = $region28
        $region27: #{mbert_base_forward.1} parent=23 // pred_region
          %p142 = scmp.lt.s32.totalorder %s10, 1
          %s143 = scalar_select %p142, %s10, 1
          %s144 = smul.addr %s143, 8
          %s145 = scalar_lea.vmem %s0, %s144
        $region28: #{mbert_base_forward.1} parent=23 // pred_fallthru
          _
      $region24: #{mbert_base_forward.1} parent=5 // pred_fallthru
        _
      %p146 = scmp.le.s32.totalorder 1, %s10
      %p147 = scmp.lt.s32.totalorder %s10, 3
      %p148 = pnand %p146, %p147
      %p149 = pneg %p148
      // Predicated region
      $region29: #{mbert_base_forward.1} parent=5 // pred_check
        _
      $region30: #{mbert_base_forward.1} parent=5 // pred_check_branch
        %151 = sbr.rel (%p148) target = $region32
      $region31: #{mbert_base_forward.1} parent=5 // pred_region
        %s152 = ssub.s32 %s10, 1
        // Predicated region
        $region33: #{mbert_base_forward.1} parent=31 // pred_check
          %p153 = pneg %p57
        $region34: #{mbert_base_forward.1} parent=31 // pred_check_branch
          %155 = sbr.rel (%p153) target = $region36
        $region35: #{mbert_base_forward.1} parent=31 // pred_region
          %156 = dma.done [#allocation3], 4352
        $region36: #{mbert_base_forward.1} parent=31 // pred_fallthru
          _
        %p157 = scmp.lt.s32.totalorder %s15, 1
        %s158 = scalar_select %p157, %s15, 1
        %s159 = smul.addr %s158, 8
        %s160 = scalar_lea.vmem %s0, %s159
        %p161 = pneg %p36
        %p162 = pneg %p33
        %p163 = pneg %p57
        %p164 = pneg %p54
        %p165 = pneg %p78
        %p166 = pneg %p75
        %p167 = pneg %p104
        %p168 = pneg %p101
        %p169 = scmp.lt.s32.totalorder %s15, 1
        %s170 = scalar_select %p169, %s15, 1
        %s171 = smul.addr %s170, 8
        %s172 = scalar_lea.vmem %s3, %s171
        %p173 = scmp.lt.s32.totalorder %s15, 1
        %s174 = scalar_select %p173, %s15, 1
        %s175 = smul.addr %s174, 8
        %s176 = scalar_lea.vmem %s0, %s175
        %p177 = scmp.lt.s32.totalorder %s15, 1
        %s178 = scalar_select %p177, %s15, 1
        %s179 = smul.addr %s178, 8
        %s180 = scalar_lea.vmem %s3, %s179
        %v182 = vld [vmem:[%s176] sm:$0xff]
        %v183 = vcvt.f32.s32.to.zero.pseudo %v182
        %v184 = vld [vmem:[%s176] sm:$0x1]
        %v185 = vcvt.f32.s32.to.zero.pseudo %v184
        %v186 = vlaneseq
        %v187 = vand.u32 %v186, 127
        %188 = vset.pattern.permute.xlu0 0
        %189 = vperm.xlu0 %188, %v183
        %v190 = vpop.permute.xlu0 %189
        %vm191 = vcmp.eq.s32.totalorder %v187, %v190
        %v192 = vsel %vm191, 1, 0
        %v193 = vcvt.s32.f32 %v192
        %v194 = vpack.c.bf16 %v193, %v193
        %v195 = vld [vmem:[#allocation2] sm:$0xf]
        %v196 = vld [vmem:[#allocation2 + $0x4] sm:$0xf]
        %v197 = vld [vmem:[#allocation2 + $0x8] sm:$0xf]
        %v198 = vld [vmem:[#allocation2 + $0xc] sm:$0xf]
        %v199 = vld [vmem:[#allocation2 + $0x10] sm:$0xf]
        %v200 = vld [vmem:[#allocation2 + $0x14] sm:$0xf]
        %v201 = vld [vmem:[#allocation2 + $0x18] sm:$0xf]
        %v202 = vld [vmem:[#allocation2 + $0x1c] sm:$0xf]
        %v203 = vld [vmem:[#allocation2 + $0x20] sm:$0xf]
        %v204 = vld [vmem:[#allocation2 + $0x24] sm:$0xf]
        %v205 = vld [vmem:[#allocation2 + $0x28] sm:$0xf]
        %v206 = vld [vmem:[#allocation2 + $0x2c] sm:$0xf]
        %v207 = vld [vmem:[#allocation2 + $0x30] sm:$0xf]
        %v208 = vld [vmem:[#allocation2 + $0x34] sm:$0xf]
        %v209 = vld [vmem:[#allocation2 + $0x38] sm:$0xf]
        %v210 = vld [vmem:[#allocation2 + $0x3c] sm:$0xf]
        %v211 = vld [vmem:[#allocation2 + $0x40] sm:$0xf]
        %v212 = vunpack.c.l.bf16 %v211
        %v213 = vld [vmem:[#allocation2 + $0x48] sm:$0x1]
        %v214 = vunpack.c.l.bf16 %v213
        %v216 = vrot.slane %v214, 7
        %v218 = vsub.f32 %v214, %v216
        %220 = vset.pattern.permute.xlu0 1
        %221 = vperm.xlu0 %220, %v182
        %v222 = vpop.permute.xlu0 %221
        %v224 = vlaneseq
        %v225 = vshrl.u32 %v224, 7
        %v226 = vsub.s32 1, %v225
        %v227 = vrot.slane %v218, %v226
        %v228 = vmul.f32 %v222, %v227
        %v229 = vlaneseq
        %v230 = vshrl.u32 %v229, 7
        %v231 = vsub.s32 0, %v230
        %v232 = vrot.slane %v214, %v231
        %v233 = vadd.f32 %v232, %v228
        %v250 = vunpack.c.l.b16 %v195
        %v251 = vunpack.c.l.b16 %v196
        %v252 = vunpack.c.l.b16 %v197
        %v253 = vunpack.c.l.b16 %v198
        %v254 = vunpack.c.l.b16 %v199
        %v255 = vunpack.c.l.b16 %v200
        %v256 = vunpack.c.l.b16 %v201
        %v257 = vunpack.c.l.b16 %v202
        %v258 = vunpack.c.l.b16 %v203
        %v259 = vunpack.c.l.b16 %v204
        %v260 = vunpack.c.l.b16 %v205
        %v261 = vunpack.c.l.b16 %v206
        %v262 = vunpack.c.l.b16 %v207
        %v263 = vunpack.c.l.b16 %v208
        %v264 = vunpack.c.l.b16 %v209
        %v265 = vunpack.c.l.b16 %v210
        %v266 = vpack.c.b16 %v251, %v250
        %v267 = vpack.c.b16 %v253, %v252
        %v268 = vpack.c.b16 %v255, %v254
        %v269 = vpack.c.b16 %v257, %v256
        %v270 = vpack.c.b16 %v259, %v258
        %v271 = vpack.c.b16 %v261, %v260
        %v272 = vpack.c.b16 %v263, %v262
        %v273 = vpack.c.b16 %v265, %v264
        %282 = vmatprep.subr.bf16.mxu0 0
        %283 = vmatpush1.bf16.msra.mxu0 %v266
        %284 = vmatprep.subr.bf16.mxu0 0
        %285 = vmatpush1.bf16.msra.mxu0 %v267
        %286 = vmatprep.subr.bf16.mxu0 0
        %287 = vmatpush1.bf16.msra.mxu0 %v268
        %288 = vmatprep.subr.bf16.mxu0 0
        %289 = vmatpush1.bf16.msra.mxu0 %v269
        %290 = vmatprep.subr.bf16.mxu0 0
        %291 = vmatpush1.bf16.msra.mxu0 %v270
        %292 = vmatprep.subr.bf16.mxu0 0
        %293 = vmatpush1.bf16.msra.mxu0 %v271
        %294 = vmatprep.subr.bf16.mxu0 0
        %295 = vmatpush1.bf16.msra.mxu0 %v272
        %296 = vmatprep.subr.bf16.mxu0 0
        %297 = vmatpush1.bf16.msra.mxu0 %v273
        %298 = vmatprep.subr.bf16.mxu0 0
        %299 = vmatpush1.bf16.msra.mxu0 0
        %300 = vmatprep.subr.bf16.mxu0 0
        %301 = vmatpush1.bf16.msra.mxu0 0
        %302 = vmatprep.subr.bf16.mxu0 0
        %303 = vmatpush1.bf16.msra.mxu0 0
        %304 = vmatprep.subr.bf16.mxu0 0
        %305 = vmatpush1.bf16.msra.mxu0 0
        %306 = vmatprep.subr.bf16.mxu0 0
        %307 = vmatpush1.bf16.msra.mxu0 0
        %308 = vmatprep.subr.bf16.mxu0 0
        %309 = vmatpush1.bf16.msra.mxu0 0
        %310 = vmatprep.subr.bf16.mxu0 0
        %311 = vmatpush1.bf16.msra.mxu0 0
        %312 = vmatprep.subr.bf16.mxu0 0
        %313 = vmatpush1.bf16.msra.mxu0 0
        %314 = vmatprep.mubr.bf16.mxu0 0
        %315 = vmatmul.mubr.bf16.gmra.mrb[0].mxu0 %v194
        %v316 = vpop.f32.mrb[0].mxu0
        %v317 = vadd.f32 %v212, %v316
        %v318 = vpop.f32.mrb[0].mxu0
        %v319 = vpop.f32.mrb[0].mxu0
        %v320 = vpop.f32.mrb[0].mxu0
        %321 = vdwg.mxu0
        %v322 = vadd.f32 %v317, %v233
        %v323 = vld [vmem:[%s2] sm:$0x1]
        %v324 = vld [vmem:[%s2 + $0x1] sm:$0x1]
        %vm325 = vcmask 261120
        %v326 = vsel %vm325, %v322, 0.0
        %327 = vadd.xlane.f32.xlu0 %v326
        %v328 = vpop.xlane.xlu0 %327
        %v329 = vrcp.pop 32.0
        %v330 = vmul.f32 %v328, %v329
        %v331 = vsub.f32 %v322, %v330
        %v332 = vmul.f32 %v331, %v331
        %v333 = vsel %vm325, %v332, 0.0
        %334 = vadd.xlane.f32.xlu0 %v333
        %v335 = vpop.xlane.xlu0 %334
        %v336 = vmul.f32 %v335, %v329
        %v337 = vadd.f32 %v336, 1e-12
        %v338 = vrsqrt.pop %v337
        %v339 = vmul.f32 %v331, %v338
        %v340 = vlaneseq
        %v341 = vshrl.u32 %v340, 7
        %v342 = vsub.s32 0, %v341
        %v343 = vrot.slane %v323, %v342
        %v344 = vmul.f32 %v339, %v343
        %v345 = vlaneseq
        %v346 = vshrl.u32 %v345, 7
        %v347 = vsub.s32 0, %v346
        %v348 = vrot.slane %v324, %v347
        %v349 = vadd.f32 %v344, %v348
        %v350 = vsub.f32 1.0, %v184
        %v351 = vmul.f32 %v350, -1e+09
        %v352 = vld [vmem:[#allocation2 + $0x50] sm:$0xf]
        %v353 = vld [vmem:[#allocation2 + $0x54] sm:$0xf]
        %v354 = vld [vmem:[#allocation2 + $0x58] sm:$0xf]
        %v355 = vld [vmem:[#allocation2 + $0x5c] sm:$0xf]
        %v356 = vld [vmem:[#allocation2 + $0x60] sm:$0xf]
        %v357 = vld [vmem:[#allocation2 + $0x64] sm:$0xf]
        %v358 = vld [vmem:[#allocation2 + $0x68] sm:$0xf]
        %v359 = vld [vmem:[#allocation2 + $0x6c] sm:$0xf]
        %v360 = vld [vmem:[#allocation2 + $0x70] sm:$0xf]
        %v361 = vld [vmem:[#allocation2 + $0x74] sm:$0xf]
        %v362 = vld [vmem:[#allocation2 + $0x78] sm:$0xf]
        %v363 = vld [vmem:[#allocation2 + $0x7c] sm:$0xf]
        %v364 = vld [vmem:[#allocation2 + $0x80] sm:$0xf]
        %v365 = vld [vmem:[#allocation2 + $0x84] sm:$0xf]
        %v366 = vld [vmem:[#allocation2 + $0x88] sm:$0xf]
        %v367 = vld [vmem:[#allocation2 + $0x8c] sm:$0xf]
        %v368 = vld [vmem:[#allocation2 + $0x90] sm:$0xf]
        %v369 = vld [vmem:[#allocation2 + $0x94] sm:$0xf]
        %v370 = vld [vmem:[#allocation2 + $0x98] sm:$0xf]
        %v371 = vld [vmem:[#allocation2 + $0x9c] sm:$0xf]
        %v372 = vld [vmem:[%s2 + $0x2] sm:$0x1]
        %v373 = vld [vmem:[%s2 + $0x3] sm:$0x1]
        %v374 = vld [vmem:[%s2 + $0x4] sm:$0x1]
        %v375 = vld [vmem:[%s2 + $0x5] sm:$0x1]
        %v376 = vld [vmem:[%s2 + $0x6] sm:$0x1]
        %v377 = vld [vmem:[%s2 + $0x7] sm:$0x1]
        %v378 = vld [vmem:[%s2 + $0x8] sm:$0x1]
        %v379 = vld [vmem:[%s2 + $0x9] sm:$0x1]
        %v380 = vpack.c.bf16 %v349, %v349
        %v381 = vlaneseq
        %v382 = vshrl.u32 %v381, 7
        %v383 = vsub.s32 0, %v382
        %v384 = vrot.slane %v372, %v383
        %v389 = vunpack.c.l.b16 %v352
        %v390 = vunpack.c.l.b16 %v353
        %v391 = vunpack.c.l.b16 %v354
        %v392 = vunpack.c.l.b16 %v355
        %v393 = vpack.c.b16 %v390, %v389
        %v394 = vpack.c.b16 %v392, %v391
        %v398 = vsel %vm325, %v380, 0
        %400 = vmatprep.subr.bf16.mxu0 0
        %401 = vmatpush1.bf16.msra.mxu0 %v393
        %402 = vmatprep.subr.bf16.mxu0 0
        %403 = vmatpush1.bf16.msra.mxu0 %v394
        %404 = vmatprep.subr.bf16.mxu0 0
        %405 = vmatpush1.bf16.msra.mxu0 0
        %406 = vmatprep.subr.bf16.mxu0 0
        %407 = vmatpush1.bf16.msra.mxu0 0
        %408 = vmatprep.subr.bf16.mxu0 0
        %409 = vmatpush1.bf16.msra.mxu0 0
        %410 = vmatprep.subr.bf16.mxu0 0
        %411 = vmatpush1.bf16.msra.mxu0 0
        %412 = vmatprep.subr.bf16.mxu0 0
        %413 = vmatpush1.bf16.msra.mxu0 0
        %414 = vmatprep.subr.bf16.mxu0 0
        %415 = vmatpush1.bf16.msra.mxu0 0
        %416 = vmatprep.subr.bf16.mxu0 0
        %417 = vmatpush1.bf16.msra.mxu0 0
        %418 = vmatprep.subr.bf16.mxu0 0
        %419 = vmatpush1.bf16.msra.mxu0 0
        %420 = vmatprep.subr.bf16.mxu0 0
        %421 = vmatpush1.bf16.msra.mxu0 0
        %422 = vmatprep.subr.bf16.mxu0 0
        %423 = vmatpush1.bf16.msra.mxu0 0
        %424 = vmatprep.subr.bf16.mxu0 0
        %425 = vmatpush1.bf16.msra.mxu0 0
        %426 = vmatprep.subr.bf16.mxu0 0
        %427 = vmatpush1.bf16.msra.mxu0 0
        %428 = vmatprep.subr.bf16.mxu0 0
        %429 = vmatpush1.bf16.msra.mxu0 0
        %430 = vmatprep.subr.bf16.mxu0 0
        %431 = vmatpush1.bf16.msra.mxu0 0
        %432 = vmatprep.mubr.bf16.mxu0 0
        %433 = vmatmul.mubr.bf16.gmra.mrb[0].mxu0 %v398
        %v434 = vpop.f32.mrb[0].mxu0
        %v435 = vadd.f32 %v384, %v434
        %v436 = vpop.f32.mrb[0].mxu0
        %v437 = vpop.f32.mrb[0].mxu0
        %v438 = vpop.f32.mrb[0].mxu0
        %439 = vdwg.mxu0
        %441 = vrot.lane.b32.xlu0 %v435, 120
        %v442 = vpop.permute.xlu0 %441
        %444 = vrot.lane.b32.xlu0 %v435, 112
        %v445 = vpop.permute.xlu0 %444
        %447 = vrot.lane.b32.xlu0 %v435, 104
        %v448 = vpop.permute.xlu0 %447
        %v450 = vcombine.low %v435, %v445
        %v451 = vcombine.high %v435, %v445
        %v453 = vunpack.c.l.s4 1983009808
        %v454 = vunpack.c.0.s8 %v453
        %v455 = vlaneseq
        %v456 = vshrl.u32 %v455, 7
        %v457 = vsub.s32 %v454, %v456
        %v458 = vrot.slane %v450, %v457
        %v460 = vunpack.c.l.s4 1983009808
        %v461 = vunpack.c.0.s8 %v460
        %v462 = vlaneseq
        %v463 = vshrl.u32 %v462, 7
        %v464 = vsub.s32 %v461, %v463
        %v465 = vrot.slane %v451, %v464
        %v466 = vcombine.low %v442, %v448
        %v467 = vcombine.high %v442, %v448
        %v469 = vunpack.c.l.s4 1983009808
        %v470 = vunpack.c.0.s8 %v469
        %v471 = vlaneseq
        %v472 = vshrl.u32 %v471, 7
        %v473 = vsub.s32 %v470, %v472
        %v474 = vrot.slane %v466, %v473
        %v476 = vunpack.c.l.s4 1983009808
        %v477 = vunpack.c.0.s8 %v476
        %v478 = vlaneseq
        %v479 = vshrl.u32 %v478, 7
        %v480 = vsub.s32 %v477, %v479
        %v481 = vrot.slane %v467, %v480
        %v482 = vcombine.low %v458, %v474
        %v483 = vcombine.high %v458, %v474
        %v485 = vunpack.c.l.s4 1934713408
        %v486 = vunpack.c.0.s8 %v485
        %v487 = vlaneseq
        %v488 = vshrl.u32 %v487, 7
        %v489 = vsub.s32 %v486, %v488
        %v490 = vrot.slane %v482, %v489
        %v492 = vunpack.c.l.s4 1934713408
        %v493 = vunpack.c.0.s8 %v492
        %v494 = vlaneseq
        %v495 = vshrl.u32 %v494, 7
        %v496 = vsub.s32 %v493, %v495
        %v497 = vrot.slane %v483, %v496
        %v498 = vcombine.low %v465, %v481
        %v499 = vcombine.high %v465, %v481
        %v501 = vunpack.c.l.s4 1934713408
        %v502 = vunpack.c.0.s8 %v501
        %v503 = vlaneseq
        %v504 = vshrl.u32 %v503, 7
        %v505 = vsub.s32 %v502, %v504
        %v506 = vrot.slane %v498, %v505
        %v508 = vunpack.c.l.s4 1934713408
        %v509 = vunpack.c.0.s8 %v508
        %v510 = vlaneseq
        %v511 = vshrl.u32 %v510, 7
        %v512 = vsub.s32 %v509, %v511
        %v513 = vrot.slane %v499, %v512
        %v514 = vcombine.high %v490, 0.0
        %v515 = vcombine.high %v497, 0.0
        %v516 = vcombine.high %v506, 0.0
        %v517 = vcombine.high %v513, 0.0
        %v518 = vcombine.low %v490, %v497
        %v520 = vunpack.c.l.s4 1983009808
        %v521 = vunpack.c.0.s8 %v520
        %v522 = vlaneseq
        %v523 = vshrl.u32 %v522, 7
        %v524 = vsub.s32 %v521, %v523
        %v525 = vrot.slane %v518, %v524
        %v526 = vcombine.low %v514, %v515
        %v528 = vunpack.c.l.s4 1983009808
        %v529 = vunpack.c.0.s8 %v528
        %v530 = vlaneseq
        %v531 = vshrl.u32 %v530, 7
        %v532 = vsub.s32 %v529, %v531
        %v533 = vrot.slane %v526, %v532
        %v534 = vcombine.low %v506, %v513
        %v536 = vunpack.c.l.s4 1983009808
        %v537 = vunpack.c.0.s8 %v536
        %v538 = vlaneseq
        %v539 = vshrl.u32 %v538, 7
        %v540 = vsub.s32 %v537, %v539
        %v541 = vrot.slane %v534, %v540
        %v542 = vcombine.low %v516, %v517
        %v544 = vunpack.c.l.s4 1983009808
        %v545 = vunpack.c.0.s8 %v544
        %v546 = vlaneseq
        %v547 = vshrl.u32 %v546, 7
        %v548 = vsub.s32 %v545, %v547
        %v549 = vrot.slane %v542, %v548
        %v550 = vcombine.low %v525, %v533
        %v551 = vcombine.high %v525, %v533
        %v553 = vunpack.c.l.s4 1934713408
        %v554 = vunpack.c.0.s8 %v553
        %v555 = vlaneseq
        %v556 = vshrl.u32 %v555, 7
        %v557 = vsub.s32 %v554, %v556
        %v558 = vrot.slane %v550, %v557
        %v560 = vunpack.c.l.s4 1934713408
        %v561 = vunpack.c.0.s8 %v560
        %v562 = vlaneseq
        %v563 = vshrl.u32 %v562, 7
        %v564 = vsub.s32 %v561, %v563
        %v565 = vrot.slane %v551, %v564
        %v566 = vcombine.low %v541, %v549
        %v567 = vcombine.high %v541, %v549
        %v569 = vunpack.c.l.s4 1934713408
        %v570 = vunpack.c.0.s8 %v569
        %v571 = vlaneseq
        %v572 = vshrl.u32 %v571, 7
        %v573 = vsub.s32 %v570, %v572
        %v574 = vrot.slane %v566, %v573
        %v576 = vunpack.c.l.s4 1934713408
        %v577 = vunpack.c.0.s8 %v576
        %v578 = vlaneseq
        %v579 = vshrl.u32 %v578, 7
        %v580 = vsub.s32 %v577, %v579
        %v581 = vrot.slane %v567, %v580
        %v582 = vcombine.low %v558, %v574
        %v583 = vcombine.high %v558, %v574
        %v584 = vcombine.low %v565, %v581
        %v585 = vcombine.high %v565, %v581
        %586 = vrot.lane.b32.xlu0 %v435, 96
        %v587 = vpop.permute.xlu0 %586
        %588 = vrot.lane.b32.xlu0 %v442, 96
        %v589 = vpop.permute.xlu0 %588
        %590 = vrot.lane.b32.xlu0 %v445, 96
        %v591 = vpop.permute.xlu0 %590
        %592 = vrot.lane.b32.xlu0 %v448, 96
        %v593 = vpop.permute.xlu0 %592
        %v598 = vcombine.low %v587, %v591
        %v599 = vcombine.high %v587, %v591
        %v601 = vunpack.c.l.s4 1983009808
        %v602 = vunpack.c.0.s8 %v601
        %v603 = vlaneseq
        %v604 = vshrl.u32 %v603, 7
        %v605 = vsub.s32 %v602, %v604
        %v606 = vrot.slane %v598, %v605
        %v608 = vunpack.c.l.s4 1983009808
        %v609 = vunpack.c.0.s8 %v608
        %v610 = vlaneseq
        %v611 = vshrl.u32 %v610, 7
        %v612 = vsub.s32 %v609, %v611
        %v613 = vrot.slane %v599, %v612
        %v614 = vcombine.low %v589, %v593
        %v615 = vcombine.high %v589, %v593
        %v617 = vunpack.c.l.s4 1983009808
        %v618 = vunpack.c.0.s8 %v617
        %v619 = vlaneseq
        %v620 = vshrl.u32 %v619, 7
        %v621 = vsub.s32 %v618, %v620
        %v622 = vrot.slane %v614, %v621
        %v624 = vunpack.c.l.s4 1983009808
        %v625 = vunpack.c.0.s8 %v624
        %v626 = vlaneseq
        %v627 = vshrl.u32 %v626, 7
        %v628 = vsub.s32 %v625, %v627
        %v629 = vrot.slane %v615, %v628
        %v630 = vcombine.low %v606, %v622
        %v631 = vcombine.high %v606, %v622
        %v633 = vunpack.c.l.s4 1934713408
        %v634 = vunpack.c.0.s8 %v633
        %v635 = vlaneseq
        %v636 = vshrl.u32 %v635, 7
        %v637 = vsub.s32 %v634, %v636
        %v638 = vrot.slane %v630, %v637
        %v640 = vunpack.c.l.s4 1934713408
        %v641 = vunpack.c.0.s8 %v640
        %v642 = vlaneseq
        %v643 = vshrl.u32 %v642, 7
        %v644 = vsub.s32 %v641, %v643
        %v645 = vrot.slane %v631, %v644
        %v646 = vcombine.low %v613, %v629
        %v647 = vcombine.high %v613, %v629
        %v649 = vunpack.c.l.s4 1934713408
        %v650 = vunpack.c.0.s8 %v649
        %v651 = vlaneseq
        %v652 = vshrl.u32 %v651, 7
        %v653 = vsub.s32 %v650, %v652
        %v654 = vrot.slane %v646, %v653
        %v656 = vunpack.c.l.s4 1934713408
        %v657 = vunpack.c.0.s8 %v656
        %v658 = vlaneseq
        %v659 = vshrl.u32 %v658, 7
        %v660 = vsub.s32 %v657, %v659
        %v661 = vrot.slane %v647, %v660
        %v662 = vcombine.high %v638, 0.0
        %v663 = vcombine.high %v645, 0.0
        %v664 = vcombine.high %v654, 0.0
        %v665 = vcombine.high %v661, 0.0
        %v666 = vcombine.low %v638, %v645
        %v668 = vunpack.c.l.s4 1983009808
        %v669 = vunpack.c.0.s8 %v668
        %v670 = vlaneseq
        %v671 = vshrl.u32 %v670, 7
        %v672 = vsub.s32 %v669, %v671
        %v673 = vrot.slane %v666, %v672
        %v674 = vcombine.low %v662, %v663
        %v676 = vunpack.c.l.s4 1983009808
        %v677 = vunpack.c.0.s8 %v676
        %v678 = vlaneseq
        %v679 = vshrl.u32 %v678, 7
        %v680 = vsub.s32 %v677, %v679
        %v681 = vrot.slane %v674, %v680
        %v682 = vcombine.low %v654, %v661
        %v684 = vunpack.c.l.s4 1983009808
        %v685 = vunpack.c.0.s8 %v684
        %v686 = vlaneseq
        %v687 = vshrl.u32 %v686, 7
        %v688 = vsub.s32 %v685, %v687
        %v689 = vrot.slane %v682, %v688
        %v690 = vcombine.low %v664, %v665
        %v692 = vunpack.c.l.s4 1983009808
        %v693 = vunpack.c.0.s8 %v692
        %v694 = vlaneseq
        %v695 = vshrl.u32 %v694, 7
        %v696 = vsub.s32 %v693, %v695
        %v697 = vrot.slane %v690, %v696
        %v698 = vcombine.low %v673, %v681
        %v699 = vcombine.high %v673, %v681
        %v701 = vunpack.c.l.s4 1934713408
        %v702 = vunpack.c.0.s8 %v701
        %v703 = vlaneseq
        %v704 = vshrl.u32 %v703, 7
        %v705 = vsub.s32 %v702, %v704
        %v706 = vrot.slane %v698, %v705
        %v708 = vunpack.c.l.s4 1934713408
        %v709 = vunpack.c.0.s8 %v708
        %v710 = vlaneseq
        %v711 = vshrl.u32 %v710, 7
        %v712 = vsub.s32 %v709, %v711
        %v713 = vrot.slane %v699, %v712
        %v714 = vcombine.low %v689, %v697
        %v715 = vcombine.high %v689, %v697
        %v717 = vunpack.c.l.s4 1934713408
        %v718 = vunpack.c.0.s8 %v717
        %v719 = vlaneseq
        %v720 = vshrl.u32 %v719, 7
        %v721 = vsub.s32 %v718, %v720
        %v722 = vrot.slane %v714, %v721
        %v724 = vunpack.c.l.s4 1934713408
        %v725 = vunpack.c.0.s8 %v724
        %v726 = vlaneseq
        %v727 = vshrl.u32 %v726, 7
        %v728 = vsub.s32 %v725, %v727
        %v729 = vrot.slane %v715, %v728
        %v730 = vcombine.low %v706, %v722
        %v731 = vcombine.high %v706, %v722
        %v732 = vcombine.low %v713, %v729
        %v733 = vcombine.high %v713, %v729
        %734 = vrot.lane.b32.xlu0 %v435, 64
        %v735 = vpop.permute.xlu0 %734
        %736 = vrot.lane.b32.xlu0 %v442, 64
        %v737 = vpop.permute.xlu0 %736
        %738 = vrot.lane.b32.xlu0 %v445, 64
        %v739 = vpop.permute.xlu0 %738
        %740 = vrot.lane.b32.xlu0 %v448, 64
        %v741 = vpop.permute.xlu0 %740
        %v746 = vcombine.low %v735, %v739
        %v747 = vcombine.high %v735, %v739
        %v749 = vunpack.c.l.s4 1983009808
        %v750 = vunpack.c.0.s8 %v749
        %v751 = vlaneseq
        %v752 = vshrl.u32 %v751, 7
        %v753 = vsub.s32 %v750, %v752
        %v754 = vrot.slane %v746, %v753
        %v756 = vunpack.c.l.s4 1983009808
        %v757 = vunpack.c.0.s8 %v756
        %v758 = vlaneseq
        %v759 = vshrl.u32 %v758, 7
        %v760 = vsub.s32 %v757, %v759
        %v761 = vrot.slane %v747, %v760
        %v762 = vcombine.low %v737, %v741
        %v763 = vcombine.high %v737, %v741
        %v765 = vunpack.c.l.s4 1983009808
        %v766 = vunpack.c.0.s8 %v765
        %v767 = vlaneseq
        %v768 = vshrl.u32 %v767, 7
        %v769 = vsub.s32 %v766, %v768
        %v770 = vrot.slane %v762, %v769
        %v772 = vunpack.c.l.s4 1983009808
        %v773 = vunpack.c.0.s8 %v772
        %v774 = vlaneseq
        %v775 = vshrl.u32 %v774, 7
        %v776 = vsub.s32 %v773, %v775
        %v777 = vrot.slane %v763, %v776
        %v778 = vcombine.low %v754, %v770
        %v779 = vcombine.high %v754, %v770
        %v781 = vunpack.c.l.s4 1934713408
        %v782 = vunpack.c.0.s8 %v781
        %v783 = vlaneseq
        %v784 = vshrl.u32 %v783, 7
        %v785 = vsub.s32 %v782, %v784
        %v786 = vrot.slane %v778, %v785
        %v788 = vunpack.c.l.s4 1934713408
        %v789 = vunpack.c.0.s8 %v788
        %v790 = vlaneseq
        %v791 = vshrl.u32 %v790, 7
        %v792 = vsub.s32 %v789, %v791
        %v793 = vrot.slane %v779, %v792
        %v794 = vcombine.low %v761, %v777
        %v795 = vcombine.high %v761, %v777
        %v797 = vunpack.c.l.s4 1934713408
        %v798 = vunpack.c.0.s8 %v797
        %v799 = vlaneseq
        %v800 = vshrl.u32 %v799, 7
        %v801 = vsub.s32 %v798, %v800
        %v802 = vrot.slane %v794, %v801
        %v804 = vunpack.c.l.s4 1934713408
        %v805 = vunpack.c.0.s8 %v804
        %v806 = vlaneseq
        %v807 = vshrl.u32 %v806, 7
        %v808 = vsub.s32 %v805, %v807
        %v809 = vrot.slane %v795, %v808
        %v810 = vcombine.high %v786, 0.0
        %v811 = vcombine.high %v793, 0.0
        %v812 = vcombine.high %v802, 0.0
        %v813 = vcombine.high %v809, 0.0
        %v814 = vcombine.low %v786, %v793
        %v816 = vunpack.c.l.s4 1983009808
        %v817 = vunpack.c.0.s8 %v816
        %v818 = vlaneseq
        %v819 = vshrl.u32 %v818, 7
        %v820 = vsub.s32 %v817, %v819
        %v821 = vrot.slane %v814, %v820
        %v822 = vcombine.low %v810, %v811
        %v824 = vunpack.c.l.s4 1983009808
        %v825 = vunpack.c.0.s8 %v824
        %v826 = vlaneseq
        %v827 = vshrl.u32 %v826, 7
        %v828 = vsub.s32 %v825, %v827
        %v829 = vrot.slane %v822, %v828
        %v830 = vcombine.low %v802, %v809
        %v832 = vunpack.c.l.s4 1983009808
        %v833 = vunpack.c.0.s8 %v832
        %v834 = vlaneseq
        %v835 = vshrl.u32 %v834, 7
        %v836 = vsub.s32 %v833, %v835
        %v837 = vrot.slane %v830, %v836
        %v838 = vcombine.low %v812, %v813
        %v840 = vunpack.c.l.s4 1983009808
        %v841 = vunpack.c.0.s8 %v840
        %v842 = vlaneseq
        %v843 = vshrl.u32 %v842, 7
        %v844 = vsub.s32 %v841, %v843
        %v845 = vrot.slane %v838, %v844
        %v846 = vcombine.low %v821, %v829
        %v847 = vcombine.high %v821, %v829
        %v849 = vunpack.c.l.s4 1934713408
        %v850 = vunpack.c.0.s8 %v849
        %v851 = vlaneseq
        %v852 = vshrl.u32 %v851, 7
        %v853 = vsub.s32 %v850, %v852
        %v854 = vrot.slane %v846, %v853
        %v856 = vunpack.c.l.s4 1934713408
        %v857 = vunpack.c.0.s8 %v856
        %v858 = vlaneseq
        %v859 = vshrl.u32 %v858, 7
        %v860 = vsub.s32 %v857, %v859
        %v861 = vrot.slane %v847, %v860
        %v862 = vcombine.low %v837, %v845
        %v863 = vcombine.high %v837, %v845
        %v865 = vunpack.c.l.s4 1934713408
        %v866 = vunpack.c.0.s8 %v865
        %v867 = vlaneseq
        %v868 = vshrl.u32 %v867, 7
        %v869 = vsub.s32 %v866, %v868
        %v870 = vrot.slane %v862, %v869
        %v872 = vunpack.c.l.s4 1934713408
        %v873 = vunpack.c.0.s8 %v872
        %v874 = vlaneseq
        %v875 = vshrl.u32 %v874, 7
        %v876 = vsub.s32 %v873, %v875
        %v877 = vrot.slane %v863, %v876
        %v878 = vcombine.low %v854, %v870
        %v879 = vcombine.high %v854, %v870
        %v880 = vcombine.low %v861, %v877
        %v881 = vcombine.high %v861, %v877
        %v882 = vpack.c.bf16 %v582, %v582
        %v883 = vpack.c.bf16 %v583, %v583
        %v884 = vpack.c.bf16 %v584, %v584
        %v885 = vpack.c.bf16 %v585, %v585
        %v886 = vpack.c.bf16 %v730, %v730
        %v887 = vpack.c.bf16 %v731, %v731
        %v888 = vpack.c.bf16 %v732, %v732
        %v889 = vpack.c.bf16 %v733, %v733
        %vm890 = vcmask 64512
        %v892 = vsel %vm890, %v882, 0
        %v895 = vsel %vm890, %v886, 0
        %897 = vmatprep.subr.bf16.mxu0 0
        %898 = vmatpush1.bf16.xpose.msra.mxu0 %v895
        %899 = vmatprep.subr.bf16.mxu0 0
        %900 = vmatpush1.bf16.xpose.msra.mxu0 0
        %901 = vmatprep.subr.bf16.mxu0 0
        %902 = vmatpush1.bf16.xpose.msra.mxu0 0
        %903 = vmatprep.subr.bf16.mxu0 0
        %904 = vmatpush1.bf16.xpose.msra.mxu0 0
        %905 = vmatprep.subr.bf16.mxu0 0
        %906 = vmatpush1.bf16.xpose.msra.mxu0 0
        %907 = vmatprep.subr.bf16.mxu0 0
        %908 = vmatpush1.bf16.xpose.msra.mxu0 0
        %909 = vmatprep.subr.bf16.mxu0 0
        %910 = vmatpush1.bf16.xpose.msra.mxu0 0
        %911 = vmatprep.subr.bf16.mxu0 0
        %912 = vmatpush1.bf16.xpose.msra.mxu0 0
        %913 = vmatprep.subr.bf16.mxu0 0
        %914 = vmatpush1.bf16.xpose.msra.mxu0 0
        %915 = vmatprep.subr.bf16.mxu0 0
        %916 = vmatpush1.bf16.xpose.msra.mxu0 0
        %917 = vmatprep.subr.bf16.mxu0 0
        %918 = vmatpush1.bf16.xpose.msra.mxu0 0
        %919 = vmatprep.subr.bf16.mxu0 0
        %920 = vmatpush1.bf16.xpose.msra.mxu0 0
        %921 = vmatprep.subr.bf16.mxu0 0
        %922 = vmatpush1.bf16.xpose.msra.mxu0 0
        %923 = vmatprep.subr.bf16.mxu0 0
        %924 = vmatpush1.bf16.xpose.msra.mxu0 0
        %925 = vmatprep.subr.bf16.mxu0 0
        %926 = vmatpush1.bf16.xpose.msra.mxu0 0
        %927 = vmatprep.subr.bf16.mxu0 0
        %928 = vmatpush1.bf16.xpose.msra.mxu0 0
        %929 = vmatprep.mubr.bf16.mxu0 0
        %930 = vmatmul.mubr.bf16.gmra.mrb[0].mxu0 %v892
        %v931 = vpop.f32.mrb[0].mxu0
        %v932 = vadd.f32 0.0, %v931
        %v933 = vpop.f32.mrb[0].mxu0
        %v934 = vpop.f32.mrb[0].mxu0
        %v935 = vpop.f32.mrb[0].mxu0
        %936 = vdwg.mxu0
        %v938 = vsel %vm890, %v883, 0
        %v941 = vsel %vm890, %v887, 0
        %943 = vmatprep.subr.bf16.mxu0 0
        %944 = vmatpush1.bf16.xpose.msra.mxu0 %v941
        %945 = vmatprep.subr.bf16.mxu0 0
        %946 = vmatpush1.bf16.xpose.msra.mxu0 0
        %947 = vmatprep.subr.bf16.mxu0 0
        %948 = vmatpush1.bf16.xpose.msra.mxu0 0
        %949 = vmatprep.subr.bf16.mxu0 0
        %950 = vmatpush1.bf16.xpose.msra.mxu0 0
        %951 = vmatprep.subr.bf16.mxu0 0
        %952 = vmatpush1.bf16.xpose.msra.mxu0 0
        %953 = vmatprep.subr.bf16.mxu0 0
        %954 = vmatpush1.bf16.xpose.msra.mxu0 0
        %955 = vmatprep.subr.bf16.mxu0 0
        %956 = vmatpush1.bf16.xpose.msra.mxu0 0
        %957 = vmatprep.subr.bf16.mxu0 0
        %958 = vmatpush1.bf16.xpose.msra.mxu0 0
        %959 = vmatprep.subr.bf16.mxu0 0
        %960 = vmatpush1.bf16.xpose.msra.mxu0 0
        %961 = vmatprep.subr.bf16.mxu0 0
        %962 = vmatpush1.bf16.xpose.msra.mxu0 0
        %963 = vmatprep.subr.bf16.mxu0 0
        %964 = vmatpush1.bf16.xpose.msra.mxu0 0
        %965 = vmatprep.subr.bf16.mxu0 0
        %966 = vmatpush1.bf16.xpose.msra.mxu0 0
        %967 = vmatprep.subr.bf16.mxu0 0
        %968 = vmatpush1.bf16.xpose.msra.mxu0 0
        %969 = vmatprep.subr.bf16.mxu0 0
        %970 = vmatpush1.bf16.xpose.msra.mxu0 0
        %971 = vmatprep.subr.bf16.mxu0 0
        %972 = vmatpush1.bf16.xpose.msra.mxu0 0
        %973 = vmatprep.subr.bf16.mxu0 0
        %974 = vmatpush1.bf16.xpose.msra.mxu0 0
        %975 = vmatprep.mubr.bf16.mxu0 0
        %976 = vmatmul.mubr.bf16.gmra.mrb[0].mxu0 %v938
        %v977 = vpop.f32.mrb[0].mxu0
        %v978 = vadd.f32 0.0, %v977
        %v979 = vpop.f32.mrb[0].mxu0
        %v980 = vpop.f32.mrb[0].mxu0
        %v981 = vpop.f32.mrb[0].mxu0
        %982 = vdwg.mxu0
        %v984 = vsel %vm890, %v884, 0
        %v987 = vsel %vm890, %v888, 0
        %989 = vmatprep.subr.bf16.mxu0 0
        %990 = vmatpush1.bf16.xpose.msra.mxu0 %v987
        %991 = vmatprep.subr.bf16.mxu0 0
        %992 = vmatpush1.bf16.xpose.msra.mxu0 0
        %993 = vmatprep.subr.bf16.mxu0 0
        %994 = vmatpush1.bf16.xpose.msra.mxu0 0
        %995 = vmatprep.subr.bf16.mxu0 0
        %996 = vmatpush1.bf16.xpose.msra.mxu0 0
        %997 = vmatprep.subr.bf16.mxu0 0
        %998 = vmatpush1.bf16.xpose.msra.mxu0 0
        %999 = vmatprep.subr.bf16.mxu0 0
        %1000 = vmatpush1.bf16.xpose.msra.mxu0 0
        %1001 = vmatprep.subr.bf16.mxu0 0
        %1002 = vmatpush1.bf16.xpose.msra.mxu0 0
        %1003 = vmatprep.subr.bf16.mxu0 0
        %1004 = vmatpush1.bf16.xpose.msra.mxu0 0
        %1005 = vmatprep.subr.bf16.mxu0 0
        %1006 = vmatpush1.bf16.xpose.msra.mxu0 0
        %1007 = vmatprep.subr.bf16.mxu0 0
        %1008 = vmatpush1.bf16.xpose.msra.mxu0 0
        %1009 = vmatprep.subr.bf16.mxu0 0
        %1010 = vmatpush1.bf16.xpose.msra.mxu0 0
        %1011 = vmatprep.subr.bf16.mxu0 0
        %1012 = vmatpush1.bf16.xpose.msra.mxu0 0
        %1013 = vmatprep.subr.bf16.mxu0 0
        %1014 = vmatpush1.bf16.xpose.msra.mxu0 0
        %1015 = vmatprep.subr.bf16.mxu0 0
        %1016 = vmatpush1.bf16.xpose.msra.mxu0 0
        %1017 = vmatprep.subr.bf16.mxu0 0
        %1018 = vmatpush1.bf16.xpose.msra.mxu0 0
        %1019 = vmatprep.subr.bf16.mxu0 0
        %1020 = vmatpush1.bf16.xpose.msra.mxu0 0
        %1021 = vmatprep.mubr.bf16.mxu0 0
        %1022 = vmatmul.mubr.bf16.gmra.mrb[0].mxu0 %v984
        %v1023 = vpop.f32.mrb[0].mxu0
        %v1024 = vadd.f32 0.0, %v1023
        %v1025 = vpop.f32.mrb[0].mxu0
        %v1026 = vpop.f32.mrb[0].mxu0
        %v1027 = vpop.f32.mrb[0].mxu0
        %1028 = vdwg.mxu0
        %v1030 = vsel %vm890, %v885, 0
        %v1033 = vsel %vm890, %v889, 0
        %1035 = vmatprep.subr.bf16.mxu0 0
        %1036 = vmatpush1.bf16.xpose.msra.mxu0 %v1033
        %1037 = vmatprep.subr.bf16.mxu0 0
        %1038 = vmatpush1.bf16.xpose.msra.mxu0 0
        %1039 = vmatprep.subr.bf16.mxu0 0
        %1040 = vmatpush1.bf16.xpose.msra.mxu0 0
        %1041 = vmatprep.subr.bf16.mxu0 0
        %1042 = vmatpush1.bf16.xpose.msra.mxu0 0
        %1043 = vmatprep.subr.bf16.mxu0 0
        %1044 = vmatpush1.bf16.xpose.msra.mxu0 0
        %1045 = vmatprep.subr.bf16.mxu0 0
        %1046 = vmatpush1.bf16.xpose.msra.mxu0 0
        %1047 = vmatprep.subr.bf16.mxu0 0
        %1048 = vmatpush1.bf16.xpose.msra.mxu0 0
        %1049 = vmatprep.subr.bf16.mxu0 0
        %1050 = vmatpush1.bf16.xpose.msra.mxu0 0
        %1051 = vmatprep.subr.bf16.mxu0 0
        %1052 = vmatpush1.bf16.xpose.msra.mxu0 0
        %1053 = vmatprep.subr.bf16.mxu0 0
        %1054 = vmatpush1.bf16.xpose.msra.mxu0 0
        %1055 = vmatprep.subr.bf16.mxu0 0
        %1056 = vmatpush1.bf16.xpose.msra.mxu0 0
        %1057 = vmatprep.subr.bf16.mxu0 0
        %1058 = vmatpush1.bf16.xpose.msra.mxu0 0
        %1059 = vmatprep.subr.bf16.mxu0 0
        %1060 = vmatpush1.bf16.xpose.msra.mxu0 0
        %1061 = vmatprep.subr.bf16.mxu0 0
        %1062 = vmatpush1.bf16.xpose.msra.mxu0 0
        %1063 = vmatprep.subr.bf16.mxu0 0
        %1064 = vmatpush1.bf16.xpose.msra.mxu0 0
        %1065 = vmatprep.subr.bf16.mxu0 0
        %1066 = vmatpush1.bf16.xpose.msra.mxu0 0
        %1067 = vmatprep.mubr.bf16.mxu0 0
        %1068 = vmatmul.mubr.bf16.gmra.mrb[0].mxu0 %v1030
        %v1069 = vpop.f32.mrb[0].mxu0
        %v1070 = vadd.f32 0.0, %v1069
        %v1071 = vpop.f32.mrb[0].mxu0
        %v1072 = vpop.f32.mrb[0].mxu0
        %v1073 = vpop.f32.mrb[0].mxu0
        %1074 = vdwg.mxu0
        %v1075 = vmul.f32 %v932, 0.35355338
        %v1076 = vmul.f32 %v978, 0.35355338
        %v1077 = vmul.f32 %v1024, 0.35355338
        %v1078 = vmul.f32 %v1070, 0.35355338
        %v1079 = vlaneseq
        %v1080 = vshrl.u32 %v1079, 7
        %v1081 = vsub.s32 0, %v1080
        %v1082 = vrot.slane %v351, %v1081
        %1084 = vrot.lane.b32.xlu0 %v1082, 120
        %v1085 = vpop.permute.xlu0 %1084
        %v1087 = vadd.f32 %v1075, %v1085
        %v1088 = vadd.f32 %v1076, %v1085
        %v1089 = vadd.f32 %v1077, %v1085
        %v1090 = vadd.f32 %v1078, %v1085
        %v1091 = vsel %vm890, %v1087, -inf
        %1092 = vmax.xlane.f32.xlu0 %v1091
        %v1093 = vpop.xlane.xlu0 %1092
        %v1094 = vsel %vm890, %v1088, -inf
        %1095 = vmax.xlane.f32.xlu0 %v1094
        %v1096 = vpop.xlane.xlu0 %1095
        %v1097 = vsel %vm890, %v1089, -inf
        %1098 = vmax.xlane.f32.xlu0 %v1097
        %v1099 = vpop.xlane.xlu0 %1098
        %v1100 = vsel %vm890, %v1090, -inf
        %1101 = vmax.xlane.f32.xlu0 %v1100
        %v1102 = vpop.xlane.xlu0 %1101
        %v1103 = vsub.f32 %v1087, %v1093
        %v1104 = vsub.f32 %v1088, %v1096
        %v1105 = vsub.f32 %v1089, %v1099
        %v1106 = vsub.f32 %v1090, %v1102
        %v1107 = vmul.f32 %v1103, 1.442695
        %v1108 = vpow.pop %v1107
        %v1109 = vmul.f32 %v1104, 1.442695
        %v1110 = vpow.pop %v1109
        %v1111 = vmul.f32 %v1105, 1.442695
        %v1112 = vpow.pop %v1111
        %v1113 = vmul.f32 %v1106, 1.442695
        %v1114 = vpow.pop %v1113
        %v1115 = vsel %vm890, %v1108, 0.0
        %1116 = vadd.xlane.f32.xlu0 %v1115
        %v1117 = vpop.xlane.xlu0 %1116
        %v1118 = vsel %vm890, %v1110, 0.0
        %1119 = vadd.xlane.f32.xlu0 %v1118
        %v1120 = vpop.xlane.xlu0 %1119
        %v1121 = vsel %vm890, %v1112, 0.0
        %1122 = vadd.xlane.f32.xlu0 %v1121
        %v1123 = vpop.xlane.xlu0 %1122
        %v1124 = vsel %vm890, %v1114, 0.0
        %1125 = vadd.xlane.f32.xlu0 %v1124
        %v1126 = vpop.xlane.xlu0 %1125
        %v1127 = vrcp.pop %v1117
        %v1128 = vrcp.pop %v1120
        %v1129 = vrcp.pop %v1123
        %v1130 = vrcp.pop %v1126
        %v1131 = vmul.f32 %v1108, %v1127
        %v1132 = vmul.f32 %v1110, %v1128
        %v1133 = vmul.f32 %v1112, %v1129
        %v1134 = vmul.f32 %v1114, %v1130
        %v1135 = vpack.c.bf16 %v1131, %v1131
        %v1136 = vpack.c.bf16 %v1132, %v1132
        %v1137 = vpack.c.bf16 %v1133, %v1133
        %v1138 = vpack.c.bf16 %v1134, %v1134
        %v1139 = vpack.c.bf16 %v878, %v878
        %v1140 = vpack.c.bf16 %v879, %v879
        %v1141 = vpack.c.bf16 %v880, %v880
        %v1142 = vpack.c.bf16 %v881, %v881
        %v1144 = vsel %vm890, %v1135, 0
        %vm1146 = vcmask 1043456
        %v1148 = vsel %vm1146, %v1139, 0
        %1150 = vmatprep.subr.bf16.mxu0 0
        %1151 = vmatpush1.bf16.msra.mxu0 %v1148
        %1152 = vmatprep.subr.bf16.mxu0 0
        %1153 = vmatpush1.bf16.msra.mxu0 0
        %1154 = vmatprep.subr.bf16.mxu0 0
        %1155 = vmatpush1.bf16.msra.mxu0 0
        %1156 = vmatprep.subr.bf16.mxu0 0
        %1157 = vmatpush1.bf16.msra.mxu0 0
        %1158 = vmatprep.subr.bf16.mxu0 0
        %1159 = vmatpush1.bf16.msra.mxu0 0
        %1160 = vmatprep.subr.bf16.mxu0 0
        %1161 = vmatpush1.bf16.msra.mxu0 0
        %1162 = vmatprep.subr.bf16.mxu0 0
        %1163 = vmatpush1.bf16.msra.mxu0 0
        %1164 = vmatprep.subr.bf16.mxu0 0
        %1165 = vmatpush1.bf16.msra.mxu0 0
        %1166 = vmatprep.subr.bf16.mxu0 0
        %1167 = vmatpush1.bf16.msra.mxu0 0
        %1168 = vmatprep.subr.bf16.mxu0 0
        %1169 = vmatpush1.bf16.msra.mxu0 0
        %1170 = vmatprep.subr.bf16.mxu0 0
        %1171 = vmatpush1.bf16.msra.mxu0 0
        %1172 = vmatprep.subr.bf16.mxu0 0
        %1173 = vmatpush1.bf16.msra.mxu0 0
        %1174 = vmatprep.subr.bf16.mxu0 0
        %1175 = vmatpush1.bf16.msra.mxu0 0
        %1176 = vmatprep.subr.bf16.mxu0 0
        %1177 = vmatpush1.bf16.msra.mxu0 0
        %1178 = vmatprep.subr.bf16.mxu0 0
        %1179 = vmatpush1.bf16.msra.mxu0 0
        %1180 = vmatprep.subr.bf16.mxu0 0
        %1181 = vmatpush1.bf16.msra.mxu0 0
        %1182 = vmatprep.mubr.bf16.mxu0 0
        %1183 = vmatmul.mubr.bf16.gmra.mrb[0].mxu0 %v1144
        %v1184 = vpop.f32.mrb[0].mxu0
        %v1185 = vadd.f32 0.0, %v1184
        %v1186 = vpop.f32.mrb[0].mxu0
        %v1187 = vpop.f32.mrb[0].mxu0
        %v1188 = vpop.f32.mrb[0].mxu0
        %1189 = vdwg.mxu0
        %v1191 = vsel %vm890, %v1136, 0
        %v1194 = vsel %vm1146, %v1140, 0
        %1196 = vmatprep.subr.bf16.mxu0 0
        %1197 = vmatpush1.bf16.msra.mxu0 %v1194
        %1198 = vmatprep.subr.bf16.mxu0 0
        %1199 = vmatpush1.bf16.msra.mxu0 0
        %1200 = vmatprep.subr.bf16.mxu0 0
        %1201 = vmatpush1.bf16.msra.mxu0 0
        %1202 = vmatprep.subr.bf16.mxu0 0
        %1203 = vmatpush1.bf16.msra.mxu0 0
        %1204 = vmatprep.subr.bf16.mxu0 0
        %1205 = vmatpush1.bf16.msra.mxu0 0
        %1206 = vmatprep.subr.bf16.mxu0 0
        %1207 = vmatpush1.bf16.msra.mxu0 0
        %1208 = vmatprep.subr.bf16.mxu0 0
        %1209 = vmatpush1.bf16.msra.mxu0 0
        %1210 = vmatprep.subr.bf16.mxu0 0
        %1211 = vmatpush1.bf16.msra.mxu0 0
        %1212 = vmatprep.subr.bf16.mxu0 0
        %1213 = vmatpush1.bf16.msra.mxu0 0
        %1214 = vmatprep.subr.bf16.mxu0 0
        %1215 = vmatpush1.bf16.msra.mxu0 0
        %1216 = vmatprep.subr.bf16.mxu0 0
        %1217 = vmatpush1.bf16.msra.mxu0 0
        %1218 = vmatprep.subr.bf16.mxu0 0
        %1219 = vmatpush1.bf16.msra.mxu0 0
        %1220 = vmatprep.subr.bf16.mxu0 0
        %1221 = vmatpush1.bf16.msra.mxu0 0
        %1222 = vmatprep.subr.bf16.mxu0 0
        %1223 = vmatpush1.bf16.msra.mxu0 0
        %1224 = vmatprep.subr.bf16.mxu0 0
        %1225 = vmatpush1.bf16.msra.mxu0 0
        %1226 = vmatprep.subr.bf16.mxu0 0
        %1227 = vmatpush1.bf16.msra.mxu0 0
        %1228 = vmatprep.mubr.bf16.mxu0 0
        %1229 = vmatmul.mubr.bf16.gmra.mrb[0].mxu0 %v1191
        %v1230 = vpop.f32.mrb[0].mxu0
        %v1231 = vadd.f32 0.0, %v1230
        %v1232 = vpop.f32.mrb[0].mxu0
        %v1233 = vpop.f32.mrb[0].mxu0
        %v1234 = vpop.f32.mrb[0].mxu0
        %1235 = vdwg.mxu0
        %v1237 = vsel %vm890, %v1137, 0
        %v1240 = vsel %vm1146, %v1141, 0
        %1242 = vmatprep.subr.bf16.mxu0 0
        %1243 = vmatpush1.bf16.msra.mxu0 %v1240
        %1244 = vmatprep.subr.bf16.mxu0 0
        %1245 = vmatpush1.bf16.msra.mxu0 0
        %1246 = vmatprep.subr.bf16.mxu0 0
        %1247 = vmatpush1.bf16.msra.mxu0 0
        %1248 = vmatprep.subr.bf16.mxu0 0
        %1249 = vmatpush1.bf16.msra.mxu0 0
        %1250 = vmatprep.subr.bf16.mxu0 0
        %1251 = vmatpush1.bf16.msra.mxu0 0
        %1252 = vmatprep.subr.bf16.mxu0 0
        %1253 = vmatpush1.bf16.msra.mxu0 0
        %1254 = vmatprep.subr.bf16.mxu0 0
        %1255 = vmatpush1.bf16.msra.mxu0 0
        %1256 = vmatprep.subr.bf16.mxu0 0
        %1257 = vmatpush1.bf16.msra.mxu0 0
        %1258 = vmatprep.subr.bf16.mxu0 0
        %1259 = vmatpush1.bf16.msra.mxu0 0
        %1260 = vmatprep.subr.bf16.mxu0 0
        %1261 = vmatpush1.bf16.msra.mxu0 0
        %1262 = vmatprep.subr.bf16.mxu0 0
        %1263 = vmatpush1.bf16.msra.mxu0 0
        %1264 = vmatprep.subr.bf16.mxu0 0
        %1265 = vmatpush1.bf16.msra.mxu0 0
        %1266 = vmatprep.subr.bf16.mxu0 0
        %1267 = vmatpush1.bf16.msra.mxu0 0
        %1268 = vmatprep.subr.bf16.mxu0 0
        %1269 = vmatpush1.bf16.msra.mxu0 0
        %1270 = vmatprep.subr.bf16.mxu0 0
        %1271 = vmatpush1.bf16.msra.mxu0 0
        %1272 = vmatprep.subr.bf16.mxu0 0
        %1273 = vmatpush1.bf16.msra.mxu0 0
        %1274 = vmatprep.mubr.bf16.mxu0 0
        %1275 = vmatmul.mubr.bf16.gmra.mrb[0].mxu0 %v1237
        %v1276 = vpop.f32.mrb[0].mxu0
        %v1277 = vadd.f32 0.0, %v1276
        %v1278 = vpop.f32.mrb[0].mxu0
        %v1279 = vpop.f32.mrb[0].mxu0
        %v1280 = vpop.f32.mrb[0].mxu0
        %1281 = vdwg.mxu0
        %v1283 = vsel %vm890, %v1138, 0
        %v1286 = vsel %vm1146, %v1142, 0
        %1288 = vmatprep.subr.bf16.mxu0 0
        %1289 = vmatpush1.bf16.msra.mxu0 %v1286
        %1290 = vmatprep.subr.bf16.mxu0 0
        %1291 = vmatpush1.bf16.msra.mxu0 0
        %1292 = vmatprep.subr.bf16.mxu0 0
        %1293 = vmatpush1.bf16.msra.mxu0 0
        %1294 = vmatprep.subr.bf16.mxu0 0
        %1295 = vmatpush1.bf16.msra.mxu0 0
        %1296 = vmatprep.subr.bf16.mxu0 0
        %1297 = vmatpush1.bf16.msra.mxu0 0
        %1298 = vmatprep.subr.bf16.mxu0 0
        %1299 = vmatpush1.bf16.msra.mxu0 0
        %1300 = vmatprep.subr.bf16.mxu0 0
        %1301 = vmatpush1.bf16.msra.mxu0 0
        %1302 = vmatprep.subr.bf16.mxu0 0
        %1303 = vmatpush1.bf16.msra.mxu0 0
        %1304 = vmatprep.subr.bf16.mxu0 0
        %1305 = vmatpush1.bf16.msra.mxu0 0
        %1306 = vmatprep.subr.bf16.mxu0 0
        %1307 = vmatpush1.bf16.msra.mxu0 0
        %1308 = vmatprep.subr.bf16.mxu0 0
        %1309 = vmatpush1.bf16.msra.mxu0 0
        %1310 = vmatprep.subr.bf16.mxu0 0
        %1311 = vmatpush1.bf16.msra.mxu0 0
        %1312 = vmatprep.subr.bf16.mxu0 0
        %1313 = vmatpush1.bf16.msra.mxu0 0
        %1314 = vmatprep.subr.bf16.mxu0 0
        %1315 = vmatpush1.bf16.msra.mxu0 0
        %1316 = vmatprep.subr.bf16.mxu0 0
        %1317 = vmatpush1.bf16.msra.mxu0 0
        %1318 = vmatprep.subr.bf16.mxu0 0
        %1319 = vmatpush1.bf16.msra.mxu0 0
        %1320 = vmatprep.mubr.bf16.mxu0 0
        %1321 = vmatmul.mubr.bf16.gmra.mrb[0].mxu0 %v1283
        %v1322 = vpop.f32.mrb[0].mxu0
        %v1323 = vadd.f32 0.0, %v1322
        %v1324 = vpop.f32.mrb[0].mxu0
        %v1325 = vpop.f32.mrb[0].mxu0
        %v1326 = vpop.f32.mrb[0].mxu0
        %1327 = vdwg.mxu0
        %v1328 = vcombine.low %v1185, %v1277
        %v1329 = vcombine.high %v1185, %v1277
        %v1331 = vunpack.c.l.s4 1983009808
        %v1332 = vunpack.c.0.s8 %v1331
        %v1333 = vlaneseq
        %v1334 = vshrl.u32 %v1333, 7
        %v1335 = vsub.s32 %v1332, %v1334
        %v1336 = vrot.slane %v1328, %v1335
        %v1338 = vunpack.c.l.s4 1983009808
        %v1339 = vunpack.c.0.s8 %v1338
        %v1340 = vlaneseq
        %v1341 = vshrl.u32 %v1340, 7
        %v1342 = vsub.s32 %v1339, %v1341
        %v1343 = vrot.slane %v1329, %v1342
        %v1344 = vcombine.low %v1231, %v1323
        %v1345 = vcombine.high %v1231, %v1323
        %v1347 = vunpack.c.l.s4 1983009808
        %v1348 = vunpack.c.0.s8 %v1347
        %v1349 = vlaneseq
        %v1350 = vshrl.u32 %v1349, 7
        %v1351 = vsub.s32 %v1348, %v1350
        %v1352 = vrot.slane %v1344, %v1351
        %v1354 = vunpack.c.l.s4 1983009808
        %v1355 = vunpack.c.0.s8 %v1354
        %v1356 = vlaneseq
        %v1357 = vshrl.u32 %v1356, 7
        %v1358 = vsub.s32 %v1355, %v1357
        %v1359 = vrot.slane %v1345, %v1358
        %v1360 = vcombine.low %v1336, %v1352
        %v1361 = vcombine.high %v1336, %v1352
        %v1363 = vunpack.c.l.s4 1934713408
        %v1364 = vunpack.c.0.s8 %v1363
        %v1365 = vlaneseq
        %v1366 = vshrl.u32 %v1365, 7
        %v1367 = vsub.s32 %v1364, %v1366
        %v1368 = vrot.slane %v1360, %v1367
        %v1370 = vunpack.c.l.s4 1934713408
        %v1371 = vunpack.c.0.s8 %v1370
        %v1372 = vlaneseq
        %v1373 = vshrl.u32 %v1372, 7
        %v1374 = vsub.s32 %v1371, %v1373
        %v1375 = vrot.slane %v1361, %v1374
        %v1376 = vcombine.low %v1343, %v1359
        %v1377 = vcombine.high %v1343, %v1359
        %v1379 = vunpack.c.l.s4 1934713408
        %v1380 = vunpack.c.0.s8 %v1379
        %v1381 = vlaneseq
        %v1382 = vshrl.u32 %v1381, 7
        %v1383 = vsub.s32 %v1380, %v1382
        %v1384 = vrot.slane %v1376, %v1383
        %v1386 = vunpack.c.l.s4 1934713408
        %v1387 = vunpack.c.0.s8 %v1386
        %v1388 = vlaneseq
        %v1389 = vshrl.u32 %v1388, 7
        %v1390 = vsub.s32 %v1387, %v1389
        %v1391 = vrot.slane %v1377, %v1390
        %v1392 = vcombine.high %v1368, 0.0
        %v1393 = vcombine.high %v1375, 0.0
        %v1394 = vcombine.high %v1384, 0.0
        %v1395 = vcombine.high %v1391, 0.0
        %v1396 = vcombine.low %v1368, %v1375
        %v1398 = vunpack.c.l.s4 1983009808
        %v1399 = vunpack.c.0.s8 %v1398
        %v1400 = vlaneseq
        %v1401 = vshrl.u32 %v1400, 7
        %v1402 = vsub.s32 %v1399, %v1401
        %v1403 = vrot.slane %v1396, %v1402
        %v1404 = vcombine.low %v1392, %v1393
        %v1406 = vunpack.c.l.s4 1983009808
        %v1407 = vunpack.c.0.s8 %v1406
        %v1408 = vlaneseq
        %v1409 = vshrl.u32 %v1408, 7
        %v1410 = vsub.s32 %v1407, %v1409
        %v1411 = vrot.slane %v1404, %v1410
        %v1412 = vcombine.low %v1384, %v1391
        %v1414 = vunpack.c.l.s4 1983009808
        %v1415 = vunpack.c.0.s8 %v1414
        %v1416 = vlaneseq
        %v1417 = vshrl.u32 %v1416, 7
        %v1418 = vsub.s32 %v1415, %v1417
        %v1419 = vrot.slane %v1412, %v1418
        %v1420 = vcombine.low %v1394, %v1395
        %v1422 = vunpack.c.l.s4 1983009808
        %v1423 = vunpack.c.0.s8 %v1422
        %v1424 = vlaneseq
        %v1425 = vshrl.u32 %v1424, 7
        %v1426 = vsub.s32 %v1423, %v1425
        %v1427 = vrot.slane %v1420, %v1426
        %v1428 = vcombine.low %v1403, %v1411
        %v1429 = vcombine.high %v1403, %v1411
        %v1431 = vunpack.c.l.s4 1934713408
        %v1432 = vunpack.c.0.s8 %v1431
        %v1433 = vlaneseq
        %v1434 = vshrl.u32 %v1433, 7
        %v1435 = vsub.s32 %v1432, %v1434
        %v1436 = vrot.slane %v1428, %v1435
        %v1438 = vunpack.c.l.s4 1934713408
        %v1439 = vunpack.c.0.s8 %v1438
        %v1440 = vlaneseq
        %v1441 = vshrl.u32 %v1440, 7
        %v1442 = vsub.s32 %v1439, %v1441
        %v1443 = vrot.slane %v1429, %v1442
        %v1444 = vcombine.low %v1419, %v1427
        %v1445 = vcombine.high %v1419, %v1427
        %v1447 = vunpack.c.l.s4 1934713408
        %v1448 = vunpack.c.0.s8 %v1447
        %v1449 = vlaneseq
        %v1450 = vshrl.u32 %v1449, 7
        %v1451 = vsub.s32 %v1448, %v1450
        %v1452 = vrot.slane %v1444, %v1451
        %v1454 = vunpack.c.l.s4 1934713408
        %v1455 = vunpack.c.0.s8 %v1454
        %v1456 = vlaneseq
        %v1457 = vshrl.u32 %v1456, 7
        %v1458 = vsub.s32 %v1455, %v1457
        %v1459 = vrot.slane %v1445, %v1458
        %v1460 = vcombine.low %v1436, %v1452
        %v1461 = vcombine.high %v1436, %v1452
        %v1462 = vcombine.low %v1443, %v1459
        %v1463 = vcombine.high %v1443, %v1459
        %1465 = vrot.lane.b32.xlu0 %v1461, 8
        %v1466 = vpop.permute.xlu0 %1465
        %1469 = vrot.lane.b32.xlu0 %v1462, 16
        %v1470 = vpop.permute.xlu0 %1469
        %1473 = vrot.lane.b32.xlu0 %v1463, 24
        %v1474 = vpop.permute.xlu0 %1473
        %v1476 = vsel %vm890, %v1460, %v1466
        %vm1477 = vcmask 130048
        %v1478 = vsel %vm1477, %v1476, %v1470
        %vm1479 = vcmask 195584
        %v1480 = vsel %vm1479, %v1478, %v1474
        %v1481 = vpack.c.bf16 %v1480, %v1480
        %v1482 = vlaneseq
        %v1483 = vshrl.u32 %v1482, 7
        %v1484 = vsub.s32 0, %v1483
        %v1485 = vrot.slane %v373, %v1484
        %v1490 = vunpack.c.l.b16 %v356
        %v1491 = vunpack.c.l.b16 %v357
        %v1492 = vunpack.c.l.b16 %v358
        %v1493 = vunpack.c.l.b16 %v359
        %v1494 = vpack.c.b16 %v1491, %v1490
        %v1495 = vpack.c.b16 %v1493, %v1492
        %v1499 = vsel %vm325, %v1481, 0
        %1501 = vmatprep.subr.bf16.mxu0 0
        %1502 = vmatpush1.bf16.msra.mxu0 %v1494
        %1503 = vmatprep.subr.bf16.mxu0 0
        %1504 = vmatpush1.bf16.msra.mxu0 %v1495
        %1505 = vmatprep.subr.bf16.mxu0 0
        %1506 = vmatpush1.bf16.msra.mxu0 0
        %1507 = vmatprep.subr.bf16.mxu0 0
        %1508 = vmatpush1.bf16.msra.mxu0 0
        %1509 = vmatprep.subr.bf16.mxu0 0
        %1510 = vmatpush1.bf16.msra.mxu0 0
        %1511 = vmatprep.subr.bf16.mxu0 0
        %1512 = vmatpush1.bf16.msra.mxu0 0
        %1513 = vmatprep.subr.bf16.mxu0 0
        %1514 = vmatpush1.bf16.msra.mxu0 0
        %1515 = vmatprep.subr.bf16.mxu0 0
        %1516 = vmatpush1.bf16.msra.mxu0 0
        %1517 = vmatprep.subr.bf16.mxu0 0
        %1518 = vmatpush1.bf16.msra.mxu0 0
        %1519 = vmatprep.subr.bf16.mxu0 0
        %1520 = vmatpush1.bf16.msra.mxu0 0
        %1521 = vmatprep.subr.bf16.mxu0 0
        %1522 = vmatpush1.bf16.msra.mxu0 0
        %1523 = vmatprep.subr.bf16.mxu0 0
        %1524 = vmatpush1.bf16.msra.mxu0 0
        %1525 = vmatprep.subr.bf16.mxu0 0
        %1526 = vmatpush1.bf16.msra.mxu0 0
        %1527 = vmatprep.subr.bf16.mxu0 0
        %1528 = vmatpush1.bf16.msra.mxu0 0
        %1529 = vmatprep.subr.bf16.mxu0 0
        %1530 = vmatpush1.bf16.msra.mxu0 0
        %1531 = vmatprep.subr.bf16.mxu0 0
        %1532 = vmatpush1.bf16.msra.mxu0 0
        %1533 = vmatprep.mubr.bf16.mxu0 0
        %1534 = vmatmul.mubr.bf16.gmra.mrb[0].mxu0 %v1499
        %v1535 = vpop.f32.mrb[0].mxu0
        %v1536 = vadd.f32 %v1485, %v1535
        %v1537 = vpop.f32.mrb[0].mxu0
        %v1538 = vpop.f32.mrb[0].mxu0
        %v1539 = vpop.f32.mrb[0].mxu0
        %1540 = vdwg.mxu0
        %v1541 = vadd.f32 %v1536, %v349
        %v1542 = vsel %vm325, %v1541, 0.0
        %1543 = vadd.xlane.f32.xlu0 %v1542
        %v1544 = vpop.xlane.xlu0 %1543
        %v1545 = vmul.f32 %v1544, %v329
        %v1546 = vsub.f32 %v1541, %v1545
        %v1547 = vmul.f32 %v1546, %v1546
        %v1548 = vsel %vm325, %v1547, 0.0
        %1549 = vadd.xlane.f32.xlu0 %v1548
        %v1550 = vpop.xlane.xlu0 %1549
        %v1551 = vmul.f32 %v1550, %v329
        %v1552 = vadd.f32 %v1551, 1e-12
        %v1553 = vrsqrt.pop %v1552
        %v1554 = vmul.f32 %v1546, %v1553
        %v1555 = vlaneseq
        %v1556 = vshrl.u32 %v1555, 7
        %v1557 = vsub.s32 0, %v1556
        %v1558 = vrot.slane %v374, %v1557
        %v1559 = vmul.f32 %v1554, %v1558
        %v1560 = vlaneseq
        %v1561 = vshrl.u32 %v1560, 7
        %v1562 = vsub.s32 0, %v1561
        %v1563 = vrot.slane %v375, %v1562
        %v1564 = vadd.f32 %v1559, %v1563
        %v1565 = vpack.c.bf16 %v1564, %v1564
        %v1566 = vlaneseq
        %v1567 = vshrl.u32 %v1566, 7
        %v1568 = vsub.s32 0, %v1567
        %v1569 = vrot.slane %v376, %v1568
        %v1574 = vunpack.c.l.b16 %v360
        %v1575 = vunpack.c.l.b16 %v361
        %v1576 = vunpack.c.l.b16 %v362
        %v1577 = vunpack.c.l.b16 %v363
        %v1578 = vpack.c.b16 %v1575, %v1574
        %v1579 = vpack.c.b16 %v1577, %v1576
        %v1583 = vsel %vm325, %v1565, 0
        %1585 = vmatprep.subr.bf16.mxu0 0
        %1586 = vmatpush1.bf16.msra.mxu0 %v1578
        %1587 = vmatprep.subr.bf16.mxu0 0
        %1588 = vmatpush1.bf16.msra.mxu0 %v1579
        %1589 = vmatprep.subr.bf16.mxu0 0
        %1590 = vmatpush1.bf16.msra.mxu0 0
        %1591 = vmatprep.subr.bf16.mxu0 0
        %1592 = vmatpush1.bf16.msra.mxu0 0
        %1593 = vmatprep.subr.bf16.mxu0 0
        %1594 = vmatpush1.bf16.msra.mxu0 0
        %1595 = vmatprep.subr.bf16.mxu0 0
        %1596 = vmatpush1.bf16.msra.mxu0 0
        %1597 = vmatprep.subr.bf16.mxu0 0
        %1598 = vmatpush1.bf16.msra.mxu0 0
        %1599 = vmatprep.subr.bf16.mxu0 0
        %1600 = vmatpush1.bf16.msra.mxu0 0
        %1601 = vmatprep.subr.bf16.mxu0 0
        %1602 = vmatpush1.bf16.msra.mxu0 0
        %1603 = vmatprep.subr.bf16.mxu0 0
        %1604 = vmatpush1.bf16.msra.mxu0 0
        %1605 = vmatprep.subr.bf16.mxu0 0
        %1606 = vmatpush1.bf16.msra.mxu0 0
        %1607 = vmatprep.subr.bf16.mxu0 0
        %1608 = vmatpush1.bf16.msra.mxu0 0
        %1609 = vmatprep.subr.bf16.mxu0 0
        %1610 = vmatpush1.bf16.msra.mxu0 0
        %1611 = vmatprep.subr.bf16.mxu0 0
        %1612 = vmatpush1.bf16.msra.mxu0 0
        %1613 = vmatprep.subr.bf16.mxu0 0
        %1614 = vmatpush1.bf16.msra.mxu0 0
        %1615 = vmatprep.subr.bf16.mxu0 0
        %1616 = vmatpush1.bf16.msra.mxu0 0
        %1617 = vmatprep.mubr.bf16.mxu0 0
        %1618 = vmatmul.mubr.bf16.gmra.mrb[0].mxu0 %v1583
        %v1619 = vpop.f32.mrb[0].mxu0
        %v1620 = vadd.f32 %v1569, %v1619
        %v1621 = vpop.f32.mrb[0].mxu0
        %v1622 = vpop.f32.mrb[0].mxu0
        %v1623 = vpop.f32.mrb[0].mxu0
        %1624 = vdwg.mxu0
        %v1625 = vmul.f32 %v1620, 0.5
        %v1626 = vmul.f32 %v1620, 0.044715
        %v1627 = vmul.f32 %v1626, %v1620
        %v1628 = vmul.f32 %v1627, %v1620
        %v1629 = vadd.f32 %v1620, %v1628
        %v1630 = vmul.f32 %v1629, 0.7978846
        %v1631 = vtanh.pop %v1630
        %v1632 = vadd.f32 %v1631, 1.0
        %v1633 = vmul.f32 %v1625, %v1632
        %v1634 = vpack.c.bf16 %v1633, %v1633
        %v1635 = vlaneseq
        %v1636 = vshrl.u32 %v1635, 7
        %v1637 = vsub.s32 0, %v1636
        %v1638 = vrot.slane %v377, %v1637
        %v1647 = vunpack.c.l.b16 %v364
        %v1648 = vunpack.c.l.b16 %v365
        %v1649 = vunpack.c.l.b16 %v366
        %v1650 = vunpack.c.l.b16 %v367
        %v1651 = vunpack.c.l.b16 %v368
        %v1652 = vunpack.c.l.b16 %v369
        %v1653 = vunpack.c.l.b16 %v370
        %v1654 = vunpack.c.l.b16 %v371
        %v1655 = vpack.c.b16 %v1648, %v1647
        %v1656 = vpack.c.b16 %v1650, %v1649
        %v1657 = vpack.c.b16 %v1652, %v1651
        %v1658 = vpack.c.b16 %v1654, %v1653
        %vm1663 = vcmask 523264
        %v1665 = vsel %vm1663, %v1634, 0
        %1667 = vmatprep.subr.bf16.mxu0 0
        %1668 = vmatpush1.bf16.msra.mxu0 %v1655
        %1669 = vmatprep.subr.bf16.mxu0 0
        %1670 = vmatpush1.bf16.msra.mxu0 %v1656
        %1671 = vmatprep.subr.bf16.mxu0 0
        %1672 = vmatpush1.bf16.msra.mxu0 %v1657
        %1673 = vmatprep.subr.bf16.mxu0 0
        %1674 = vmatpush1.bf16.msra.mxu0 %v1658
        %1675 = vmatprep.subr.bf16.mxu0 0
        %1676 = vmatpush1.bf16.msra.mxu0 0
        %1677 = vmatprep.subr.bf16.mxu0 0
        %1678 = vmatpush1.bf16.msra.mxu0 0
        %1679 = vmatprep.subr.bf16.mxu0 0
        %1680 = vmatpush1.bf16.msra.mxu0 0
        %1681 = vmatprep.subr.bf16.mxu0 0
        %1682 = vmatpush1.bf16.msra.mxu0 0
        %1683 = vmatprep.subr.bf16.mxu0 0
        %1684 = vmatpush1.bf16.msra.mxu0 0
        %1685 = vmatprep.subr.bf16.mxu0 0
        %1686 = vmatpush1.bf16.msra.mxu0 0
        %1687 = vmatprep.subr.bf16.mxu0 0
        %1688 = vmatpush1.bf16.msra.mxu0 0
        %1689 = vmatprep.subr.bf16.mxu0 0
        %1690 = vmatpush1.bf16.msra.mxu0 0
        %1691 = vmatprep.subr.bf16.mxu0 0
        %1692 = vmatpush1.bf16.msra.mxu0 0
        %1693 = vmatprep.subr.bf16.mxu0 0
        %1694 = vmatpush1.bf16.msra.mxu0 0
        %1695 = vmatprep.subr.bf16.mxu0 0
        %1696 = vmatpush1.bf16.msra.mxu0 0
        %1697 = vmatprep.subr.bf16.mxu0 0
        %1698 = vmatpush1.bf16.msra.mxu0 0
        %1699 = vmatprep.mubr.bf16.mxu0 0
        %1700 = vmatmul.mubr.bf16.gmra.mrb[0].mxu0 %v1665
        %v1701 = vpop.f32.mrb[0].mxu0
        %v1702 = vadd.f32 %v1638, %v1701
        %v1703 = vpop.f32.mrb[0].mxu0
        %v1704 = vpop.f32.mrb[0].mxu0
        %v1705 = vpop.f32.mrb[0].mxu0
        %1706 = vdwg.mxu0
        %v1707 = vadd.f32 %v1702, %v1564
        %v1708 = vsel %vm325, %v1707, 0.0
        %1709 = vadd.xlane.f32.xlu0 %v1708
        %v1710 = vpop.xlane.xlu0 %1709
        %v1711 = vmul.f32 %v1710, %v329
        %v1712 = vsub.f32 %v1707, %v1711
        %v1713 = vmul.f32 %v1712, %v1712
        %v1714 = vsel %vm325, %v1713, 0.0
        %1715 = vadd.xlane.f32.xlu0 %v1714
        %v1716 = vpop.xlane.xlu0 %1715
        %v1717 = vmul.f32 %v1716, %v329
        %v1718 = vadd.f32 %v1717, 1e-12
        %v1719 = vrsqrt.pop %v1718
        %v1720 = vmul.f32 %v1712, %v1719
        %v1721 = vlaneseq
        %v1722 = vshrl.u32 %v1721, 7
        %v1723 = vsub.s32 0, %v1722
        %v1724 = vrot.slane %v378, %v1723
        %v1725 = vmul.f32 %v1720, %v1724
        %v1726 = vlaneseq
        %v1727 = vshrl.u32 %v1726, 7
        %v1728 = vsub.s32 0, %v1727
        %v1729 = vrot.slane %v379, %v1728
        %v1730 = vadd.f32 %v1725, %v1729
        %v1731 = vld [vmem:[#allocation2 + $0xa0] sm:$0xf]
        %v1732 = vld [vmem:[#allocation2 + $0xa4] sm:$0xf]
        %v1733 = vld [vmem:[#allocation2 + $0xa8] sm:$0xf]
        %v1734 = vld [vmem:[#allocation2 + $0xac] sm:$0xf]
        %v1735 = vld [vmem:[#allocation2 + $0xb0] sm:$0xf]
        %v1736 = vld [vmem:[#allocation2 + $0xb4] sm:$0xf]
        %v1737 = vld [vmem:[#allocation2 + $0xb8] sm:$0xf]
        %v1738 = vld [vmem:[#allocation2 + $0xbc] sm:$0xf]
        %v1739 = vld [vmem:[#allocation2 + $0xc0] sm:$0xf]
        %v1740 = vld [vmem:[#allocation2 + $0xc4] sm:$0xf]
        %v1741 = vld [vmem:[#allocation2 + $0xc8] sm:$0xf]
        %v1742 = vld [vmem:[#allocation2 + $0xcc] sm:$0xf]
        %v1743 = vld [vmem:[#allocation2 + $0xd0] sm:$0xf]
        %v1744 = vld [vmem:[#allocation2 + $0xd4] sm:$0xf]
        %v1745 = vld [vmem:[#allocation2 + $0xd8] sm:$0xf]
        %v1746 = vld [vmem:[#allocation2 + $0xdc] sm:$0xf]
        %v1747 = vld [vmem:[#allocation2 + $0xe0] sm:$0xf]
        %v1748 = vld [vmem:[#allocation2 + $0xe4] sm:$0xf]
        %v1749 = vld [vmem:[#allocation2 + $0xe8] sm:$0xf]
        %v1750 = vld [vmem:[#allocation2 + $0xec] sm:$0xf]
        %v1751 = vld [vmem:[%s2 + $0xa] sm:$0x1]
        %v1752 = vld [vmem:[%s2 + $0xb] sm:$0x1]
        %v1753 = vld [vmem:[%s2 + $0xc] sm:$0x1]
        %v1754 = vld [vmem:[%s2 + $0xd] sm:$0x1]
        %v1755 = vld [vmem:[%s2 + $0xe] sm:$0x1]
        %v1756 = vld [vmem:[%s2 + $0xf] sm:$0x1]
        %v1757 = vld [vmem:[%s2 + $0x10] sm:$0x1]
        %v1758 = vld [vmem:[%s2 + $0x11] sm:$0x1]
        %v1759 = vpack.c.bf16 %v1730, %v1730
        %v1760 = vlaneseq
        %v1761 = vshrl.u32 %v1760, 7
        %v1762 = vsub.s32 0, %v1761
        %v1763 = vrot.slane %v1751, %v1762
        %v1768 = vunpack.c.l.b16 %v1731
        %v1769 = vunpack.c.l.b16 %v1732
        %v1770 = vunpack.c.l.b16 %v1733
        %v1771 = vunpack.c.l.b16 %v1734
        %v1772 = vpack.c.b16 %v1769, %v1768
        %v1773 = vpack.c.b16 %v1771, %v1770
        %v1777 = vsel %vm325, %v1759, 0
        %1779 = vmatprep.subr.bf16.mxu0 0
        %1780 = vmatpush1.bf16.msra.mxu0 %v1772
        %1781 = vmatprep.subr.bf16.mxu0 0
        %1782 = vmatpush1.bf16.msra.mxu0 %v1773
        %1783 = vmatprep.subr.bf16.mxu0 0
        %1784 = vmatpush1.bf16.msra.mxu0 0
        %1785 = vmatprep.subr.bf16.mxu0 0
        %1786 = vmatpush1.bf16.msra.mxu0 0
        %1787 = vmatprep.subr.bf16.mxu0 0
        %1788 = vmatpush1.bf16.msra.mxu0 0
        %1789 = vmatprep.subr.bf16.mxu0 0
        %1790 = vmatpush1.bf16.msra.mxu0 0
        %1791 = vmatprep.subr.bf16.mxu0 0
        %1792 = vmatpush1.bf16.msra.mxu0 0
        %1793 = vmatprep.subr.bf16.mxu0 0
        %1794 = vmatpush1.bf16.msra.mxu0 0
        %1795 = vmatprep.subr.bf16.mxu0 0
        %1796 = vmatpush1.bf16.msra.mxu0 0
        %1797 = vmatprep.subr.bf16.mxu0 0
        %1798 = vmatpush1.bf16.msra.mxu0 0
        %1799 = vmatprep.subr.bf16.mxu0 0
        %1800 = vmatpush1.bf16.msra.mxu0 0
        %1801 = vmatprep.subr.bf16.mxu0 0
        %1802 = vmatpush1.bf16.msra.mxu0 0
        %1803 = vmatprep.subr.bf16.mxu0 0
        %1804 = vmatpush1.bf16.msra.mxu0 0
        %1805 = vmatprep.subr.bf16.mxu0 0
        %1806 = vmatpush1.bf16.msra.mxu0 0
        %1807 = vmatprep.subr.bf16.mxu0 0
        %1808 = vmatpush1.bf16.msra.mxu0 0
        %1809 = vmatprep.subr.bf16.mxu0 0
        %1810 = vmatpush1.bf16.msra.mxu0 0
        %1811 = vmatprep.mubr.bf16.mxu0 0
        %1812 = vmatmul.mubr.bf16.gmra.mrb[0].mxu0 %v1777
        %v1813 = vpop.f32.mrb[0].mxu0
        %v1814 = vadd.f32 %v1763, %v1813
        %v1815 = vpop.f32.mrb[0].mxu0
        %v1816 = vpop.f32.mrb[0].mxu0
        %v1817 = vpop.f32.mrb[0].mxu0
        %1818 = vdwg.mxu0
        %1820 = vrot.lane.b32.xlu0 %v1814, 120
        %v1821 = vpop.permute.xlu0 %1820
        %1823 = vrot.lane.b32.xlu0 %v1814, 112
        %v1824 = vpop.permute.xlu0 %1823
        %1826 = vrot.lane.b32.xlu0 %v1814, 104
        %v1827 = vpop.permute.xlu0 %1826
        %v1829 = vcombine.low %v1814, %v1824
        %v1830 = vcombine.high %v1814, %v1824
        %v1832 = vunpack.c.l.s4 1983009808
        %v1833 = vunpack.c.0.s8 %v1832
        %v1834 = vlaneseq
        %v1835 = vshrl.u32 %v1834, 7
        %v1836 = vsub.s32 %v1833, %v1835
        %v1837 = vrot.slane %v1829, %v1836
        %v1839 = vunpack.c.l.s4 1983009808
        %v1840 = vunpack.c.0.s8 %v1839
        %v1841 = vlaneseq
        %v1842 = vshrl.u32 %v1841, 7
        %v1843 = vsub.s32 %v1840, %v1842
        %v1844 = vrot.slane %v1830, %v1843
        %v1845 = vcombine.low %v1821, %v1827
        %v1846 = vcombine.high %v1821, %v1827
        %v1848 = vunpack.c.l.s4 1983009808
        %v1849 = vunpack.c.0.s8 %v1848
        %v1850 = vlaneseq
        %v1851 = vshrl.u32 %v1850, 7
        %v1852 = vsub.s32 %v1849, %v1851
        %v1853 = vrot.slane %v1845, %v1852
        %v1855 = vunpack.c.l.s4 1983009808
        %v1856 = vunpack.c.0.s8 %v1855
        %v1857 = vlaneseq
        %v1858 = vshrl.u32 %v1857, 7
        %v1859 = vsub.s32 %v1856, %v1858
        %v1860 = vrot.slane %v1846, %v1859
        %v1861 = vcombine.low %v1837, %v1853
        %v1862 = vcombine.high %v1837, %v1853
        %v1864 = vunpack.c.l.s4 1934713408
        %v1865 = vunpack.c.0.s8 %v1864
        %v1866 = vlaneseq
        %v1867 = vshrl.u32 %v1866, 7
        %v1868 = vsub.s32 %v1865, %v1867
        %v1869 = vrot.slane %v1861, %v1868
        %v1871 = vunpack.c.l.s4 1934713408
        %v1872 = vunpack.c.0.s8 %v1871
        %v1873 = vlaneseq
        %v1874 = vshrl.u32 %v1873, 7
        %v1875 = vsub.s32 %v1872, %v1874
        %v1876 = vrot.slane %v1862, %v1875
        %v1877 = vcombine.low %v1844, %v1860
        %v1878 = vcombine.high %v1844, %v1860
        %v1880 = vunpack.c.l.s4 1934713408
        %v1881 = vunpack.c.0.s8 %v1880
        %v1882 = vlaneseq
        %v1883 = vshrl.u32 %v1882, 7
        %v1884 = vsub.s32 %v1881, %v1883
        %v1885 = vrot.slane %v1877, %v1884
        %v1887 = vunpack.c.l.s4 1934713408
        %v1888 = vunpack.c.0.s8 %v1887
        %v1889 = vlaneseq
        %v1890 = vshrl.u32 %v1889, 7
        %v1891 = vsub.s32 %v1888, %v1890
        %v1892 = vrot.slane %v1878, %v1891
        %v1893 = vcombine.high %v1869, 0.0
        %v1894 = vcombine.high %v1876, 0.0
        %v1895 = vcombine.high %v1885, 0.0
        %v1896 = vcombine.high %v1892, 0.0
        %v1897 = vcombine.low %v1869, %v1876
        %v1899 = vunpack.c.l.s4 1983009808
        %v1900 = vunpack.c.0.s8 %v1899
        %v1901 = vlaneseq
        %v1902 = vshrl.u32 %v1901, 7
        %v1903 = vsub.s32 %v1900, %v1902
        %v1904 = vrot.slane %v1897, %v1903
        %v1905 = vcombine.low %v1893, %v1894
        %v1907 = vunpack.c.l.s4 1983009808
        %v1908 = vunpack.c.0.s8 %v1907
        %v1909 = vlaneseq
        %v1910 = vshrl.u32 %v1909, 7
        %v1911 = vsub.s32 %v1908, %v1910
        %v1912 = vrot.slane %v1905, %v1911
        %v1913 = vcombine.low %v1885, %v1892
        %v1915 = vunpack.c.l.s4 1983009808
        %v1916 = vunpack.c.0.s8 %v1915
        %v1917 = vlaneseq
        %v1918 = vshrl.u32 %v1917, 7
        %v1919 = vsub.s32 %v1916, %v1918
        %v1920 = vrot.slane %v1913, %v1919
        %v1921 = vcombine.low %v1895, %v1896
        %v1923 = vunpack.c.l.s4 1983009808
        %v1924 = vunpack.c.0.s8 %v1923
        %v1925 = vlaneseq
        %v1926 = vshrl.u32 %v1925, 7
        %v1927 = vsub.s32 %v1924, %v1926
        %v1928 = vrot.slane %v1921, %v1927
        %v1929 = vcombine.low %v1904, %v1912
        %v1930 = vcombine.high %v1904, %v1912
        %v1932 = vunpack.c.l.s4 1934713408
        %v1933 = vunpack.c.0.s8 %v1932
        %v1934 = vlaneseq
        %v1935 = vshrl.u32 %v1934, 7
        %v1936 = vsub.s32 %v1933, %v1935
        %v1937 = vrot.slane %v1929, %v1936
        %v1939 = vunpack.c.l.s4 1934713408
        %v1940 = vunpack.c.0.s8 %v1939
        %v1941 = vlaneseq
        %v1942 = vshrl.u32 %v1941, 7
        %v1943 = vsub.s32 %v1940, %v1942
        %v1944 = vrot.slane %v1930, %v1943
        %v1945 = vcombine.low %v1920, %v1928
        %v1946 = vcombine.high %v1920, %v1928
        %v1948 = vunpack.c.l.s4 1934713408
        %v1949 = vunpack.c.0.s8 %v1948
        %v1950 = vlaneseq
        %v1951 = vshrl.u32 %v1950, 7
        %v1952 = vsub.s32 %v1949, %v1951
        %v1953 = vrot.slane %v1945, %v1952
        %v1955 = vunpack.c.l.s4 1934713408
        %v1956 = vunpack.c.0.s8 %v1955
        %v1957 = vlaneseq
        %v1958 = vshrl.u32 %v1957, 7
        %v1959 = vsub.s32 %v1956, %v1958
        %v1960 = vrot.slane %v1946, %v1959
        %v1961 = vcombine.low %v1937, %v1953
        %v1962 = vcombine.high %v1937, %v1953
        %v1963 = vcombine.low %v1944, %v1960
        %v1964 = vcombine.high %v1944, %v1960
        %1965 = vrot.lane.b32.xlu0 %v1814, 96
        %v1966 = vpop.permute.xlu0 %1965
        %1967 = vrot.lane.b32.xlu0 %v1821, 96
        %v1968 = vpop.permute.xlu0 %1967
        %1969 = vrot.lane.b32.xlu0 %v1824, 96
        %v1970 = vpop.permute.xlu0 %1969
        %1971 = vrot.lane.b32.xlu0 %v1827, 96
        %v1972 = vpop.permute.xlu0 %1971
        %v1977 = vcombine.low %v1966, %v1970
        %v1978 = vcombine.high %v1966, %v1970
        %v1980 = vunpack.c.l.s4 1983009808
        %v1981 = vunpack.c.0.s8 %v1980
        %v1982 = vlaneseq
        %v1983 = vshrl.u32 %v1982, 7
        %v1984 = vsub.s32 %v1981, %v1983
        %v1985 = vrot.slane %v1977, %v1984
        %v1987 = vunpack.c.l.s4 1983009808
        %v1988 = vunpack.c.0.s8 %v1987
        %v1989 = vlaneseq
        %v1990 = vshrl.u32 %v1989, 7
        %v1991 = vsub.s32 %v1988, %v1990
        %v1992 = vrot.slane %v1978, %v1991
        %v1993 = vcombine.low %v1968, %v1972
        %v1994 = vcombine.high %v1968, %v1972
        %v1996 = vunpack.c.l.s4 1983009808
        %v1997 = vunpack.c.0.s8 %v1996
        %v1998 = vlaneseq
        %v1999 = vshrl.u32 %v1998, 7
        %v2000 = vsub.s32 %v1997, %v1999
        %v2001 = vrot.slane %v1993, %v2000
        %v2003 = vunpack.c.l.s4 1983009808
        %v2004 = vunpack.c.0.s8 %v2003
        %v2005 = vlaneseq
        %v2006 = vshrl.u32 %v2005, 7
        %v2007 = vsub.s32 %v2004, %v2006
        %v2008 = vrot.slane %v1994, %v2007
        %v2009 = vcombine.low %v1985, %v2001
        %v2010 = vcombine.high %v1985, %v2001
        %v2012 = vunpack.c.l.s4 1934713408
        %v2013 = vunpack.c.0.s8 %v2012
        %v2014 = vlaneseq
        %v2015 = vshrl.u32 %v2014, 7
        %v2016 = vsub.s32 %v2013, %v2015
        %v2017 = vrot.slane %v2009, %v2016
        %v2019 = vunpack.c.l.s4 1934713408
        %v2020 = vunpack.c.0.s8 %v2019
        %v2021 = vlaneseq
        %v2022 = vshrl.u32 %v2021, 7
        %v2023 = vsub.s32 %v2020, %v2022
        %v2024 = vrot.slane %v2010, %v2023
        %v2025 = vcombine.low %v1992, %v2008
        %v2026 = vcombine.high %v1992, %v2008
        %v2028 = vunpack.c.l.s4 1934713408
        %v2029 = vunpack.c.0.s8 %v2028
        %v2030 = vlaneseq
        %v2031 = vshrl.u32 %v2030, 7
        %v2032 = vsub.s32 %v2029, %v2031
        %v2033 = vrot.slane %v2025, %v2032
        %v2035 = vunpack.c.l.s4 1934713408
        %v2036 = vunpack.c.0.s8 %v2035
        %v2037 = vlaneseq
        %v2038 = vshrl.u32 %v2037, 7
        %v2039 = vsub.s32 %v2036, %v2038
        %v2040 = vrot.slane %v2026, %v2039
        %v2041 = vcombine.high %v2017, 0.0
        %v2042 = vcombine.high %v2024, 0.0
        %v2043 = vcombine.high %v2033, 0.0
        %v2044 = vcombine.high %v2040, 0.0
        %v2045 = vcombine.low %v2017, %v2024
        %v2047 = vunpack.c.l.s4 1983009808
        %v2048 = vunpack.c.0.s8 %v2047
        %v2049 = vlaneseq
        %v2050 = vshrl.u32 %v2049, 7
        %v2051 = vsub.s32 %v2048, %v2050
        %v2052 = vrot.slane %v2045, %v2051
        %v2053 = vcombine.low %v2041, %v2042
        %v2055 = vunpack.c.l.s4 1983009808
        %v2056 = vunpack.c.0.s8 %v2055
        %v2057 = vlaneseq
        %v2058 = vshrl.u32 %v2057, 7
        %v2059 = vsub.s32 %v2056, %v2058
        %v2060 = vrot.slane %v2053, %v2059
        %v2061 = vcombine.low %v2033, %v2040
        %v2063 = vunpack.c.l.s4 1983009808
        %v2064 = vunpack.c.0.s8 %v2063
        %v2065 = vlaneseq
        %v2066 = vshrl.u32 %v2065, 7
        %v2067 = vsub.s32 %v2064, %v2066
        %v2068 = vrot.slane %v2061, %v2067
        %v2069 = vcombine.low %v2043, %v2044
        %v2071 = vunpack.c.l.s4 1983009808
        %v2072 = vunpack.c.0.s8 %v2071
        %v2073 = vlaneseq
        %v2074 = vshrl.u32 %v2073, 7
        %v2075 = vsub.s32 %v2072, %v2074
        %v2076 = vrot.slane %v2069, %v2075
        %v2077 = vcombine.low %v2052, %v2060
        %v2078 = vcombine.high %v2052, %v2060
        %v2080 = vunpack.c.l.s4 1934713408
        %v2081 = vunpack.c.0.s8 %v2080
        %v2082 = vlaneseq
        %v2083 = vshrl.u32 %v2082, 7
        %v2084 = vsub.s32 %v2081, %v2083
        %v2085 = vrot.slane %v2077, %v2084
        %v2087 = vunpack.c.l.s4 1934713408
        %v2088 = vunpack.c.0.s8 %v2087
        %v2089 = vlaneseq
        %v2090 = vshrl.u32 %v2089, 7
        %v2091 = vsub.s32 %v2088, %v2090
        %v2092 = vrot.slane %v2078, %v2091
        %v2093 = vcombine.low %v2068, %v2076
        %v2094 = vcombine.high %v2068, %v2076
        %v2096 = vunpack.c.l.s4 1934713408
        %v2097 = vunpack.c.0.s8 %v2096
        %v2098 = vlaneseq
        %v2099 = vshrl.u32 %v2098, 7
        %v2100 = vsub.s32 %v2097, %v2099
        %v2101 = vrot.slane %v2093, %v2100
        %v2103 = vunpack.c.l.s4 1934713408
        %v2104 = vunpack.c.0.s8 %v2103
        %v2105 = vlaneseq
        %v2106 = vshrl.u32 %v2105, 7
        %v2107 = vsub.s32 %v2104, %v2106
        %v2108 = vrot.slane %v2094, %v2107
        %v2109 = vcombine.low %v2085, %v2101
        %v2110 = vcombine.high %v2085, %v2101
        %v2111 = vcombine.low %v2092, %v2108
        %v2112 = vcombine.high %v2092, %v2108
        %2113 = vrot.lane.b32.xlu0 %v1814, 64
        %v2114 = vpop.permute.xlu0 %2113
        %2115 = vrot.lane.b32.xlu0 %v1821, 64
        %v2116 = vpop.permute.xlu0 %2115
        %2117 = vrot.lane.b32.xlu0 %v1824, 64
        %v2118 = vpop.permute.xlu0 %2117
        %2119 = vrot.lane.b32.xlu0 %v1827, 64
        %v2120 = vpop.permute.xlu0 %2119
        %v2125 = vcombine.low %v2114, %v2118
        %v2126 = vcombine.high %v2114, %v2118
        %v2128 = vunpack.c.l.s4 1983009808
        %v2129 = vunpack.c.0.s8 %v2128
        %v2130 = vlaneseq
        %v2131 = vshrl.u32 %v2130, 7
        %v2132 = vsub.s32 %v2129, %v2131
        %v2133 = vrot.slane %v2125, %v2132
        %v2135 = vunpack.c.l.s4 1983009808
        %v2136 = vunpack.c.0.s8 %v2135
        %v2137 = vlaneseq
        %v2138 = vshrl.u32 %v2137, 7
        %v2139 = vsub.s32 %v2136, %v2138
        %v2140 = vrot.slane %v2126, %v2139
        %v2141 = vcombine.low %v2116, %v2120
        %v2142 = vcombine.high %v2116, %v2120
        %v2144 = vunpack.c.l.s4 1983009808
        %v2145 = vunpack.c.0.s8 %v2144
        %v2146 = vlaneseq
        %v2147 = vshrl.u32 %v2146, 7
        %v2148 = vsub.s32 %v2145, %v2147
        %v2149 = vrot.slane %v2141, %v2148
        %v2151 = vunpack.c.l.s4 1983009808
        %v2152 = vunpack.c.0.s8 %v2151
        %v2153 = vlaneseq
        %v2154 = vshrl.u32 %v2153, 7
        %v2155 = vsub.s32 %v2152, %v2154
        %v2156 = vrot.slane %v2142, %v2155
        %v2157 = vcombine.low %v2133, %v2149
        %v2158 = vcombine.high %v2133, %v2149
        %v2160 = vunpack.c.l.s4 1934713408
        %v2161 = vunpack.c.0.s8 %v2160
        %v2162 = vlaneseq
        %v2163 = vshrl.u32 %v2162, 7
        %v2164 = vsub.s32 %v2161, %v2163
        %v2165 = vrot.slane %v2157, %v2164
        %v2167 = vunpack.c.l.s4 1934713408
        %v2168 = vunpack.c.0.s8 %v2167
        %v2169 = vlaneseq
        %v2170 = vshrl.u32 %v2169, 7
        %v2171 = vsub.s32 %v2168, %v2170
        %v2172 = vrot.slane %v2158, %v2171
        %v2173 = vcombine.low %v2140, %v2156
        %v2174 = vcombine.high %v2140, %v2156
        %v2176 = vunpack.c.l.s4 1934713408
        %v2177 = vunpack.c.0.s8 %v2176
        %v2178 = vlaneseq
        %v2179 = vshrl.u32 %v2178, 7
        %v2180 = vsub.s32 %v2177, %v2179
        %v2181 = vrot.slane %v2173, %v2180
        %v2183 = vunpack.c.l.s4 1934713408
        %v2184 = vunpack.c.0.s8 %v2183
        %v2185 = vlaneseq
        %v2186 = vshrl.u32 %v2185, 7
        %v2187 = vsub.s32 %v2184, %v2186
        %v2188 = vrot.slane %v2174, %v2187
        %v2189 = vcombine.high %v2165, 0.0
        %v2190 = vcombine.high %v2172, 0.0
        %v2191 = vcombine.high %v2181, 0.0
        %v2192 = vcombine.high %v2188, 0.0
        %v2193 = vcombine.low %v2165, %v2172
        %v2195 = vunpack.c.l.s4 1983009808
        %v2196 = vunpack.c.0.s8 %v2195
        %v2197 = vlaneseq
        %v2198 = vshrl.u32 %v2197, 7
        %v2199 = vsub.s32 %v2196, %v2198
        %v2200 = vrot.slane %v2193, %v2199
        %v2201 = vcombine.low %v2189, %v2190
        %v2203 = vunpack.c.l.s4 1983009808
        %v2204 = vunpack.c.0.s8 %v2203
        %v2205 = vlaneseq
        %v2206 = vshrl.u32 %v2205, 7
        %v2207 = vsub.s32 %v2204, %v2206
        %v2208 = vrot.slane %v2201, %v2207
        %v2209 = vcombine.low %v2181, %v2188
        %v2211 = vunpack.c.l.s4 1983009808
        %v2212 = vunpack.c.0.s8 %v2211
        %v2213 = vlaneseq
        %v2214 = vshrl.u32 %v2213, 7
        %v2215 = vsub.s32 %v2212, %v2214
        %v2216 = vrot.slane %v2209, %v2215
        %v2217 = vcombine.low %v2191, %v2192
        %v2219 = vunpack.c.l.s4 1983009808
        %v2220 = vunpack.c.0.s8 %v2219
        %v2221 = vlaneseq
        %v2222 = vshrl.u32 %v2221, 7
        %v2223 = vsub.s32 %v2220, %v2222
        %v2224 = vrot.slane %v2217, %v2223
        %v2225 = vcombine.low %v2200, %v2208
        %v2226 = vcombine.high %v2200, %v2208
        %v2228 = vunpack.c.l.s4 1934713408
        %v2229 = vunpack.c.0.s8 %v2228
        %v2230 = vlaneseq
        %v2231 = vshrl.u32 %v2230, 7
        %v2232 = vsub.s32 %v2229, %v2231
        %v2233 = vrot.slane %v2225, %v2232
        %v2235 = vunpack.c.l.s4 1934713408
        %v2236 = vunpack.c.0.s8 %v2235
        %v2237 = vlaneseq
        %v2238 = vshrl.u32 %v2237, 7
        %v2239 = vsub.s32 %v2236, %v2238
        %v2240 = vrot.slane %v2226, %v2239
        %v2241 = vcombine.low %v2216, %v2224
        %v2242 = vcombine.high %v2216, %v2224
        %v2244 = vunpack.c.l.s4 1934713408
        %v2245 = vunpack.c.0.s8 %v2244
        %v2246 = vlaneseq
        %v2247 = vshrl.u32 %v2246, 7
        %v2248 = vsub.s32 %v2245, %v2247
        %v2249 = vrot.slane %v2241, %v2248
        %v2251 = vunpack.c.l.s4 1934713408
        %v2252 = vunpack.c.0.s8 %v2251
        %v2253 = vlaneseq
        %v2254 = vshrl.u32 %v2253, 7
        %v2255 = vsub.s32 %v2252, %v2254
        %v2256 = vrot.slane %v2242, %v2255
        %v2257 = vcombine.low %v2233, %v2249
        %v2258 = vcombine.high %v2233, %v2249
        %v2259 = vcombine.low %v2240, %v2256
        %v2260 = vcombine.high %v2240, %v2256
        %v2261 = vpack.c.bf16 %v1961, %v1961
        %v2262 = vpack.c.bf16 %v1962, %v1962
        %v2263 = vpack.c.bf16 %v1963, %v1963
        %v2264 = vpack.c.bf16 %v1964, %v1964
        %v2265 = vpack.c.bf16 %v2109, %v2109
        %v2266 = vpack.c.bf16 %v2110, %v2110
        %v2267 = vpack.c.bf16 %v2111, %v2111
        %v2268 = vpack.c.bf16 %v2112, %v2112
        %v2270 = vsel %vm890, %v2261, 0
        %v2273 = vsel %vm890, %v2265, 0
        %2275 = vmatprep.subr.bf16.mxu0 0
        %2276 = vmatpush1.bf16.xpose.msra.mxu0 %v2273
        %2277 = vmatprep.subr.bf16.mxu0 0
        %2278 = vmatpush1.bf16.xpose.msra.mxu0 0
        %2279 = vmatprep.subr.bf16.mxu0 0
        %2280 = vmatpush1.bf16.xpose.msra.mxu0 0
        %2281 = vmatprep.subr.bf16.mxu0 0
        %2282 = vmatpush1.bf16.xpose.msra.mxu0 0
        %2283 = vmatprep.subr.bf16.mxu0 0
        %2284 = vmatpush1.bf16.xpose.msra.mxu0 0
        %2285 = vmatprep.subr.bf16.mxu0 0
        %2286 = vmatpush1.bf16.xpose.msra.mxu0 0
        %2287 = vmatprep.subr.bf16.mxu0 0
        %2288 = vmatpush1.bf16.xpose.msra.mxu0 0
        %2289 = vmatprep.subr.bf16.mxu0 0
        %2290 = vmatpush1.bf16.xpose.msra.mxu0 0
        %2291 = vmatprep.subr.bf16.mxu0 0
        %2292 = vmatpush1.bf16.xpose.msra.mxu0 0
        %2293 = vmatprep.subr.bf16.mxu0 0
        %2294 = vmatpush1.bf16.xpose.msra.mxu0 0
        %2295 = vmatprep.subr.bf16.mxu0 0
        %2296 = vmatpush1.bf16.xpose.msra.mxu0 0
        %2297 = vmatprep.subr.bf16.mxu0 0
        %2298 = vmatpush1.bf16.xpose.msra.mxu0 0
        %2299 = vmatprep.subr.bf16.mxu0 0
        %2300 = vmatpush1.bf16.xpose.msra.mxu0 0
        %2301 = vmatprep.subr.bf16.mxu0 0
        %2302 = vmatpush1.bf16.xpose.msra.mxu0 0
        %2303 = vmatprep.subr.bf16.mxu0 0
        %2304 = vmatpush1.bf16.xpose.msra.mxu0 0
        %2305 = vmatprep.subr.bf16.mxu0 0
        %2306 = vmatpush1.bf16.xpose.msra.mxu0 0
        %2307 = vmatprep.mubr.bf16.mxu0 0
        %2308 = vmatmul.mubr.bf16.gmra.mrb[0].mxu0 %v2270
        %v2309 = vpop.f32.mrb[0].mxu0
        %v2310 = vadd.f32 0.0, %v2309
        %v2311 = vpop.f32.mrb[0].mxu0
        %v2312 = vpop.f32.mrb[0].mxu0
        %v2313 = vpop.f32.mrb[0].mxu0
        %2314 = vdwg.mxu0
        %v2316 = vsel %vm890, %v2262, 0
        %v2319 = vsel %vm890, %v2266, 0
        %2321 = vmatprep.subr.bf16.mxu0 0
        %2322 = vmatpush1.bf16.xpose.msra.mxu0 %v2319
        %2323 = vmatprep.subr.bf16.mxu0 0
        %2324 = vmatpush1.bf16.xpose.msra.mxu0 0
        %2325 = vmatprep.subr.bf16.mxu0 0
        %2326 = vmatpush1.bf16.xpose.msra.mxu0 0
        %2327 = vmatprep.subr.bf16.mxu0 0
        %2328 = vmatpush1.bf16.xpose.msra.mxu0 0
        %2329 = vmatprep.subr.bf16.mxu0 0
        %2330 = vmatpush1.bf16.xpose.msra.mxu0 0
        %2331 = vmatprep.subr.bf16.mxu0 0
        %2332 = vmatpush1.bf16.xpose.msra.mxu0 0
        %2333 = vmatprep.subr.bf16.mxu0 0
        %2334 = vmatpush1.bf16.xpose.msra.mxu0 0
        %2335 = vmatprep.subr.bf16.mxu0 0
        %2336 = vmatpush1.bf16.xpose.msra.mxu0 0
        %2337 = vmatprep.subr.bf16.mxu0 0
        %2338 = vmatpush1.bf16.xpose.msra.mxu0 0
        %2339 = vmatprep.subr.bf16.mxu0 0
        %2340 = vmatpush1.bf16.xpose.msra.mxu0 0
        %2341 = vmatprep.subr.bf16.mxu0 0
        %2342 = vmatpush1.bf16.xpose.msra.mxu0 0
        %2343 = vmatprep.subr.bf16.mxu0 0
        %2344 = vmatpush1.bf16.xpose.msra.mxu0 0
        %2345 = vmatprep.subr.bf16.mxu0 0
        %2346 = vmatpush1.bf16.xpose.msra.mxu0 0
        %2347 = vmatprep.subr.bf16.mxu0 0
        %2348 = vmatpush1.bf16.xpose.msra.mxu0 0
        %2349 = vmatprep.subr.bf16.mxu0 0
        %2350 = vmatpush1.bf16.xpose.msra.mxu0 0
        %2351 = vmatprep.subr.bf16.mxu0 0
        %2352 = vmatpush1.bf16.xpose.msra.mxu0 0
        %2353 = vmatprep.mubr.bf16.mxu0 0
        %2354 = vmatmul.mubr.bf16.gmra.mrb[0].mxu0 %v2316
        %v2355 = vpop.f32.mrb[0].mxu0
        %v2356 = vadd.f32 0.0, %v2355
        %v2357 = vpop.f32.mrb[0].mxu0
        %v2358 = vpop.f32.mrb[0].mxu0
        %v2359 = vpop.f32.mrb[0].mxu0
        %2360 = vdwg.mxu0
        %v2362 = vsel %vm890, %v2263, 0
        %v2365 = vsel %vm890, %v2267, 0
        %2367 = vmatprep.subr.bf16.mxu0 0
        %2368 = vmatpush1.bf16.xpose.msra.mxu0 %v2365
        %2369 = vmatprep.subr.bf16.mxu0 0
        %2370 = vmatpush1.bf16.xpose.msra.mxu0 0
        %2371 = vmatprep.subr.bf16.mxu0 0
        %2372 = vmatpush1.bf16.xpose.msra.mxu0 0
        %2373 = vmatprep.subr.bf16.mxu0 0
        %2374 = vmatpush1.bf16.xpose.msra.mxu0 0
        %2375 = vmatprep.subr.bf16.mxu0 0
        %2376 = vmatpush1.bf16.xpose.msra.mxu0 0
        %2377 = vmatprep.subr.bf16.mxu0 0
        %2378 = vmatpush1.bf16.xpose.msra.mxu0 0
        %2379 = vmatprep.subr.bf16.mxu0 0
        %2380 = vmatpush1.bf16.xpose.msra.mxu0 0
        %2381 = vmatprep.subr.bf16.mxu0 0
        %2382 = vmatpush1.bf16.xpose.msra.mxu0 0
        %2383 = vmatprep.subr.bf16.mxu0 0
        %2384 = vmatpush1.bf16.xpose.msra.mxu0 0
        %2385 = vmatprep.subr.bf16.mxu0 0
        %2386 = vmatpush1.bf16.xpose.msra.mxu0 0
        %2387 = vmatprep.subr.bf16.mxu0 0
        %2388 = vmatpush1.bf16.xpose.msra.mxu0 0
        %2389 = vmatprep.subr.bf16.mxu0 0
        %2390 = vmatpush1.bf16.xpose.msra.mxu0 0
        %2391 = vmatprep.subr.bf16.mxu0 0
        %2392 = vmatpush1.bf16.xpose.msra.mxu0 0
        %2393 = vmatprep.subr.bf16.mxu0 0
        %2394 = vmatpush1.bf16.xpose.msra.mxu0 0
        %2395 = vmatprep.subr.bf16.mxu0 0
        %2396 = vmatpush1.bf16.xpose.msra.mxu0 0
        %2397 = vmatprep.subr.bf16.mxu0 0
        %2398 = vmatpush1.bf16.xpose.msra.mxu0 0
        %2399 = vmatprep.mubr.bf16.mxu0 0
        %2400 = vmatmul.mubr.bf16.gmra.mrb[0].mxu0 %v2362
        %v2401 = vpop.f32.mrb[0].mxu0
        %v2402 = vadd.f32 0.0, %v2401
        %v2403 = vpop.f32.mrb[0].mxu0
        %v2404 = vpop.f32.mrb[0].mxu0
        %v2405 = vpop.f32.mrb[0].mxu0
        %2406 = vdwg.mxu0
        %v2408 = vsel %vm890, %v2264, 0
        %v2411 = vsel %vm890, %v2268, 0
        %2413 = vmatprep.subr.bf16.mxu0 0
        %2414 = vmatpush1.bf16.xpose.msra.mxu0 %v2411
        %2415 = vmatprep.subr.bf16.mxu0 0
        %2416 = vmatpush1.bf16.xpose.msra.mxu0 0
        %2417 = vmatprep.subr.bf16.mxu0 0
        %2418 = vmatpush1.bf16.xpose.msra.mxu0 0
        %2419 = vmatprep.subr.bf16.mxu0 0
        %2420 = vmatpush1.bf16.xpose.msra.mxu0 0
        %2421 = vmatprep.subr.bf16.mxu0 0
        %2422 = vmatpush1.bf16.xpose.msra.mxu0 0
        %2423 = vmatprep.subr.bf16.mxu0 0
        %2424 = vmatpush1.bf16.xpose.msra.mxu0 0
        %2425 = vmatprep.subr.bf16.mxu0 0
        %2426 = vmatpush1.bf16.xpose.msra.mxu0 0
        %2427 = vmatprep.subr.bf16.mxu0 0
        %2428 = vmatpush1.bf16.xpose.msra.mxu0 0
        %2429 = vmatprep.subr.bf16.mxu0 0
        %2430 = vmatpush1.bf16.xpose.msra.mxu0 0
        %2431 = vmatprep.subr.bf16.mxu0 0
        %2432 = vmatpush1.bf16.xpose.msra.mxu0 0
        %2433 = vmatprep.subr.bf16.mxu0 0
        %2434 = vmatpush1.bf16.xpose.msra.mxu0 0
        %2435 = vmatprep.subr.bf16.mxu0 0
        %2436 = vmatpush1.bf16.xpose.msra.mxu0 0
        %2437 = vmatprep.subr.bf16.mxu0 0
        %2438 = vmatpush1.bf16.xpose.msra.mxu0 0
        %2439 = vmatprep.subr.bf16.mxu0 0
        %2440 = vmatpush1.bf16.xpose.msra.mxu0 0
        %2441 = vmatprep.subr.bf16.mxu0 0
        %2442 = vmatpush1.bf16.xpose.msra.mxu0 0
        %2443 = vmatprep.subr.bf16.mxu0 0
        %2444 = vmatpush1.bf16.xpose.msra.mxu0 0
        %2445 = vmatprep.mubr.bf16.mxu0 0
        %2446 = vmatmul.mubr.bf16.gmra.mrb[0].mxu0 %v2408
        %v2447 = vpop.f32.mrb[0].mxu0
        %v2448 = vadd.f32 0.0, %v2447
        %v2449 = vpop.f32.mrb[0].mxu0
        %v2450 = vpop.f32.mrb[0].mxu0
        %v2451 = vpop.f32.mrb[0].mxu0
        %2452 = vdwg.mxu0
        %v2453 = vmul.f32 %v2310, 0.35355338
        %v2454 = vmul.f32 %v2356, 0.35355338
        %v2455 = vmul.f32 %v2402, 0.35355338
        %v2456 = vmul.f32 %v2448, 0.35355338
        %v2457 = vadd.f32 %v2453, %v1085
        %v2458 = vadd.f32 %v2454, %v1085
        %v2459 = vadd.f32 %v2455, %v1085
        %v2460 = vadd.f32 %v2456, %v1085
        %v2461 = vsel %vm890, %v2457, -inf
        %2462 = vmax.xlane.f32.xlu0 %v2461
        %v2463 = vpop.xlane.xlu0 %2462
        %v2464 = vsel %vm890, %v2458, -inf
        %2465 = vmax.xlane.f32.xlu0 %v2464
        %v2466 = vpop.xlane.xlu0 %2465
        %v2467 = vsel %vm890, %v2459, -inf
        %2468 = vmax.xlane.f32.xlu0 %v2467
        %v2469 = vpop.xlane.xlu0 %2468
        %v2470 = vsel %vm890, %v2460, -inf
        %2471 = vmax.xlane.f32.xlu0 %v2470
        %v2472 = vpop.xlane.xlu0 %2471
        %v2473 = vsub.f32 %v2457, %v2463
        %v2474 = vsub.f32 %v2458, %v2466
        %v2475 = vsub.f32 %v2459, %v2469
        %v2476 = vsub.f32 %v2460, %v2472
        %v2477 = vmul.f32 %v2473, 1.442695
        %v2478 = vpow.pop %v2477
        %v2479 = vmul.f32 %v2474, 1.442695
        %v2480 = vpow.pop %v2479
        %v2481 = vmul.f32 %v2475, 1.442695
        %v2482 = vpow.pop %v2481
        %v2483 = vmul.f32 %v2476, 1.442695
        %v2484 = vpow.pop %v2483
        %v2485 = vsel %vm890, %v2478, 0.0
        %2486 = vadd.xlane.f32.xlu0 %v2485
        %v2487 = vpop.xlane.xlu0 %2486
        %v2488 = vsel %vm890, %v2480, 0.0
        %2489 = vadd.xlane.f32.xlu0 %v2488
        %v2490 = vpop.xlane.xlu0 %2489
        %v2491 = vsel %vm890, %v2482, 0.0
        %2492 = vadd.xlane.f32.xlu0 %v2491
        %v2493 = vpop.xlane.xlu0 %2492
        %v2494 = vsel %vm890, %v2484, 0.0
        %2495 = vadd.xlane.f32.xlu0 %v2494
        %v2496 = vpop.xlane.xlu0 %2495
        %v2497 = vrcp.pop %v2487
        %v2498 = vrcp.pop %v2490
        %v2499 = vrcp.pop %v2493
        %v2500 = vrcp.pop %v2496
        %v2501 = vmul.f32 %v2478, %v2497
        %v2502 = vmul.f32 %v2480, %v2498
        %v2503 = vmul.f32 %v2482, %v2499
        %v2504 = vmul.f32 %v2484, %v2500
        %v2505 = vpack.c.bf16 %v2501, %v2501
        %v2506 = vpack.c.bf16 %v2502, %v2502
        %v2507 = vpack.c.bf16 %v2503, %v2503
        %v2508 = vpack.c.bf16 %v2504, %v2504
        %v2509 = vpack.c.bf16 %v2257, %v2257
        %v2510 = vpack.c.bf16 %v2258, %v2258
        %v2511 = vpack.c.bf16 %v2259, %v2259
        %v2512 = vpack.c.bf16 %v2260, %v2260
        %v2514 = vsel %vm890, %v2505, 0
        %v2517 = vsel %vm1146, %v2509, 0
        %2519 = vmatprep.subr.bf16.mxu0 0
        %2520 = vmatpush1.bf16.msra.mxu0 %v2517
        %2521 = vmatprep.subr.bf16.mxu0 0
        %2522 = vmatpush1.bf16.msra.mxu0 0
        %2523 = vmatprep.subr.bf16.mxu0 0
        %2524 = vmatpush1.bf16.msra.mxu0 0
        %2525 = vmatprep.subr.bf16.mxu0 0
        %2526 = vmatpush1.bf16.msra.mxu0 0
        %2527 = vmatprep.subr.bf16.mxu0 0
        %2528 = vmatpush1.bf16.msra.mxu0 0
        %2529 = vmatprep.subr.bf16.mxu0 0
        %2530 = vmatpush1.bf16.msra.mxu0 0
        %2531 = vmatprep.subr.bf16.mxu0 0
        %2532 = vmatpush1.bf16.msra.mxu0 0
        %2533 = vmatprep.subr.bf16.mxu0 0
        %2534 = vmatpush1.bf16.msra.mxu0 0
        %2535 = vmatprep.subr.bf16.mxu0 0
        %2536 = vmatpush1.bf16.msra.mxu0 0
        %2537 = vmatprep.subr.bf16.mxu0 0
        %2538 = vmatpush1.bf16.msra.mxu0 0
        %2539 = vmatprep.subr.bf16.mxu0 0
        %2540 = vmatpush1.bf16.msra.mxu0 0
        %2541 = vmatprep.subr.bf16.mxu0 0
        %2542 = vmatpush1.bf16.msra.mxu0 0
        %2543 = vmatprep.subr.bf16.mxu0 0
        %2544 = vmatpush1.bf16.msra.mxu0 0
        %2545 = vmatprep.subr.bf16.mxu0 0
        %2546 = vmatpush1.bf16.msra.mxu0 0
        %2547 = vmatprep.subr.bf16.mxu0 0
        %2548 = vmatpush1.bf16.msra.mxu0 0
        %2549 = vmatprep.subr.bf16.mxu0 0
        %2550 = vmatpush1.bf16.msra.mxu0 0
        %2551 = vmatprep.mubr.bf16.mxu0 0
        %2552 = vmatmul.mubr.bf16.gmra.mrb[0].mxu0 %v2514
        %v2553 = vpop.f32.mrb[0].mxu0
        %v2554 = vadd.f32 0.0, %v2553
        %v2555 = vpop.f32.mrb[0].mxu0
        %v2556 = vpop.f32.mrb[0].mxu0
        %v2557 = vpop.f32.mrb[0].mxu0
        %2558 = vdwg.mxu0
        %v2560 = vsel %vm890, %v2506, 0
        %v2563 = vsel %vm1146, %v2510, 0
        %2565 = vmatprep.subr.bf16.mxu0 0
        %2566 = vmatpush1.bf16.msra.mxu0 %v2563
        %2567 = vmatprep.subr.bf16.mxu0 0
        %2568 = vmatpush1.bf16.msra.mxu0 0
        %2569 = vmatprep.subr.bf16.mxu0 0
        %2570 = vmatpush1.bf16.msra.mxu0 0
        %2571 = vmatprep.subr.bf16.mxu0 0
        %2572 = vmatpush1.bf16.msra.mxu0 0
        %2573 = vmatprep.subr.bf16.mxu0 0
        %2574 = vmatpush1.bf16.msra.mxu0 0
        %2575 = vmatprep.subr.bf16.mxu0 0
        %2576 = vmatpush1.bf16.msra.mxu0 0
        %2577 = vmatprep.subr.bf16.mxu0 0
        %2578 = vmatpush1.bf16.msra.mxu0 0
        %2579 = vmatprep.subr.bf16.mxu0 0
        %2580 = vmatpush1.bf16.msra.mxu0 0
        %2581 = vmatprep.subr.bf16.mxu0 0
        %2582 = vmatpush1.bf16.msra.mxu0 0
        %2583 = vmatprep.subr.bf16.mxu0 0
        %2584 = vmatpush1.bf16.msra.mxu0 0
        %2585 = vmatprep.subr.bf16.mxu0 0
        %2586 = vmatpush1.bf16.msra.mxu0 0
        %2587 = vmatprep.subr.bf16.mxu0 0
        %2588 = vmatpush1.bf16.msra.mxu0 0
        %2589 = vmatprep.subr.bf16.mxu0 0
        %2590 = vmatpush1.bf16.msra.mxu0 0
        %2591 = vmatprep.subr.bf16.mxu0 0
        %2592 = vmatpush1.bf16.msra.mxu0 0
        %2593 = vmatprep.subr.bf16.mxu0 0
        %2594 = vmatpush1.bf16.msra.mxu0 0
        %2595 = vmatprep.subr.bf16.mxu0 0
        %2596 = vmatpush1.bf16.msra.mxu0 0
        %2597 = vmatprep.mubr.bf16.mxu0 0
        %2598 = vmatmul.mubr.bf16.gmra.mrb[0].mxu0 %v2560
        %v2599 = vpop.f32.mrb[0].mxu0
        %v2600 = vadd.f32 0.0, %v2599
        %v2601 = vpop.f32.mrb[0].mxu0
        %v2602 = vpop.f32.mrb[0].mxu0
        %v2603 = vpop.f32.mrb[0].mxu0
        %2604 = vdwg.mxu0
        %v2606 = vsel %vm890, %v2507, 0
        %v2609 = vsel %vm1146, %v2511, 0
        %2611 = vmatprep.subr.bf16.mxu0 0
        %2612 = vmatpush1.bf16.msra.mxu0 %v2609
        %2613 = vmatprep.subr.bf16.mxu0 0
        %2614 = vmatpush1.bf16.msra.mxu0 0
        %2615 = vmatprep.subr.bf16.mxu0 0
        %2616 = vmatpush1.bf16.msra.mxu0 0
        %2617 = vmatprep.subr.bf16.mxu0 0
        %2618 = vmatpush1.bf16.msra.mxu0 0
        %2619 = vmatprep.subr.bf16.mxu0 0
        %2620 = vmatpush1.bf16.msra.mxu0 0
        %2621 = vmatprep.subr.bf16.mxu0 0
        %2622 = vmatpush1.bf16.msra.mxu0 0
        %2623 = vmatprep.subr.bf16.mxu0 0
        %2624 = vmatpush1.bf16.msra.mxu0 0
        %2625 = vmatprep.subr.bf16.mxu0 0
        %2626 = vmatpush1.bf16.msra.mxu0 0
        %2627 = vmatprep.subr.bf16.mxu0 0
        %2628 = vmatpush1.bf16.msra.mxu0 0
        %2629 = vmatprep.subr.bf16.mxu0 0
        %2630 = vmatpush1.bf16.msra.mxu0 0
        %2631 = vmatprep.subr.bf16.mxu0 0
        %2632 = vmatpush1.bf16.msra.mxu0 0
        %2633 = vmatprep.subr.bf16.mxu0 0
        %2634 = vmatpush1.bf16.msra.mxu0 0
        %2635 = vmatprep.subr.bf16.mxu0 0
        %2636 = vmatpush1.bf16.msra.mxu0 0
        %2637 = vmatprep.subr.bf16.mxu0 0
        %2638 = vmatpush1.bf16.msra.mxu0 0
        %2639 = vmatprep.subr.bf16.mxu0 0
        %2640 = vmatpush1.bf16.msra.mxu0 0
        %2641 = vmatprep.subr.bf16.mxu0 0
        %2642 = vmatpush1.bf16.msra.mxu0 0
        %2643 = vmatprep.mubr.bf16.mxu0 0
        %2644 = vmatmul.mubr.bf16.gmra.mrb[0].mxu0 %v2606
        %v2645 = vpop.f32.mrb[0].mxu0
        %v2646 = vadd.f32 0.0, %v2645
        %v2647 = vpop.f32.mrb[0].mxu0
        %v2648 = vpop.f32.mrb[0].mxu0
        %v2649 = vpop.f32.mrb[0].mxu0
        %2650 = vdwg.mxu0
        %v2652 = vsel %vm890, %v2508, 0
        %v2655 = vsel %vm1146, %v2512, 0
        %2657 = vmatprep.subr.bf16.mxu0 0
        %2658 = vmatpush1.bf16.msra.mxu0 %v2655
        %2659 = vmatprep.subr.bf16.mxu0 0
        %2660 = vmatpush1.bf16.msra.mxu0 0
        %2661 = vmatprep.subr.bf16.mxu0 0
        %2662 = vmatpush1.bf16.msra.mxu0 0
        %2663 = vmatprep.subr.bf16.mxu0 0
        %2664 = vmatpush1.bf16.msra.mxu0 0
        %2665 = vmatprep.subr.bf16.mxu0 0
        %2666 = vmatpush1.bf16.msra.mxu0 0
        %2667 = vmatprep.subr.bf16.mxu0 0
        %2668 = vmatpush1.bf16.msra.mxu0 0
        %2669 = vmatprep.subr.bf16.mxu0 0
        %2670 = vmatpush1.bf16.msra.mxu0 0
        %2671 = vmatprep.subr.bf16.mxu0 0
        %2672 = vmatpush1.bf16.msra.mxu0 0
        %2673 = vmatprep.subr.bf16.mxu0 0
        %2674 = vmatpush1.bf16.msra.mxu0 0
        %2675 = vmatprep.subr.bf16.mxu0 0
        %2676 = vmatpush1.bf16.msra.mxu0 0
        %2677 = vmatprep.subr.bf16.mxu0 0
        %2678 = vmatpush1.bf16.msra.mxu0 0
        %2679 = vmatprep.subr.bf16.mxu0 0
        %2680 = vmatpush1.bf16.msra.mxu0 0
        %2681 = vmatprep.subr.bf16.mxu0 0
        %2682 = vmatpush1.bf16.msra.mxu0 0
        %2683 = vmatprep.subr.bf16.mxu0 0
        %2684 = vmatpush1.bf16.msra.mxu0 0
        %2685 = vmatprep.subr.bf16.mxu0 0
        %2686 = vmatpush1.bf16.msra.mxu0 0
        %2687 = vmatprep.subr.bf16.mxu0 0
        %2688 = vmatpush1.bf16.msra.mxu0 0
        %2689 = vmatprep.mubr.bf16.mxu0 0
        %2690 = vmatmul.mubr.bf16.gmra.mrb[0].mxu0 %v2652
        %v2691 = vpop.f32.mrb[0].mxu0
        %v2692 = vadd.f32 0.0, %v2691
        %v2693 = vpop.f32.mrb[0].mxu0
        %v2694 = vpop.f32.mrb[0].mxu0
        %v2695 = vpop.f32.mrb[0].mxu0
        %2696 = vdwg.mxu0
        %v2697 = vcombine.low %v2554, %v2646
        %v2698 = vcombine.high %v2554, %v2646
        %v2700 = vunpack.c.l.s4 1983009808
        %v2701 = vunpack.c.0.s8 %v2700
        %v2702 = vlaneseq
        %v2703 = vshrl.u32 %v2702, 7
        %v2704 = vsub.s32 %v2701, %v2703
        %v2705 = vrot.slane %v2697, %v2704
        %v2707 = vunpack.c.l.s4 1983009808
        %v2708 = vunpack.c.0.s8 %v2707
        %v2709 = vlaneseq
        %v2710 = vshrl.u32 %v2709, 7
        %v2711 = vsub.s32 %v2708, %v2710
        %v2712 = vrot.slane %v2698, %v2711
        %v2713 = vcombine.low %v2600, %v2692
        %v2714 = vcombine.high %v2600, %v2692
        %v2716 = vunpack.c.l.s4 1983009808
        %v2717 = vunpack.c.0.s8 %v2716
        %v2718 = vlaneseq
        %v2719 = vshrl.u32 %v2718, 7
        %v2720 = vsub.s32 %v2717, %v2719
        %v2721 = vrot.slane %v2713, %v2720
        %v2723 = vunpack.c.l.s4 1983009808
        %v2724 = vunpack.c.0.s8 %v2723
        %v2725 = vlaneseq
        %v2726 = vshrl.u32 %v2725, 7
        %v2727 = vsub.s32 %v2724, %v2726
        %v2728 = vrot.slane %v2714, %v2727
        %v2729 = vcombine.low %v2705, %v2721
        %v2730 = vcombine.high %v2705, %v2721
        %v2732 = vunpack.c.l.s4 1934713408
        %v2733 = vunpack.c.0.s8 %v2732
        %v2734 = vlaneseq
        %v2735 = vshrl.u32 %v2734, 7
        %v2736 = vsub.s32 %v2733, %v2735
        %v2737 = vrot.slane %v2729, %v2736
        %v2739 = vunpack.c.l.s4 1934713408
        %v2740 = vunpack.c.0.s8 %v2739
        %v2741 = vlaneseq
        %v2742 = vshrl.u32 %v2741, 7
        %v2743 = vsub.s32 %v2740, %v2742
        %v2744 = vrot.slane %v2730, %v2743
        %v2745 = vcombine.low %v2712, %v2728
        %v2746 = vcombine.high %v2712, %v2728
        %v2748 = vunpack.c.l.s4 1934713408
        %v2749 = vunpack.c.0.s8 %v2748
        %v2750 = vlaneseq
        %v2751 = vshrl.u32 %v2750, 7
        %v2752 = vsub.s32 %v2749, %v2751
        %v2753 = vrot.slane %v2745, %v2752
        %v2755 = vunpack.c.l.s4 1934713408
        %v2756 = vunpack.c.0.s8 %v2755
        %v2757 = vlaneseq
        %v2758 = vshrl.u32 %v2757, 7
        %v2759 = vsub.s32 %v2756, %v2758
        %v2760 = vrot.slane %v2746, %v2759
        %v2761 = vcombine.high %v2737, 0.0
        %v2762 = vcombine.high %v2744, 0.0
        %v2763 = vcombine.high %v2753, 0.0
        %v2764 = vcombine.high %v2760, 0.0
        %v2765 = vcombine.low %v2737, %v2744
        %v2767 = vunpack.c.l.s4 1983009808
        %v2768 = vunpack.c.0.s8 %v2767
        %v2769 = vlaneseq
        %v2770 = vshrl.u32 %v2769, 7
        %v2771 = vsub.s32 %v2768, %v2770
        %v2772 = vrot.slane %v2765, %v2771
        %v2773 = vcombine.low %v2761, %v2762
        %v2775 = vunpack.c.l.s4 1983009808
        %v2776 = vunpack.c.0.s8 %v2775
        %v2777 = vlaneseq
        %v2778 = vshrl.u32 %v2777, 7
        %v2779 = vsub.s32 %v2776, %v2778
        %v2780 = vrot.slane %v2773, %v2779
        %v2781 = vcombine.low %v2753, %v2760
        %v2783 = vunpack.c.l.s4 1983009808
        %v2784 = vunpack.c.0.s8 %v2783
        %v2785 = vlaneseq
        %v2786 = vshrl.u32 %v2785, 7
        %v2787 = vsub.s32 %v2784, %v2786
        %v2788 = vrot.slane %v2781, %v2787
        %v2789 = vcombine.low %v2763, %v2764
        %v2791 = vunpack.c.l.s4 1983009808
        %v2792 = vunpack.c.0.s8 %v2791
        %v2793 = vlaneseq
        %v2794 = vshrl.u32 %v2793, 7
        %v2795 = vsub.s32 %v2792, %v2794
        %v2796 = vrot.slane %v2789, %v2795
        %v2797 = vcombine.low %v2772, %v2780
        %v2798 = vcombine.high %v2772, %v2780
        %v2800 = vunpack.c.l.s4 1934713408
        %v2801 = vunpack.c.0.s8 %v2800
        %v2802 = vlaneseq
        %v2803 = vshrl.u32 %v2802, 7
        %v2804 = vsub.s32 %v2801, %v2803
        %v2805 = vrot.slane %v2797, %v2804
        %v2807 = vunpack.c.l.s4 1934713408
        %v2808 = vunpack.c.0.s8 %v2807
        %v2809 = vlaneseq
        %v2810 = vshrl.u32 %v2809, 7
        %v2811 = vsub.s32 %v2808, %v2810
        %v2812 = vrot.slane %v2798, %v2811
        %v2813 = vcombine.low %v2788, %v2796
        %v2814 = vcombine.high %v2788, %v2796
        %v2816 = vunpack.c.l.s4 1934713408
        %v2817 = vunpack.c.0.s8 %v2816
        %v2818 = vlaneseq
        %v2819 = vshrl.u32 %v2818, 7
        %v2820 = vsub.s32 %v2817, %v2819
        %v2821 = vrot.slane %v2813, %v2820
        %v2823 = vunpack.c.l.s4 1934713408
        %v2824 = vunpack.c.0.s8 %v2823
        %v2825 = vlaneseq
        %v2826 = vshrl.u32 %v2825, 7
        %v2827 = vsub.s32 %v2824, %v2826
        %v2828 = vrot.slane %v2814, %v2827
        %v2829 = vcombine.low %v2805, %v2821
        %v2830 = vcombine.high %v2805, %v2821
        %v2831 = vcombine.low %v2812, %v2828
        %v2832 = vcombine.high %v2812, %v2828
        %2834 = vrot.lane.b32.xlu0 %v2830, 8
        %v2835 = vpop.permute.xlu0 %2834
        %2838 = vrot.lane.b32.xlu0 %v2831, 16
        %v2839 = vpop.permute.xlu0 %2838
        %2842 = vrot.lane.b32.xlu0 %v2832, 24
        %v2843 = vpop.permute.xlu0 %2842
        %v2845 = vsel %vm890, %v2829, %v2835
        %v2846 = vsel %vm1477, %v2845, %v2839
        %v2847 = vsel %vm1479, %v2846, %v2843
        %v2848 = vpack.c.bf16 %v2847, %v2847
        %v2849 = vlaneseq
        %v2850 = vshrl.u32 %v2849, 7
        %v2851 = vsub.s32 0, %v2850
        %v2852 = vrot.slane %v1752, %v2851
        %v2857 = vunpack.c.l.b16 %v1735
        %v2858 = vunpack.c.l.b16 %v1736
        %v2859 = vunpack.c.l.b16 %v1737
        %v2860 = vunpack.c.l.b16 %v1738
        %v2861 = vpack.c.b16 %v2858, %v2857
        %v2862 = vpack.c.b16 %v2860, %v2859
        %v2866 = vsel %vm325, %v2848, 0
        %2868 = vmatprep.subr.bf16.mxu0 0
        %2869 = vmatpush1.bf16.msra.mxu0 %v2861
        %2870 = vmatprep.subr.bf16.mxu0 0
        %2871 = vmatpush1.bf16.msra.mxu0 %v2862
        %2872 = vmatprep.subr.bf16.mxu0 0
        %2873 = vmatpush1.bf16.msra.mxu0 0
        %2874 = vmatprep.subr.bf16.mxu0 0
        %2875 = vmatpush1.bf16.msra.mxu0 0
        %2876 = vmatprep.subr.bf16.mxu0 0
        %2877 = vmatpush1.bf16.msra.mxu0 0
        %2878 = vmatprep.subr.bf16.mxu0 0
        %2879 = vmatpush1.bf16.msra.mxu0 0
        %2880 = vmatprep.subr.bf16.mxu0 0
        %2881 = vmatpush1.bf16.msra.mxu0 0
        %2882 = vmatprep.subr.bf16.mxu0 0
        %2883 = vmatpush1.bf16.msra.mxu0 0
        %2884 = vmatprep.subr.bf16.mxu0 0
        %2885 = vmatpush1.bf16.msra.mxu0 0
        %2886 = vmatprep.subr.bf16.mxu0 0
        %2887 = vmatpush1.bf16.msra.mxu0 0
        %2888 = vmatprep.subr.bf16.mxu0 0
        %2889 = vmatpush1.bf16.msra.mxu0 0
        %2890 = vmatprep.subr.bf16.mxu0 0
        %2891 = vmatpush1.bf16.msra.mxu0 0
        %2892 = vmatprep.subr.bf16.mxu0 0
        %2893 = vmatpush1.bf16.msra.mxu0 0
        %2894 = vmatprep.subr.bf16.mxu0 0
        %2895 = vmatpush1.bf16.msra.mxu0 0
        %2896 = vmatprep.subr.bf16.mxu0 0
        %2897 = vmatpush1.bf16.msra.mxu0 0
        %2898 = vmatprep.subr.bf16.mxu0 0
        %2899 = vmatpush1.bf16.msra.mxu0 0
        %2900 = vmatprep.mubr.bf16.mxu0 0
        %2901 = vmatmul.mubr.bf16.gmra.mrb[0].mxu0 %v2866
        %v2902 = vpop.f32.mrb[0].mxu0
        %v2903 = vadd.f32 %v2852, %v2902
        %v2904 = vpop.f32.mrb[0].mxu0
        %v2905 = vpop.f32.mrb[0].mxu0
        %v2906 = vpop.f32.mrb[0].mxu0
        %2907 = vdwg.mxu0
        %v2908 = vadd.f32 %v2903, %v1730
        %v2909 = vsel %vm325, %v2908, 0.0
        %2910 = vadd.xlane.f32.xlu0 %v2909
        %v2911 = vpop.xlane.xlu0 %2910
        %v2912 = vmul.f32 %v2911, %v329
        %v2913 = vsub.f32 %v2908, %v2912
        %v2914 = vmul.f32 %v2913, %v2913
        %v2915 = vsel %vm325, %v2914, 0.0
        %2916 = vadd.xlane.f32.xlu0 %v2915
        %v2917 = vpop.xlane.xlu0 %2916
        %v2918 = vmul.f32 %v2917, %v329
        %v2919 = vadd.f32 %v2918, 1e-12
        %v2920 = vrsqrt.pop %v2919
        %v2921 = vmul.f32 %v2913, %v2920
        %v2922 = vlaneseq
        %v2923 = vshrl.u32 %v2922, 7
        %v2924 = vsub.s32 0, %v2923
        %v2925 = vrot.slane %v1753, %v2924
        %v2926 = vmul.f32 %v2921, %v2925
        %v2927 = vlaneseq
        %v2928 = vshrl.u32 %v2927, 7
        %v2929 = vsub.s32 0, %v2928
        %v2930 = vrot.slane %v1754, %v2929
        %v2931 = vadd.f32 %v2926, %v2930
        %v2932 = vpack.c.bf16 %v2931, %v2931
        %v2933 = vlaneseq
        %v2934 = vshrl.u32 %v2933, 7
        %v2935 = vsub.s32 0, %v2934
        %v2936 = vrot.slane %v1755, %v2935
        %v2941 = vunpack.c.l.b16 %v1739
        %v2942 = vunpack.c.l.b16 %v1740
        %v2943 = vunpack.c.l.b16 %v1741
        %v2944 = vunpack.c.l.b16 %v1742
        %v2945 = vpack.c.b16 %v2942, %v2941
        %v2946 = vpack.c.b16 %v2944, %v2943
        %v2950 = vsel %vm325, %v2932, 0
        %2952 = vmatprep.subr.bf16.mxu0 0
        %2953 = vmatpush1.bf16.msra.mxu0 %v2945
        %2954 = vmatprep.subr.bf16.mxu0 0
        %2955 = vmatpush1.bf16.msra.mxu0 %v2946
        %2956 = vmatprep.subr.bf16.mxu0 0
        %2957 = vmatpush1.bf16.msra.mxu0 0
        %2958 = vmatprep.subr.bf16.mxu0 0
        %2959 = vmatpush1.bf16.msra.mxu0 0
        %2960 = vmatprep.subr.bf16.mxu0 0
        %2961 = vmatpush1.bf16.msra.mxu0 0
        %2962 = vmatprep.subr.bf16.mxu0 0
        %2963 = vmatpush1.bf16.msra.mxu0 0
        %2964 = vmatprep.subr.bf16.mxu0 0
        %2965 = vmatpush1.bf16.msra.mxu0 0
        %2966 = vmatprep.subr.bf16.mxu0 0
        %2967 = vmatpush1.bf16.msra.mxu0 0
        %2968 = vmatprep.subr.bf16.mxu0 0
        %2969 = vmatpush1.bf16.msra.mxu0 0
        %2970 = vmatprep.subr.bf16.mxu0 0
        %2971 = vmatpush1.bf16.msra.mxu0 0
        %2972 = vmatprep.subr.bf16.mxu0 0
        %2973 = vmatpush1.bf16.msra.mxu0 0
        %2974 = vmatprep.subr.bf16.mxu0 0
        %2975 = vmatpush1.bf16.msra.mxu0 0
        %2976 = vmatprep.subr.bf16.mxu0 0
        %2977 = vmatpush1.bf16.msra.mxu0 0
        %2978 = vmatprep.subr.bf16.mxu0 0
        %2979 = vmatpush1.bf16.msra.mxu0 0
        %2980 = vmatprep.subr.bf16.mxu0 0
        %2981 = vmatpush1.bf16.msra.mxu0 0
        %2982 = vmatprep.subr.bf16.mxu0 0
        %2983 = vmatpush1.bf16.msra.mxu0 0
        %2984 = vmatprep.mubr.bf16.mxu0 0
        %2985 = vmatmul.mubr.bf16.gmra.mrb[0].mxu0 %v2950
        %v2986 = vpop.f32.mrb[0].mxu0
        %v2987 = vadd.f32 %v2936, %v2986
        %v2988 = vpop.f32.mrb[0].mxu0
        %v2989 = vpop.f32.mrb[0].mxu0
        %v2990 = vpop.f32.mrb[0].mxu0
        %2991 = vdwg.mxu0
        %v2992 = vmul.f32 %v2987, 0.5
        %v2993 = vmul.f32 %v2987, 0.044715
        %v2994 = vmul.f32 %v2993, %v2987
        %v2995 = vmul.f32 %v2994, %v2987
        %v2996 = vadd.f32 %v2987, %v2995
        %v2997 = vmul.f32 %v2996, 0.7978846
        %v2998 = vtanh.pop %v2997
        %v2999 = vadd.f32 %v2998, 1.0
        %v3000 = vmul.f32 %v2992, %v2999
        %v3001 = vpack.c.bf16 %v3000, %v3000
        %v3002 = vlaneseq
        %v3003 = vshrl.u32 %v3002, 7
        %v3004 = vsub.s32 0, %v3003
        %v3005 = vrot.slane %v1756, %v3004
        %v3014 = vunpack.c.l.b16 %v1743
        %v3015 = vunpack.c.l.b16 %v1744
        %v3016 = vunpack.c.l.b16 %v1745
        %v3017 = vunpack.c.l.b16 %v1746
        %v3018 = vunpack.c.l.b16 %v1747
        %v3019 = vunpack.c.l.b16 %v1748
        %v3020 = vunpack.c.l.b16 %v1749
        %v3021 = vunpack.c.l.b16 %v1750
        %v3022 = vpack.c.b16 %v3015, %v3014
        %v3023 = vpack.c.b16 %v3017, %v3016
        %v3024 = vpack.c.b16 %v3019, %v3018
        %v3025 = vpack.c.b16 %v3021, %v3020
        %v3031 = vsel %vm1663, %v3001, 0
        %3033 = vmatprep.subr.bf16.mxu0 0
        %3034 = vmatpush1.bf16.msra.mxu0 %v3022
        %3035 = vmatprep.subr.bf16.mxu0 0
        %3036 = vmatpush1.bf16.msra.mxu0 %v3023
        %3037 = vmatprep.subr.bf16.mxu0 0
        %3038 = vmatpush1.bf16.msra.mxu0 %v3024
        %3039 = vmatprep.subr.bf16.mxu0 0
        %3040 = vmatpush1.bf16.msra.mxu0 %v3025
        %3041 = vmatprep.subr.bf16.mxu0 0
        %3042 = vmatpush1.bf16.msra.mxu0 0
        %3043 = vmatprep.subr.bf16.mxu0 0
        %3044 = vmatpush1.bf16.msra.mxu0 0
        %3045 = vmatprep.subr.bf16.mxu0 0
        %3046 = vmatpush1.bf16.msra.mxu0 0
        %3047 = vmatprep.subr.bf16.mxu0 0
        %3048 = vmatpush1.bf16.msra.mxu0 0
        %3049 = vmatprep.subr.bf16.mxu0 0
        %3050 = vmatpush1.bf16.msra.mxu0 0
        %3051 = vmatprep.subr.bf16.mxu0 0
        %3052 = vmatpush1.bf16.msra.mxu0 0
        %3053 = vmatprep.subr.bf16.mxu0 0
        %3054 = vmatpush1.bf16.msra.mxu0 0
        %3055 = vmatprep.subr.bf16.mxu0 0
        %3056 = vmatpush1.bf16.msra.mxu0 0
        %3057 = vmatprep.subr.bf16.mxu0 0
        %3058 = vmatpush1.bf16.msra.mxu0 0
        %3059 = vmatprep.subr.bf16.mxu0 0
        %3060 = vmatpush1.bf16.msra.mxu0 0
        %3061 = vmatprep.subr.bf16.mxu0 0
        %3062 = vmatpush1.bf16.msra.mxu0 0
        %3063 = vmatprep.subr.bf16.mxu0 0
        %3064 = vmatpush1.bf16.msra.mxu0 0
        %3065 = vmatprep.mubr.bf16.mxu0 0
        %3066 = vmatmul.mubr.bf16.gmra.mrb[0].mxu0 %v3031
        %v3067 = vpop.f32.mrb[0].mxu0
        %v3068 = vadd.f32 %v3005, %v3067
        %v3069 = vpop.f32.mrb[0].mxu0
        %v3070 = vpop.f32.mrb[0].mxu0
        %v3071 = vpop.f32.mrb[0].mxu0
        %3072 = vdwg.mxu0
        %v3073 = vadd.f32 %v3068, %v2931
        %v3074 = vsel %vm325, %v3073, 0.0
        %3075 = vadd.xlane.f32.xlu0 %v3074
        %v3076 = vpop.xlane.xlu0 %3075
        %v3077 = vmul.f32 %v3076, %v329
        %v3078 = vsub.f32 %v3073, %v3077
        %v3079 = vmul.f32 %v3078, %v3078
        %v3080 = vsel %vm325, %v3079, 0.0
        %3081 = vadd.xlane.f32.xlu0 %v3080
        %v3082 = vpop.xlane.xlu0 %3081
        %v3083 = vmul.f32 %v3082, %v329
        %v3084 = vadd.f32 %v3083, 1e-12
        %v3085 = vrsqrt.pop %v3084
        %v3086 = vmul.f32 %v3078, %v3085
        %v3087 = vlaneseq
        %v3088 = vshrl.u32 %v3087, 7
        %v3089 = vsub.s32 0, %v3088
        %v3090 = vrot.slane %v1757, %v3089
        %v3091 = vmul.f32 %v3086, %v3090
        %v3092 = vlaneseq
        %v3093 = vshrl.u32 %v3092, 7
        %v3094 = vsub.s32 0, %v3093
        %v3095 = vrot.slane %v1758, %v3094
        %v3096 = vadd.f32 %v3091, %v3095
        %v3097 = vpack.c.bf16 %v3096, %v3096
        %v3098 = vld [vmem:[#allocation2 + $0xf0] sm:$0xf]
        %v3099 = vld [vmem:[#allocation2 + $0xf4] sm:$0xf]
        %v3100 = vld [vmem:[#allocation2 + $0xf8] sm:$0xf]
        %v3101 = vld [vmem:[#allocation2 + $0xfc] sm:$0xf]
        %v3102 = vld [vmem:[%s2 + $0x12] sm:$0x1]
        %v3107 = vunpack.c.l.b16 %v3098
        %v3108 = vunpack.c.l.b16 %v3099
        %v3109 = vunpack.c.l.b16 %v3100
        %v3110 = vunpack.c.l.b16 %v3101
        %v3111 = vpack.c.b16 %v3108, %v3107
        %v3112 = vpack.c.b16 %v3110, %v3109
        %v3116 = vsel %vm325, %v3097, 0
        %3118 = vmatprep.subr.bf16.mxu0 0
        %3119 = vmatpush1.bf16.msra.mxu0 %v3111
        %3120 = vmatprep.subr.bf16.mxu0 0
        %3121 = vmatpush1.bf16.msra.mxu0 %v3112
        %3122 = vmatprep.subr.bf16.mxu0 0
        %3123 = vmatpush1.bf16.msra.mxu0 0
        %3124 = vmatprep.subr.bf16.mxu0 0
        %3125 = vmatpush1.bf16.msra.mxu0 0
        %3126 = vmatprep.subr.bf16.mxu0 0
        %3127 = vmatpush1.bf16.msra.mxu0 0
        %3128 = vmatprep.subr.bf16.mxu0 0
        %3129 = vmatpush1.bf16.msra.mxu0 0
        %3130 = vmatprep.subr.bf16.mxu0 0
        %3131 = vmatpush1.bf16.msra.mxu0 0
        %3132 = vmatprep.subr.bf16.mxu0 0
        %3133 = vmatpush1.bf16.msra.mxu0 0
        %3134 = vmatprep.subr.bf16.mxu0 0
        %3135 = vmatpush1.bf16.msra.mxu0 0
        %3136 = vmatprep.subr.bf16.mxu0 0
        %3137 = vmatpush1.bf16.msra.mxu0 0
        %3138 = vmatprep.subr.bf16.mxu0 0
        %3139 = vmatpush1.bf16.msra.mxu0 0
        %3140 = vmatprep.subr.bf16.mxu0 0
        %3141 = vmatpush1.bf16.msra.mxu0 0
        %3142 = vmatprep.subr.bf16.mxu0 0
        %3143 = vmatpush1.bf16.msra.mxu0 0
        %3144 = vmatprep.subr.bf16.mxu0 0
        %3145 = vmatpush1.bf16.msra.mxu0 0
        %3146 = vmatprep.subr.bf16.mxu0 0
        %3147 = vmatpush1.bf16.msra.mxu0 0
        %3148 = vmatprep.subr.bf16.mxu0 0
        %3149 = vmatpush1.bf16.msra.mxu0 0
        %3150 = vmatprep.mubr.bf16.mxu0 0
        %3151 = vmatmul.mubr.bf16.gmra.mrb[0].mxu0 %v3116
        %v3152 = vpop.f32.mrb[0].mxu0
        %v3153 = vadd.f32 %v3102, %v3152
        %v3154 = vpop.f32.mrb[0].mxu0
        %v3155 = vpop.f32.mrb[0].mxu0
        %v3156 = vpop.f32.mrb[0].mxu0
        %3157 = vdwg.mxu0
        %v3158 = vtanh.pop %v3153
        %v3159 = vpack.c.bf16 %v3158, %v3158
        %v3160 = vld [vmem:[#allocation2 + $0x100] sm:$0xf]
        %v3161 = vld [vmem:[#allocation2 + $0x104] sm:$0xf]
        %v3162 = vld [vmem:[#allocation2 + $0x108] sm:$0xf]
        %v3163 = vld [vmem:[#allocation2 + $0x10c] sm:$0xf]
        %v3164 = vld [vmem:[%s2 + $0x13] sm:$0x1]
        %v3169 = vunpack.c.l.b16 %v3160
        %v3170 = vunpack.c.l.b16 %v3161
        %v3171 = vunpack.c.l.b16 %v3162
        %v3172 = vunpack.c.l.b16 %v3163
        %v3173 = vpack.c.b16 %v3170, %v3169
        %v3174 = vpack.c.b16 %v3172, %v3171
        %v3178 = vsel %vm325, %v3159, 0
        %3180 = vmatprep.subr.bf16.mxu0 0
        %3181 = vmatpush1.bf16.msra.mxu0 %v3173
        %3182 = vmatprep.subr.bf16.mxu0 0
        %3183 = vmatpush1.bf16.msra.mxu0 %v3174
        %3184 = vmatprep.subr.bf16.mxu0 0
        %3185 = vmatpush1.bf16.msra.mxu0 0
        %3186 = vmatprep.subr.bf16.mxu0 0
        %3187 = vmatpush1.bf16.msra.mxu0 0
        %3188 = vmatprep.subr.bf16.mxu0 0
        %3189 = vmatpush1.bf16.msra.mxu0 0
        %3190 = vmatprep.subr.bf16.mxu0 0
        %3191 = vmatpush1.bf16.msra.mxu0 0
        %3192 = vmatprep.subr.bf16.mxu0 0
        %3193 = vmatpush1.bf16.msra.mxu0 0
        %3194 = vmatprep.subr.bf16.mxu0 0
        %3195 = vmatpush1.bf16.msra.mxu0 0
        %3196 = vmatprep.subr.bf16.mxu0 0
        %3197 = vmatpush1.bf16.msra.mxu0 0
        %3198 = vmatprep.subr.bf16.mxu0 0
        %3199 = vmatpush1.bf16.msra.mxu0 0
        %3200 = vmatprep.subr.bf16.mxu0 0
        %3201 = vmatpush1.bf16.msra.mxu0 0
        %3202 = vmatprep.subr.bf16.mxu0 0
        %3203 = vmatpush1.bf16.msra.mxu0 0
        %3204 = vmatprep.subr.bf16.mxu0 0
        %3205 = vmatpush1.bf16.msra.mxu0 0
        %3206 = vmatprep.subr.bf16.mxu0 0
        %3207 = vmatpush1.bf16.msra.mxu0 0
        %3208 = vmatprep.subr.bf16.mxu0 0
        %3209 = vmatpush1.bf16.msra.mxu0 0
        %3210 = vmatprep.subr.bf16.mxu0 0
        %3211 = vmatpush1.bf16.msra.mxu0 0
        %3212 = vmatprep.mubr.bf16.mxu0 0
        %3213 = vmatmul.mubr.bf16.gmra.mrb[0].mxu0 %v3178
        %v3214 = vpop.f32.mrb[0].mxu0
        %v3215 = vadd.f32 %v3164, %v3214
        %v3216 = vpop.f32.mrb[0].mxu0
        %v3217 = vpop.f32.mrb[0].mxu0
        %v3218 = vpop.f32.mrb[0].mxu0
        %3219 = vdwg.mxu0
        %3220 = vset.pattern.permute.xlu0 4
        %3221 = vperm.xlu0 %3220, %v185
        %v3222 = vpop.permute.xlu0 %3221
        %vm3223 = vcmp.eq.s32.totalorder %v187, %v3222
        %v3224 = vsel %vm3223, 1, 0
        %v3225 = vcvt.s32.f32 %v3224
        %vm3226 = vcmask 1040384
        %v3227 = vsel %vm3226, %v3215, -inf
        %3228 = vmax.xlane.f32.xlu0 %v3227
        %v3229 = vpop.xlane.xlu0 %3228
        %v3230 = vsub.f32 %v3215, %v3229
        %v3231 = vmul.f32 %v3230, 1.442695
        %v3232 = vpow.pop %v3231
        %v3233 = vsel %vm3226, %v3232, 0.0
        %3234 = vadd.xlane.f32.xlu0 %v3233
        %v3235 = vpop.xlane.xlu0 %3234
        %v3236 = vlog2.pop %v3235
        %v3237 = vmul.f32 %v3236, 0.6931472
        %v3238 = vadd.f32 %v3237, %v3229
        %v3239 = vsub.f32 %v3215, %v3238
        %v3240 = vmul.f32 %v3225, %v3239
        %v3241 = vsel %vm3226, %v3240, 0.0
        %3242 = vadd.xlane.f32.xlu0 %v3241
        %v3243 = vpop.xlane.xlu0 %3242
        %v3244 = vsub.f32 0.0, %v3243
        %3245 = vst [vmem:[%s180] sm:$0xff] 0.0
        %3246 = vst [vmem:[%s180] sm:$0x1] %v3215
        %3247 = vst [vmem:[%s180 + $0x1] sm:$0x1] %v3244
        %p3248 = scmp.lt.s32.totalorder %s15, 1
        %s3249 = scalar_select %p3248, %s15, 1
        %s3250 = smul.addr %s3249, 8
        %s3251 = scalar_lea.vmem %s3, %s3250
        // Predicated region
        $region37: #{mbert_base_forward.1} parent=31 // pred_check
          %p3252 = pneg %p101
        $region38: #{mbert_base_forward.1} parent=31 // pred_check_branch
          %3254 = sbr.rel (%p3252) target = $region40
        $region39: #{mbert_base_forward.1} parent=31 // pred_region
          _
        $region40: #{mbert_base_forward.1} parent=31 // pred_fallthru
          _
      $region32: #{mbert_base_forward.1} parent=5 // pred_fallthru
        _
      %p3255 = scmp.le.s32.totalorder 2, %s10
      // Predicated region
      $region41: #{mbert_base_forward.1} parent=5 // pred_check
        %p3256 = pneg %p3255
      $region42: #{mbert_base_forward.1} parent=5 // pred_check_branch
        %3258 = sbr.rel (%p3256) target = $region44
      $region43: #{mbert_base_forward.1} parent=5 // pred_region
        %s3259 = ssub.s32 %s10, 2
        // Predicated region
        $region45: #{mbert_base_forward.1} parent=43 // pred_check
          %p3260 = pneg %p107
        $region46: #{mbert_base_forward.1} parent=43 // pred_check_branch
          %3262 = sbr.rel (%p3260) target = $region48
        $region47: #{mbert_base_forward.1} parent=43 // pred_region
          %p3263 = scmp.lt.s32.totalorder %s16, 1
          %s3264 = scalar_select %p3263, %s16, 1
          %s3265 = smul.addr %s3264, 8
          %s3266 = scalar_lea.vmem %s3, %s3265
        $region48: #{mbert_base_forward.1} parent=43 // pred_fallthru
          _
      $region44: #{mbert_base_forward.1} parent=5 // pred_fallthru
        _
    $region6: #{mbert_base_forward.1} parent=1 // loop_footer
      %s14 = sadd.s32 1, %s10
    $region7: #{mbert_base_forward.1} parent=1 // loop_footer_branch
      %9 = sbr.rel target = $region3
    $region8: #{mbert_base_forward.1} parent=1 // loop_exit
      _
    %3267 = vsyncpa [#allocation3], 1
    %s3268 = scalar_lea.sflag [#allocation3], 1
    %3269 = vsyncpa %s3268, 1

</llo_original>
